<compile_context>
chip_gen: v7x
topology: tpu7x:2x2x1
jax: 0.10.0
libtpu: 0.0.40
codegen_flags: <defaults>
</compile_context>

<pallas_src>
import functools
import math

import jax
import jax.numpy as jnp
from jax.experimental import pallas as pl
from jax.experimental.pallas import tpu as pltpu  # imported for parity; not needed at toy sizes


# ----------------------------- config ---------------------------------------
VOCAB_SIZE = 100
HIDDEN = 32
NUM_LAYERS = 2
NUM_HEADS = 2
INTERMEDIATE = 64
MAX_POS = 16
TYPE_VOCAB = 2
NUM_LABELS = 2
LN_EPS = 1e-12
LANE = 128          # lane-dense width for the classifier output slab

BATCH = 2
SEQ = 8


# --------------------------- in-kernel helpers -------------------------------
def _layernorm(x, gamma, beta):
    mu = jnp.mean(x, axis=-1, keepdims=True)
    var = jnp.mean((x - mu) ** 2, axis=-1, keepdims=True)
    return (x - mu) * jax.lax.rsqrt(var + LN_EPS) * gamma + beta


def _gelu(x):
    # TODO(synk): HF BERT default uses exact erf-GELU; tanh approximation used here.
    c = math.sqrt(2.0 / math.pi)
    return 0.5 * x * (1.0 + jnp.tanh(c * (x + 0.044715 * x * x * x)))


# ------------------------------ fused kernel ---------------------------------
def bert_forward_kernel(emb_ref, mask_ref, gvec_ref, lvec_ref, wqkv_ref,
                        bqkv_ref, wo_ref, w1_ref, w2_ref, pw_ref, cw_ref,
                        out_ref, *, batch, seq, hidden, num_layers, num_heads):
    """Single invocation: emb LN -> L encoder layers -> pooler -> classifier."""
    B, S, H = batch, seq, hidden
    nH = num_heads
    dh = H // nH
    T = B * S
    scale = 1.0 / math.sqrt(dh)

    amask = mask_ref[...]                                   # [B*nH, 1, S] additive mask

    # --- embedding LayerNorm (dropout -> identity, eval mode) ---
    h = _layernorm(emb_ref[...], gvec_ref[0:1, :H], gvec_ref[1:2, :H])   # [T, H] f32

    # --- encoder stack: static loop over stacked [L, ...] weights ---
    # TODO(synk): at real BERT sizes (weights >> VMEM) the layer index should become a
    # streamed grid axis / manual per-layer double-buffer instead of all-resident weights.
    for l in range(num_layers):
        lv = lvec_ref[l]                                    # [7, I] packed per-layer vectors
        bo, ln1g, ln1b = lv[0:1, :H], lv[1:2, :H], lv[2:3, :H]
        b2, ln2g, ln2b = lv[3:4, :H], lv[4:5, :H], lv[5:6, :H]
        b1 = lv[6:7, :]

        # heads live on the leading batch axis: activations broadcast over heads,
        # per-head fused Q|K|V weights -> no lane-splitting reshape of activations.
        hb_bn = jnp.broadcast_to(h.reshape(B, S, H)[:, None, :, :],
                                 (B, nH, S, H)).reshape(B * nH, S, H)
        hb_bn = hb_bn.astype(jnp.bfloat16)                  # one cast feeds Q, K and V

        qkv = jnp.einsum('bsh,bhd->bsd', hb_bn, wqkv_ref[l],
                         preferred_element_type=jnp.float32) + bqkv_ref[l]   # [B*nH, S, 3*dh]
        q = qkv[..., 0:dh].astype(jnp.bfloat16)
        k = qkv[..., dh:2 * dh].astype(jnp.bfloat16)
        v = qkv[..., 2 * dh:3 * dh].astype(jnp.bfloat16)

        s = jnp.einsum('bqd,bkd->bqk', q, k,
                       preferred_element_type=jnp.float32) * scale + amask
        s = s - jnp.max(s, axis=-1, keepdims=True)
        p = jnp.exp(s)
        p = p * pl.reciprocal(jnp.sum(p, axis=-1, keepdims=True), approx=True)

        ctx = jnp.einsum('bqk,bkd->bqd', p.astype(jnp.bfloat16), v,
                         preferred_element_type=jnp.float32)                 # [B*nH, S, dh]

        # per-head output projection + sum over heads (no lane concat of heads)
        proj = jnp.einsum('bqd,bdh->bqh', ctx.astype(jnp.bfloat16), wo_ref[l],
                          preferred_element_type=jnp.float32)                # [B*nH, S, H]
        proj4 = proj.reshape(B, nH, S, H)
        attn3 = proj4[:, 0]
        for n in range(1, nH):
            attn3 = attn3 + proj4[:, n]
        attn = attn3.reshape(T, H) + bo
        # dropout -> identity (eval mode)
        h1 = _layernorm(attn + h, ln1g, ln1b)

        inter = jnp.dot(h1.astype(jnp.bfloat16), w1_ref[l],
                        preferred_element_type=jnp.float32) + b1
        inter = _gelu(inter)
        ffn = jnp.dot(inter.astype(jnp.bfloat16), w2_ref[l],
                      preferred_element_type=jnp.float32) + b2
        # dropout -> identity (eval mode)
        h = _layernorm(ffn + h1, ln2g, ln2b)

    # --- pooler + classifier batched over all B CLS rows, lane-dense 128-wide output ---
    cls_rows = jnp.concatenate([h[b * S:b * S + 1, :] for b in range(B)], axis=0)   # [B, H]
    pooled = jnp.tanh(jnp.dot(cls_rows.astype(jnp.bfloat16), pw_ref[...],
                              preferred_element_type=jnp.float32) + gvec_ref[2:3, :H])
    # dropout -> identity (eval mode)
    logits = jnp.dot(pooled.astype(jnp.bfloat16), cw_ref[...],
                     preferred_element_type=jnp.float32) + gvec_ref[3:4, :]          # [B, 128]
    out_ref[...] = logits.astype(out_ref.dtype)


# ------------------------------ wrapper --------------------------------------
def sentiment_forward(params, input_ids, attention_mask, token_type_ids):
    B, S = input_ids.shape
    H, L, I, nH = HIDDEN, NUM_LAYERS, INTERMEDIATE, NUM_HEADS
    dh = H // nH
    T = B * S

    # --- embeddings (gathers are glue, stay in XLA) ---
    positions = jnp.arange(S)
    emb = (params["word_emb"][input_ids]
           + params["pos_emb"][positions][None, :, :]
           + params["type_emb"][token_type_ids]).astype(jnp.float32)
    emb_flat = emb.reshape(T, H)                            # batch folded into sublanes
    # dropout on embeddings -> identity (eval mode)

    # --- additive attention mask, repeated over heads (fold index = b*nH + n) ---
    ext_mask = ((1.0 - attention_mask.astype(jnp.float32)) * -10000.0)[:, None, :]
    mask_bn = jnp.repeat(ext_mask, nH, axis=0)              # [B*nH, 1, S]

    # --- fused per-head Q|K|V weights / biases, tiled over batch (layout plumbing) ---
    wqkv = params["wqkv"].reshape(L, H, 3, nH, dh)
    wqkv = wqkv.transpose(0, 3, 1, 2, 4).reshape(L, nH, H, 3 * dh)
    wqkv_bn = jnp.tile(wqkv, (1, B, 1, 1))                  # [L, B*nH, H, 3*dh] bf16
    bqkv = params["bqkv"].reshape(L, 3, nH, dh)
    bqkv = bqkv.transpose(0, 2, 1, 3).reshape(L, nH, 1, 3 * dh)
    bqkv_bn = jnp.tile(bqkv, (1, B, 1, 1))                  # [L, B*nH, 1, 3*dh] f32

    # --- per-head attention-output weights (rows are head-major), tiled over batch ---
    wo_bn = jnp.tile(params["wo"].reshape(L, nH, dh, H), (1, B, 1, 1))   # [L, B*nH, dh, H]

    # --- pack per-layer small vectors: rows = [bo, ln1g, ln1b, b2, ln2g, ln2b, b1] ---
    def _pad_i(v):                                          # [L, H] -> [L, I]
        return jnp.pad(v, ((0, 0), (0, I - H)))
    lvec = jnp.stack([_pad_i(params["bo"]), _pad_i(params["ln1g"]), _pad_i(params["ln1b"]),
                      _pad_i(params["b2"]), _pad_i(params["ln2g"]), _pad_i(params["ln2b"]),
                      params["b1"]], axis=1)                # [L, 7, I] f32 (1 DMA)

    # --- pack global small vectors, lane-padded to 128: [emb_ln_g, emb_ln_b, pool_b, cls_b] ---
    def _pad_lane(v):
        return jnp.pad(v, (0, LANE - v.shape[0]))
    gvec = jnp.stack([_pad_lane(params["emb_ln_g"]), _pad_lane(params["emb_ln_b"]),
                      _pad_lane(params["pool_b"]), _pad_lane(params["cls_b"])], axis=0)

    # --- classifier weight padded into a lane-dense 128-wide slab ---
    cls_w_pad = jnp.zeros((H, LANE), jnp.float32).at[:, :NUM_LABELS].set(
        params["cls_w"]).astype(jnp.bfloat16)

    # Single invocation: no grid, all operands are full VMEM blocks, DMA'd once.
    out = pl.pallas_call(
        functools.partial(bert_forward_kernel, batch=B, seq=S, hidden=H,
                          num_layers=L, num_heads=nH),
        out_shape=jax.ShapeDtypeStruct((B, LANE), jnp.float32),
    )(emb_flat, mask_bn, gvec, lvec, wqkv_bn, bqkv_bn, wo_bn,
      params["w1"], params["w2"], params["pool_w"], cls_w_pad)

    return out[:, :NUM_LABELS]


# --------------------------- parameter init -----------------------------------
def init_params(key):
    H, L, I = HIDDEN, NUM_LAYERS, INTERMEDIATE

    def dense(k, shape):
        # matmul weights stored bf16: fed straight to the MXU (f32 accumulation in-kernel)
        return (0.02 * jax.random.normal(k, shape, jnp.float32)).astype(jnp.bfloat16)

    keys = iter(jax.random.split(key, 12))
    return {
        "word_emb": 0.02 * jax.random.normal(next(keys), (VOCAB_SIZE, H), jnp.float32),
        "pos_emb": 0.02 * jax.random.normal(next(keys), (MAX_POS, H), jnp.float32),
        "type_emb": 0.02 * jax.random.normal(next(keys), (TYPE_VOCAB, H), jnp.float32),
        "emb_ln_g": jnp.ones((H,), jnp.float32),
        "emb_ln_b": jnp.zeros((H,), jnp.float32),
        # per-layer weights stacked on a leading [L] axis; QKV fused as [Q | K | V] columns
        "wqkv": dense(next(keys), (L, H, 3 * H)),
        "bqkv": jnp.zeros((L, 3 * H), jnp.float32),
        "wo": dense(next(keys), (L, H, H)),        # [in (= concat heads, head-major), out]
        "bo": jnp.zeros((L, H), jnp.float32),
        "ln1g": jnp.ones((L, H), jnp.float32), "ln1b": jnp.zeros((L, H), jnp.float32),
        "w1": dense(next(keys), (L, H, I)), "b1": jnp.zeros((L, I), jnp.float32),
        "w2": dense(next(keys), (L, I, H)), "b2": jnp.zeros((L, H), jnp.float32),
        "ln2g": jnp.ones((L, H), jnp.float32), "ln2b": jnp.zeros((L, H), jnp.float32),
        "pool_w": dense(next(keys), (H, H)),
        "pool_b": jnp.zeros((H,), jnp.float32),
        "cls_w": 0.02 * jax.random.normal(next(keys), (H, NUM_LABELS), jnp.float32),
        "cls_b": jnp.zeros((NUM_LABELS,), jnp.float32),
    }


# -------------------------------- main -----------------------------------------
if __name__ == "__main__":
    key = jax.random.PRNGKey(0)
    k_param, k_ids = jax.random.split(key)

    params = init_params(k_param)
    input_ids = jax.random.randint(k_ids, (BATCH, SEQ), 0, VOCAB_SIZE, dtype=jnp.int32)
    attention_mask = jnp.ones((BATCH, SEQ), jnp.int32)
    token_type_ids = jnp.zeros((BATCH, SEQ), jnp.int32)

    forward = jax.jit(sentiment_forward)
    logits = forward(params, input_ids, attention_mask, token_type_ids)
    jax.block_until_ready(logits)
    assert logits.shape == (BATCH, NUM_LABELS)
    print("KERNEL_OK")
</pallas_src>

<mosaic_0001>
module attributes {stable_mosaic.version = 11 : i64} {
  func.func @bert_forward_kernel(%arg0: memref<16x32xf32, #tpu.memory_space<vmem>>, %arg1: memref<4x1x8xf32, #tpu.memory_space<vmem>>, %arg2: memref<4x128xf32, #tpu.memory_space<vmem>>, %arg3: memref<2x7x64xf32, #tpu.memory_space<vmem>>, %arg4: memref<2x4x32x48xbf16, #tpu.memory_space<vmem>>, %arg5: memref<2x4x1x48xf32, #tpu.memory_space<vmem>>, %arg6: memref<2x4x16x32xbf16, #tpu.memory_space<vmem>>, %arg7: memref<2x32x64xbf16, #tpu.memory_space<vmem>>, %arg8: memref<2x64x32xbf16, #tpu.memory_space<vmem>>, %arg9: memref<32x32xbf16, #tpu.memory_space<vmem>>, %arg10: memref<32x128xbf16, #tpu.memory_space<vmem>>, %arg11: memref<2x128xf32, #tpu.memory_space<vmem>>) attributes {dimension_semantics = [], scalar_prefetch = 0 : i64, scratch_operands = 0 : i64, tpu.core_type = #tpu.core_type<tc>} {
    %c0 = arith.constant 0 : index
    %c0_0 = arith.constant 0 : index
    %c0_1 = arith.constant 0 : index
    %0 = vector.load %arg1[%c0, %c0_0, %c0_1] : memref<4x1x8xf32, #tpu.memory_space<vmem>>, vector<4x1x8xf32>
    %c0_2 = arith.constant 0 : index
    %c0_3 = arith.constant 0 : index
    %1 = vector.load %arg0[%c0_2, %c0_3] : memref<16x32xf32, #tpu.memory_space<vmem>>, vector<16x32xf32>
    %c0_4 = arith.constant 0 : index
    %c0_5 = arith.constant 0 : index
    %2 = vector.load %arg2[%c0_4, %c0_5] : memref<4x128xf32, #tpu.memory_space<vmem>>, vector<1x32xf32>
    %c1 = arith.constant 1 : index
    %c0_6 = arith.constant 0 : index
    %3 = vector.load %arg2[%c1, %c0_6] : memref<4x128xf32, #tpu.memory_space<vmem>>, vector<1x32xf32>
    %cst = arith.constant dense<0.000000e+00> : vector<16xf32>
    %4 = vector.multi_reduction <add>, %1, %cst [1] : vector<16x32xf32> to vector<16xf32>
    %5 = vector.shape_cast %4 : vector<16xf32> to vector<16x1xf32>
    %cst_7 = arith.constant 3.200000e+01 : f32
    %6 = vector.broadcast %cst_7 : f32 to vector<16x1xf32>
    %7 = arith.divf %5, %6 : vector<16x1xf32>
    %8 = vector.broadcast %7 : vector<16x1xf32> to vector<16x32xf32>
    %9 = arith.subf %1, %8 : vector<16x32xf32>
    %10 = arith.mulf %9, %9 : vector<16x32xf32>
    %cst_8 = arith.constant dense<0.000000e+00> : vector<16xf32>
    %11 = vector.multi_reduction <add>, %10, %cst_8 [1] : vector<16x32xf32> to vector<16xf32>
    %12 = vector.shape_cast %11 : vector<16xf32> to vector<16x1xf32>
    %cst_9 = arith.constant 3.200000e+01 : f32
    %13 = vector.broadcast %cst_9 : f32 to vector<16x1xf32>
    %14 = arith.divf %12, %13 : vector<16x1xf32>
    %15 = vector.broadcast %7 : vector<16x1xf32> to vector<16x32xf32>
    %16 = arith.subf %1, %15 : vector<16x32xf32>
    %cst_10 = arith.constant 9.99999996E-13 : f32
    %17 = vector.broadcast %cst_10 : f32 to vector<16x1xf32>
    %18 = arith.addf %14, %17 : vector<16x1xf32>
    %19 = math.rsqrt %18 : vector<16x1xf32>
    %20 = vector.broadcast %19 : vector<16x1xf32> to vector<16x32xf32>
    %21 = arith.mulf %16, %20 : vector<16x32xf32>
    %22 = vector.broadcast %2 : vector<1x32xf32> to vector<16x32xf32>
    %23 = arith.mulf %21, %22 : vector<16x32xf32>
    %24 = vector.broadcast %3 : vector<1x32xf32> to vector<16x32xf32>
    %25 = arith.addf %23, %24 : vector<16x32xf32>
    %c0_11 = arith.constant 0 : index
    %c0_12 = arith.constant 0 : index
    %c0_13 = arith.constant 0 : index
    %26 = vector.load %arg3[%c0_11, %c0_12, %c0_13] : memref<2x7x64xf32, #tpu.memory_space<vmem>>, vector<1x7x64xf32>
    %27 = vector.shape_cast %26 : vector<1x7x64xf32> to vector<7x64xf32>
    %28 = vector.extract_strided_slice %27 {offsets = [0, 0], sizes = [1, 32], strides = [1, 1]} : vector<7x64xf32> to vector<1x32xf32>
    %29 = vector.extract_strided_slice %27 {offsets = [1, 0], sizes = [1, 32], strides = [1, 1]} : vector<7x64xf32> to vector<1x32xf32>
    %30 = vector.extract_strided_slice %27 {offsets = [2, 0], sizes = [1, 32], strides = [1, 1]} : vector<7x64xf32> to vector<1x32xf32>
    %31 = vector.extract_strided_slice %27 {offsets = [3, 0], sizes = [1, 32], strides = [1, 1]} : vector<7x64xf32> to vector<1x32xf32>
    %32 = vector.extract_strided_slice %27 {offsets = [4, 0], sizes = [1, 32], strides = [1, 1]} : vector<7x64xf32> to vector<1x32xf32>
    %33 = vector.extract_strided_slice %27 {offsets = [5, 0], sizes = [1, 32], strides = [1, 1]} : vector<7x64xf32> to vector<1x32xf32>
    %34 = vector.extract_strided_slice %27 {offsets = [6, 0], sizes = [1, 64], strides = [1, 1]} : vector<7x64xf32> to vector<1x64xf32>
    %35 = vector.shape_cast %25 : vector<16x32xf32> to vector<2x8x32xf32>
    %36 = vector.shape_cast %35 : vector<2x8x32xf32> to vector<2x1x8x32xf32>
    %37 = vector.shape_cast %36 : vector<2x1x8x32xf32> to vector<2x1x8x32xf32>
    %38 = vector.broadcast %37 : vector<2x1x8x32xf32> to vector<2x2x8x32xf32>
    %39 = vector.shape_cast %38 : vector<2x2x8x32xf32> to vector<4x8x32xf32>
    %40 = arith.truncf %39 : vector<4x8x32xf32> to vector<4x8x32xbf16>
    %c0_14 = arith.constant 0 : index
    %c0_15 = arith.constant 0 : index
    %c0_16 = arith.constant 0 : index
    %c0_17 = arith.constant 0 : index
    %41 = vector.load %arg4[%c0_14, %c0_15, %c0_16, %c0_17] : memref<2x4x32x48xbf16, #tpu.memory_space<vmem>>, vector<1x4x32x48xbf16>
    %42 = vector.shape_cast %41 : vector<1x4x32x48xbf16> to vector<4x32x48xbf16>
    "tpu.trace_start"() <{level = 10 : i32, message = "bsh,bhd->bsd"}> : () -> ()
    %cst_18 = arith.constant dense<0.000000e+00> : vector<4x8x48xf32>
    %43 = tpu.matmul %40, %42, %cst_18 {dimension_numbers = #tpu.dot_dimension_numbers<[2], [1], [1], [2], [0, 0, 0, 1, 1, 2], [0], [0]>} : vector<4x8x32xbf16>, vector<4x32x48xbf16>, vector<4x8x48xf32> -> vector<4x8x48xf32>
    "tpu.trace_stop"() : () -> ()
    %c0_19 = arith.constant 0 : index
    %c0_20 = arith.constant 0 : index
    %c0_21 = arith.constant 0 : index
    %c0_22 = arith.constant 0 : index
    %44 = vector.load %arg5[%c0_19, %c0_20, %c0_21, %c0_22] : memref<2x4x1x48xf32, #tpu.memory_space<vmem>>, vector<1x4x1x48xf32>
    %45 = vector.shape_cast %44 : vector<1x4x1x48xf32> to vector<4x1x48xf32>
    %46 = vector.broadcast %45 : vector<4x1x48xf32> to vector<4x8x48xf32>
    %47 = arith.addf %43, %46 : vector<4x8x48xf32>
    %48 = vector.extract_strided_slice %47 {offsets = [0, 0, 0], sizes = [4, 8, 16], strides = [1, 1, 1]} : vector<4x8x48xf32> to vector<4x8x16xf32>
    %49 = arith.truncf %48 : vector<4x8x16xf32> to vector<4x8x16xbf16>
    %50 = vector.extract_strided_slice %47 {offsets = [0, 0, 16], sizes = [4, 8, 16], strides = [1, 1, 1]} : vector<4x8x48xf32> to vector<4x8x16xf32>
    %51 = arith.truncf %50 : vector<4x8x16xf32> to vector<4x8x16xbf16>
    %52 = vector.extract_strided_slice %47 {offsets = [0, 0, 32], sizes = [4, 8, 16], strides = [1, 1, 1]} : vector<4x8x48xf32> to vector<4x8x16xf32>
    %53 = arith.truncf %52 : vector<4x8x16xf32> to vector<4x8x16xbf16>
    "tpu.trace_start"() <{level = 10 : i32, message = "bqd,bkd->bqk"}> : () -> ()
    %cst_23 = arith.constant dense<0.000000e+00> : vector<4x8x8xf32>
    %54 = tpu.matmul %49, %51, %cst_23 {dimension_numbers = #tpu.dot_dimension_numbers<[2], [2], [1], [1], [0, 0, 0, 1, 1, 1], [0], [0]>} : vector<4x8x16xbf16>, vector<4x8x16xbf16>, vector<4x8x8xf32> -> vector<4x8x8xf32>
    "tpu.trace_stop"() : () -> ()
    %cst_24 = arith.constant 2.500000e-01 : f32
    %55 = vector.broadcast %cst_24 : f32 to vector<4x8x8xf32>
    %56 = arith.mulf %54, %55 : vector<4x8x8xf32>
    %57 = vector.broadcast %0 : vector<4x1x8xf32> to vector<4x8x8xf32>
    %58 = arith.addf %56, %57 : vector<4x8x8xf32>
    %cst_25 = arith.constant dense<0xFF800000> : vector<4x8xf32>
    %59 = vector.multi_reduction <maximumf>, %58, %cst_25 [2] : vector<4x8x8xf32> to vector<4x8xf32>
    %60 = vector.shape_cast %59 : vector<4x8xf32> to vector<4x8x1xf32>
    %61 = vector.broadcast %60 : vector<4x8x1xf32> to vector<4x8x8xf32>
    %62 = arith.subf %58, %61 : vector<4x8x8xf32>
    %63 = math.exp %62 : vector<4x8x8xf32>
    %cst_26 = arith.constant dense<0.000000e+00> : vector<4x8xf32>
    %64 = vector.multi_reduction <add>, %63, %cst_26 [2] : vector<4x8x8xf32> to vector<4x8xf32>
    %65 = vector.shape_cast %64 : vector<4x8xf32> to vector<4x8x1xf32>
    %66 = tpu.reciprocal %65 {approx = true} : vector<4x8x1xf32> -> vector<4x8x1xf32>
    %67 = vector.broadcast %66 : vector<4x8x1xf32> to vector<4x8x8xf32>
    %68 = arith.mulf %63, %67 : vector<4x8x8xf32>
    %69 = arith.truncf %68 : vector<4x8x8xf32> to vector<4x8x8xbf16>
    "tpu.trace_start"() <{level = 10 : i32, message = "bqk,bkd->bqd"}> : () -> ()
    %cst_27 = arith.constant dense<0.000000e+00> : vector<4x8x16xf32>
    %70 = tpu.matmul %69, %53, %cst_27 {dimension_numbers = #tpu.dot_dimension_numbers<[2], [1], [1], [2], [0, 0, 0, 1, 1, 2], [0], [0]>} : vector<4x8x8xbf16>, vector<4x8x16xbf16>, vector<4x8x16xf32> -> vector<4x8x16xf32>
    "tpu.trace_stop"() : () -> ()
    %71 = arith.truncf %70 : vector<4x8x16xf32> to vector<4x8x16xbf16>
    %c0_28 = arith.constant 0 : index
    %c0_29 = arith.constant 0 : index
    %c0_30 = arith.constant 0 : index
    %c0_31 = arith.constant 0 : index
    %72 = vector.load %arg6[%c0_28, %c0_29, %c0_30, %c0_31] : memref<2x4x16x32xbf16, #tpu.memory_space<vmem>>, vector<1x4x16x32xbf16>
    %73 = vector.shape_cast %72 : vector<1x4x16x32xbf16> to vector<4x16x32xbf16>
    "tpu.trace_start"() <{level = 10 : i32, message = "bqd,bdh->bqh"}> : () -> ()
    %cst_32 = arith.constant dense<0.000000e+00> : vector<4x8x32xf32>
    %74 = tpu.matmul %71, %73, %cst_32 {dimension_numbers = #tpu.dot_dimension_numbers<[2], [1], [1], [2], [0, 0, 0, 1, 1, 2], [0], [0]>} : vector<4x8x16xbf16>, vector<4x16x32xbf16>, vector<4x8x32xf32> -> vector<4x8x32xf32>
    "tpu.trace_stop"() : () -> ()
    %75 = vector.shape_cast %74 : vector<4x8x32xf32> to vector<2x2x8x32xf32>
    %76 = vector.extract_strided_slice %75 {offsets = [0, 0, 0, 0], sizes = [2, 1, 8, 32], strides = [1, 1, 1, 1]} : vector<2x2x8x32xf32> to vector<2x1x8x32xf32>
    %77 = vector.shape_cast %76 : vector<2x1x8x32xf32> to vector<2x8x32xf32>
    %78 = vector.extract_strided_slice %75 {offsets = [0, 1, 0, 0], sizes = [2, 1, 8, 32], strides = [1, 1, 1, 1]} : vector<2x2x8x32xf32> to vector<2x1x8x32xf32>
    %79 = vector.shape_cast %78 : vector<2x1x8x32xf32> to vector<2x8x32xf32>
    %80 = arith.addf %77, %79 : vector<2x8x32xf32>
    %81 = vector.shape_cast %80 : vector<2x8x32xf32> to vector<16x32xf32>
    %82 = vector.broadcast %28 : vector<1x32xf32> to vector<16x32xf32>
    %83 = arith.addf %81, %82 : vector<16x32xf32>
    %84 = arith.addf %83, %25 : vector<16x32xf32>
    %cst_33 = arith.constant dense<0.000000e+00> : vector<16xf32>
    %85 = vector.multi_reduction <add>, %84, %cst_33 [1] : vector<16x32xf32> to vector<16xf32>
    %86 = vector.shape_cast %85 : vector<16xf32> to vector<16x1xf32>
    %cst_34 = arith.constant 3.200000e+01 : f32
    %87 = vector.broadcast %cst_34 : f32 to vector<16x1xf32>
    %88 = arith.divf %86, %87 : vector<16x1xf32>
    %89 = vector.broadcast %88 : vector<16x1xf32> to vector<16x32xf32>
    %90 = arith.subf %84, %89 : vector<16x32xf32>
    %91 = arith.mulf %90, %90 : vector<16x32xf32>
    %cst_35 = arith.constant dense<0.000000e+00> : vector<16xf32>
    %92 = vector.multi_reduction <add>, %91, %cst_35 [1] : vector<16x32xf32> to vector<16xf32>
    %93 = vector.shape_cast %92 : vector<16xf32> to vector<16x1xf32>
    %cst_36 = arith.constant 3.200000e+01 : f32
    %94 = vector.broadcast %cst_36 : f32 to vector<16x1xf32>
    %95 = arith.divf %93, %94 : vector<16x1xf32>
    %96 = vector.broadcast %88 : vector<16x1xf32> to vector<16x32xf32>
    %97 = arith.subf %84, %96 : vector<16x32xf32>
    %cst_37 = arith.constant 9.99999996E-13 : f32
    %98 = vector.broadcast %cst_37 : f32 to vector<16x1xf32>
    %99 = arith.addf %95, %98 : vector<16x1xf32>
    %100 = math.rsqrt %99 : vector<16x1xf32>
    %101 = vector.broadcast %100 : vector<16x1xf32> to vector<16x32xf32>
    %102 = arith.mulf %97, %101 : vector<16x32xf32>
    %103 = vector.broadcast %29 : vector<1x32xf32> to vector<16x32xf32>
    %104 = arith.mulf %102, %103 : vector<16x32xf32>
    %105 = vector.broadcast %30 : vector<1x32xf32> to vector<16x32xf32>
    %106 = arith.addf %104, %105 : vector<16x32xf32>
    %107 = arith.truncf %106 : vector<16x32xf32> to vector<16x32xbf16>
    %c0_38 = arith.constant 0 : index
    %c0_39 = arith.constant 0 : index
    %c0_40 = arith.constant 0 : index
    %108 = vector.load %arg7[%c0_38, %c0_39, %c0_40] : memref<2x32x64xbf16, #tpu.memory_space<vmem>>, vector<1x32x64xbf16>
    %109 = vector.shape_cast %108 : vector<1x32x64xbf16> to vector<32x64xbf16>
    %cst_41 = arith.constant dense<0.000000e+00> : vector<16x64xf32>
    %110 = tpu.matmul %107, %109, %cst_41 {dimension_numbers = #tpu.dot_dimension_numbers<[1], [0], [0], [1], [0, 0, 1, 1], [], []>} : vector<16x32xbf16>, vector<32x64xbf16>, vector<16x64xf32> -> vector<16x64xf32>
    %111 = vector.broadcast %34 : vector<1x64xf32> to vector<16x64xf32>
    %112 = arith.addf %110, %111 : vector<16x64xf32>
    %cst_42 = arith.constant 5.000000e-01 : f32
    %113 = vector.broadcast %cst_42 : f32 to vector<16x64xf32>
    %114 = arith.mulf %113, %112 : vector<16x64xf32>
    %cst_43 = arith.constant 4.471500e-02 : f32
    %115 = vector.broadcast %cst_43 : f32 to vector<16x64xf32>
    %116 = arith.mulf %115, %112 : vector<16x64xf32>
    %117 = arith.mulf %116, %112 : vector<16x64xf32>
    %118 = arith.mulf %117, %112 : vector<16x64xf32>
    %119 = arith.addf %112, %118 : vector<16x64xf32>
    %cst_44 = arith.constant 0.797884583 : f32
    %120 = vector.broadcast %cst_44 : f32 to vector<16x64xf32>
    %121 = arith.mulf %120, %119 : vector<16x64xf32>
    %122 = math.tanh %121 : vector<16x64xf32>
    %cst_45 = arith.constant 1.000000e+00 : f32
    %123 = vector.broadcast %cst_45 : f32 to vector<16x64xf32>
    %124 = arith.addf %123, %122 : vector<16x64xf32>
    %125 = arith.mulf %114, %124 : vector<16x64xf32>
    %126 = arith.truncf %125 : vector<16x64xf32> to vector<16x64xbf16>
    %c0_46 = arith.constant 0 : index
    %c0_47 = arith.constant 0 : index
    %c0_48 = arith.constant 0 : index
    %127 = vector.load %arg8[%c0_46, %c0_47, %c0_48] : memref<2x64x32xbf16, #tpu.memory_space<vmem>>, vector<1x64x32xbf16>
    %128 = vector.shape_cast %127 : vector<1x64x32xbf16> to vector<64x32xbf16>
    %cst_49 = arith.constant dense<0.000000e+00> : vector<16x32xf32>
    %129 = tpu.matmul %126, %128, %cst_49 {dimension_numbers = #tpu.dot_dimension_numbers<[1], [0], [0], [1], [0, 0, 1, 1], [], []>} : vector<16x64xbf16>, vector<64x32xbf16>, vector<16x32xf32> -> vector<16x32xf32>
    %130 = vector.broadcast %31 : vector<1x32xf32> to vector<16x32xf32>
    %131 = arith.addf %129, %130 : vector<16x32xf32>
    %132 = arith.addf %131, %106 : vector<16x32xf32>
    %cst_50 = arith.constant dense<0.000000e+00> : vector<16xf32>
    %133 = vector.multi_reduction <add>, %132, %cst_50 [1] : vector<16x32xf32> to vector<16xf32>
    %134 = vector.shape_cast %133 : vector<16xf32> to vector<16x1xf32>
    %cst_51 = arith.constant 3.200000e+01 : f32
    %135 = vector.broadcast %cst_51 : f32 to vector<16x1xf32>
    %136 = arith.divf %134, %135 : vector<16x1xf32>
    %137 = vector.broadcast %136 : vector<16x1xf32> to vector<16x32xf32>
    %138 = arith.subf %132, %137 : vector<16x32xf32>
    %139 = arith.mulf %138, %138 : vector<16x32xf32>
    %cst_52 = arith.constant dense<0.000000e+00> : vector<16xf32>
    %140 = vector.multi_reduction <add>, %139, %cst_52 [1] : vector<16x32xf32> to vector<16xf32>
    %141 = vector.shape_cast %140 : vector<16xf32> to vector<16x1xf32>
    %cst_53 = arith.constant 3.200000e+01 : f32
    %142 = vector.broadcast %cst_53 : f32 to vector<16x1xf32>
    %143 = arith.divf %141, %142 : vector<16x1xf32>
    %144 = vector.broadcast %136 : vector<16x1xf32> to vector<16x32xf32>
    %145 = arith.subf %132, %144 : vector<16x32xf32>
    %cst_54 = arith.constant 9.99999996E-13 : f32
    %146 = vector.broadcast %cst_54 : f32 to vector<16x1xf32>
    %147 = arith.addf %143, %146 : vector<16x1xf32>
    %148 = math.rsqrt %147 : vector<16x1xf32>
    %149 = vector.broadcast %148 : vector<16x1xf32> to vector<16x32xf32>
    %150 = arith.mulf %145, %149 : vector<16x32xf32>
    %151 = vector.broadcast %32 : vector<1x32xf32> to vector<16x32xf32>
    %152 = arith.mulf %150, %151 : vector<16x32xf32>
    %153 = vector.broadcast %33 : vector<1x32xf32> to vector<16x32xf32>
    %154 = arith.addf %152, %153 : vector<16x32xf32>
    %c1_55 = arith.constant 1 : index
    %c0_56 = arith.constant 0 : index
    %c0_57 = arith.constant 0 : index
    %155 = vector.load %arg3[%c1_55, %c0_56, %c0_57] : memref<2x7x64xf32, #tpu.memory_space<vmem>>, vector<1x7x64xf32>
    %156 = vector.shape_cast %155 : vector<1x7x64xf32> to vector<7x64xf32>
    %157 = vector.extract_strided_slice %156 {offsets = [0, 0], sizes = [1, 32], strides = [1, 1]} : vector<7x64xf32> to vector<1x32xf32>
    %158 = vector.extract_strided_slice %156 {offsets = [1, 0], sizes = [1, 32], strides = [1, 1]} : vector<7x64xf32> to vector<1x32xf32>
    %159 = vector.extract_strided_slice %156 {offsets = [2, 0], sizes = [1, 32], strides = [1, 1]} : vector<7x64xf32> to vector<1x32xf32>
    %160 = vector.extract_strided_slice %156 {offsets = [3, 0], sizes = [1, 32], strides = [1, 1]} : vector<7x64xf32> to vector<1x32xf32>
    %161 = vector.extract_strided_slice %156 {offsets = [4, 0], sizes = [1, 32], strides = [1, 1]} : vector<7x64xf32> to vector<1x32xf32>
    %162 = vector.extract_strided_slice %156 {offsets = [5, 0], sizes = [1, 32], strides = [1, 1]} : vector<7x64xf32> to vector<1x32xf32>
    %163 = vector.extract_strided_slice %156 {offsets = [6, 0], sizes = [1, 64], strides = [1, 1]} : vector<7x64xf32> to vector<1x64xf32>
    %164 = vector.shape_cast %154 : vector<16x32xf32> to vector<2x8x32xf32>
    %165 = vector.shape_cast %164 : vector<2x8x32xf32> to vector<2x1x8x32xf32>
    %166 = vector.shape_cast %165 : vector<2x1x8x32xf32> to vector<2x1x8x32xf32>
    %167 = vector.broadcast %166 : vector<2x1x8x32xf32> to vector<2x2x8x32xf32>
    %168 = vector.shape_cast %167 : vector<2x2x8x32xf32> to vector<4x8x32xf32>
    %169 = arith.truncf %168 : vector<4x8x32xf32> to vector<4x8x32xbf16>
    %c1_58 = arith.constant 1 : index
    %c0_59 = arith.constant 0 : index
    %c0_60 = arith.constant 0 : index
    %c0_61 = arith.constant 0 : index
    %170 = vector.load %arg4[%c1_58, %c0_59, %c0_60, %c0_61] : memref<2x4x32x48xbf16, #tpu.memory_space<vmem>>, vector<1x4x32x48xbf16>
    %171 = vector.shape_cast %170 : vector<1x4x32x48xbf16> to vector<4x32x48xbf16>
    "tpu.trace_start"() <{level = 10 : i32, message = "bsh,bhd->bsd"}> : () -> ()
    %cst_62 = arith.constant dense<0.000000e+00> : vector<4x8x48xf32>
    %172 = tpu.matmul %169, %171, %cst_62 {dimension_numbers = #tpu.dot_dimension_numbers<[2], [1], [1], [2], [0, 0, 0, 1, 1, 2], [0], [0]>} : vector<4x8x32xbf16>, vector<4x32x48xbf16>, vector<4x8x48xf32> -> vector<4x8x48xf32>
    "tpu.trace_stop"() : () -> ()
    %c1_63 = arith.constant 1 : index
    %c0_64 = arith.constant 0 : index
    %c0_65 = arith.constant 0 : index
    %c0_66 = arith.constant 0 : index
    %173 = vector.load %arg5[%c1_63, %c0_64, %c0_65, %c0_66] : memref<2x4x1x48xf32, #tpu.memory_space<vmem>>, vector<1x4x1x48xf32>
    %174 = vector.shape_cast %173 : vector<1x4x1x48xf32> to vector<4x1x48xf32>
    %175 = vector.broadcast %174 : vector<4x1x48xf32> to vector<4x8x48xf32>
    %176 = arith.addf %172, %175 : vector<4x8x48xf32>
    %177 = vector.extract_strided_slice %176 {offsets = [0, 0, 0], sizes = [4, 8, 16], strides = [1, 1, 1]} : vector<4x8x48xf32> to vector<4x8x16xf32>
    %178 = arith.truncf %177 : vector<4x8x16xf32> to vector<4x8x16xbf16>
    %179 = vector.extract_strided_slice %176 {offsets = [0, 0, 16], sizes = [4, 8, 16], strides = [1, 1, 1]} : vector<4x8x48xf32> to vector<4x8x16xf32>
    %180 = arith.truncf %179 : vector<4x8x16xf32> to vector<4x8x16xbf16>
    %181 = vector.extract_strided_slice %176 {offsets = [0, 0, 32], sizes = [4, 8, 16], strides = [1, 1, 1]} : vector<4x8x48xf32> to vector<4x8x16xf32>
    %182 = arith.truncf %181 : vector<4x8x16xf32> to vector<4x8x16xbf16>
    "tpu.trace_start"() <{level = 10 : i32, message = "bqd,bkd->bqk"}> : () -> ()
    %cst_67 = arith.constant dense<0.000000e+00> : vector<4x8x8xf32>
    %183 = tpu.matmul %178, %180, %cst_67 {dimension_numbers = #tpu.dot_dimension_numbers<[2], [2], [1], [1], [0, 0, 0, 1, 1, 1], [0], [0]>} : vector<4x8x16xbf16>, vector<4x8x16xbf16>, vector<4x8x8xf32> -> vector<4x8x8xf32>
    "tpu.trace_stop"() : () -> ()
    %cst_68 = arith.constant 2.500000e-01 : f32
    %184 = vector.broadcast %cst_68 : f32 to vector<4x8x8xf32>
    %185 = arith.mulf %183, %184 : vector<4x8x8xf32>
    %186 = vector.broadcast %0 : vector<4x1x8xf32> to vector<4x8x8xf32>
    %187 = arith.addf %185, %186 : vector<4x8x8xf32>
    %cst_69 = arith.constant dense<0xFF800000> : vector<4x8xf32>
    %188 = vector.multi_reduction <maximumf>, %187, %cst_69 [2] : vector<4x8x8xf32> to vector<4x8xf32>
    %189 = vector.shape_cast %188 : vector<4x8xf32> to vector<4x8x1xf32>
    %190 = vector.broadcast %189 : vector<4x8x1xf32> to vector<4x8x8xf32>
    %191 = arith.subf %187, %190 : vector<4x8x8xf32>
    %192 = math.exp %191 : vector<4x8x8xf32>
    %cst_70 = arith.constant dense<0.000000e+00> : vector<4x8xf32>
    %193 = vector.multi_reduction <add>, %192, %cst_70 [2] : vector<4x8x8xf32> to vector<4x8xf32>
    %194 = vector.shape_cast %193 : vector<4x8xf32> to vector<4x8x1xf32>
    %195 = tpu.reciprocal %194 {approx = true} : vector<4x8x1xf32> -> vector<4x8x1xf32>
    %196 = vector.broadcast %195 : vector<4x8x1xf32> to vector<4x8x8xf32>
    %197 = arith.mulf %192, %196 : vector<4x8x8xf32>
    %198 = arith.truncf %197 : vector<4x8x8xf32> to vector<4x8x8xbf16>
    "tpu.trace_start"() <{level = 10 : i32, message = "bqk,bkd->bqd"}> : () -> ()
    %cst_71 = arith.constant dense<0.000000e+00> : vector<4x8x16xf32>
    %199 = tpu.matmul %198, %182, %cst_71 {dimension_numbers = #tpu.dot_dimension_numbers<[2], [1], [1], [2], [0, 0, 0, 1, 1, 2], [0], [0]>} : vector<4x8x8xbf16>, vector<4x8x16xbf16>, vector<4x8x16xf32> -> vector<4x8x16xf32>
    "tpu.trace_stop"() : () -> ()
    %200 = arith.truncf %199 : vector<4x8x16xf32> to vector<4x8x16xbf16>
    %c1_72 = arith.constant 1 : index
    %c0_73 = arith.constant 0 : index
    %c0_74 = arith.constant 0 : index
    %c0_75 = arith.constant 0 : index
    %201 = vector.load %arg6[%c1_72, %c0_73, %c0_74, %c0_75] : memref<2x4x16x32xbf16, #tpu.memory_space<vmem>>, vector<1x4x16x32xbf16>
    %202 = vector.shape_cast %201 : vector<1x4x16x32xbf16> to vector<4x16x32xbf16>
    "tpu.trace_start"() <{level = 10 : i32, message = "bqd,bdh->bqh"}> : () -> ()
    %cst_76 = arith.constant dense<0.000000e+00> : vector<4x8x32xf32>
    %203 = tpu.matmul %200, %202, %cst_76 {dimension_numbers = #tpu.dot_dimension_numbers<[2], [1], [1], [2], [0, 0, 0, 1, 1, 2], [0], [0]>} : vector<4x8x16xbf16>, vector<4x16x32xbf16>, vector<4x8x32xf32> -> vector<4x8x32xf32>
    "tpu.trace_stop"() : () -> ()
    %204 = vector.shape_cast %203 : vector<4x8x32xf32> to vector<2x2x8x32xf32>
    %205 = vector.extract_strided_slice %204 {offsets = [0, 0, 0, 0], sizes = [2, 1, 8, 32], strides = [1, 1, 1, 1]} : vector<2x2x8x32xf32> to vector<2x1x8x32xf32>
    %206 = vector.shape_cast %205 : vector<2x1x8x32xf32> to vector<2x8x32xf32>
    %207 = vector.extract_strided_slice %204 {offsets = [0, 1, 0, 0], sizes = [2, 1, 8, 32], strides = [1, 1, 1, 1]} : vector<2x2x8x32xf32> to vector<2x1x8x32xf32>
    %208 = vector.shape_cast %207 : vector<2x1x8x32xf32> to vector<2x8x32xf32>
    %209 = arith.addf %206, %208 : vector<2x8x32xf32>
    %210 = vector.shape_cast %209 : vector<2x8x32xf32> to vector<16x32xf32>
    %211 = vector.broadcast %157 : vector<1x32xf32> to vector<16x32xf32>
    %212 = arith.addf %210, %211 : vector<16x32xf32>
    %213 = arith.addf %212, %154 : vector<16x32xf32>
    %cst_77 = arith.constant dense<0.000000e+00> : vector<16xf32>
    %214 = vector.multi_reduction <add>, %213, %cst_77 [1] : vector<16x32xf32> to vector<16xf32>
    %215 = vector.shape_cast %214 : vector<16xf32> to vector<16x1xf32>
    %cst_78 = arith.constant 3.200000e+01 : f32
    %216 = vector.broadcast %cst_78 : f32 to vector<16x1xf32>
    %217 = arith.divf %215, %216 : vector<16x1xf32>
    %218 = vector.broadcast %217 : vector<16x1xf32> to vector<16x32xf32>
    %219 = arith.subf %213, %218 : vector<16x32xf32>
    %220 = arith.mulf %219, %219 : vector<16x32xf32>
    %cst_79 = arith.constant dense<0.000000e+00> : vector<16xf32>
    %221 = vector.multi_reduction <add>, %220, %cst_79 [1] : vector<16x32xf32> to vector<16xf32>
    %222 = vector.shape_cast %221 : vector<16xf32> to vector<16x1xf32>
    %cst_80 = arith.constant 3.200000e+01 : f32
    %223 = vector.broadcast %cst_80 : f32 to vector<16x1xf32>
    %224 = arith.divf %222, %223 : vector<16x1xf32>
    %225 = vector.broadcast %217 : vector<16x1xf32> to vector<16x32xf32>
    %226 = arith.subf %213, %225 : vector<16x32xf32>
    %cst_81 = arith.constant 9.99999996E-13 : f32
    %227 = vector.broadcast %cst_81 : f32 to vector<16x1xf32>
    %228 = arith.addf %224, %227 : vector<16x1xf32>
    %229 = math.rsqrt %228 : vector<16x1xf32>
    %230 = vector.broadcast %229 : vector<16x1xf32> to vector<16x32xf32>
    %231 = arith.mulf %226, %230 : vector<16x32xf32>
    %232 = vector.broadcast %158 : vector<1x32xf32> to vector<16x32xf32>
    %233 = arith.mulf %231, %232 : vector<16x32xf32>
    %234 = vector.broadcast %159 : vector<1x32xf32> to vector<16x32xf32>
    %235 = arith.addf %233, %234 : vector<16x32xf32>
    %236 = arith.truncf %235 : vector<16x32xf32> to vector<16x32xbf16>
    %c1_82 = arith.constant 1 : index
    %c0_83 = arith.constant 0 : index
    %c0_84 = arith.constant 0 : index
    %237 = vector.load %arg7[%c1_82, %c0_83, %c0_84] : memref<2x32x64xbf16, #tpu.memory_space<vmem>>, vector<1x32x64xbf16>
    %238 = vector.shape_cast %237 : vector<1x32x64xbf16> to vector<32x64xbf16>
    %cst_85 = arith.constant dense<0.000000e+00> : vector<16x64xf32>
    %239 = tpu.matmul %236, %238, %cst_85 {dimension_numbers = #tpu.dot_dimension_numbers<[1], [0], [0], [1], [0, 0, 1, 1], [], []>} : vector<16x32xbf16>, vector<32x64xbf16>, vector<16x64xf32> -> vector<16x64xf32>
    %240 = vector.broadcast %163 : vector<1x64xf32> to vector<16x64xf32>
    %241 = arith.addf %239, %240 : vector<16x64xf32>
    %cst_86 = arith.constant 5.000000e-01 : f32
    %242 = vector.broadcast %cst_86 : f32 to vector<16x64xf32>
    %243 = arith.mulf %242, %241 : vector<16x64xf32>
    %cst_87 = arith.constant 4.471500e-02 : f32
    %244 = vector.broadcast %cst_87 : f32 to vector<16x64xf32>
    %245 = arith.mulf %244, %241 : vector<16x64xf32>
    %246 = arith.mulf %245, %241 : vector<16x64xf32>
    %247 = arith.mulf %246, %241 : vector<16x64xf32>
    %248 = arith.addf %241, %247 : vector<16x64xf32>
    %cst_88 = arith.constant 0.797884583 : f32
    %249 = vector.broadcast %cst_88 : f32 to vector<16x64xf32>
    %250 = arith.mulf %249, %248 : vector<16x64xf32>
    %251 = math.tanh %250 : vector<16x64xf32>
    %cst_89 = arith.constant 1.000000e+00 : f32
    %252 = vector.broadcast %cst_89 : f32 to vector<16x64xf32>
    %253 = arith.addf %252, %251 : vector<16x64xf32>
    %254 = arith.mulf %243, %253 : vector<16x64xf32>
    %255 = arith.truncf %254 : vector<16x64xf32> to vector<16x64xbf16>
    %c1_90 = arith.constant 1 : index
    %c0_91 = arith.constant 0 : index
    %c0_92 = arith.constant 0 : index
    %256 = vector.load %arg8[%c1_90, %c0_91, %c0_92] : memref<2x64x32xbf16, #tpu.memory_space<vmem>>, vector<1x64x32xbf16>
    %257 = vector.shape_cast %256 : vector<1x64x32xbf16> to vector<64x32xbf16>
    %cst_93 = arith.constant dense<0.000000e+00> : vector<16x32xf32>
    %258 = tpu.matmul %255, %257, %cst_93 {dimension_numbers = #tpu.dot_dimension_numbers<[1], [0], [0], [1], [0, 0, 1, 1], [], []>} : vector<16x64xbf16>, vector<64x32xbf16>, vector<16x32xf32> -> vector<16x32xf32>
    %259 = vector.broadcast %160 : vector<1x32xf32> to vector<16x32xf32>
    %260 = arith.addf %258, %259 : vector<16x32xf32>
    %261 = arith.addf %260, %235 : vector<16x32xf32>
    %cst_94 = arith.constant dense<0.000000e+00> : vector<16xf32>
    %262 = vector.multi_reduction <add>, %261, %cst_94 [1] : vector<16x32xf32> to vector<16xf32>
    %263 = vector.shape_cast %262 : vector<16xf32> to vector<16x1xf32>
    %cst_95 = arith.constant 3.200000e+01 : f32
    %264 = vector.broadcast %cst_95 : f32 to vector<16x1xf32>
    %265 = arith.divf %263, %264 : vector<16x1xf32>
    %266 = vector.broadcast %265 : vector<16x1xf32> to vector<16x32xf32>
    %267 = arith.subf %261, %266 : vector<16x32xf32>
    %268 = arith.mulf %267, %267 : vector<16x32xf32>
    %cst_96 = arith.constant dense<0.000000e+00> : vector<16xf32>
    %269 = vector.multi_reduction <add>, %268, %cst_96 [1] : vector<16x32xf32> to vector<16xf32>
    %270 = vector.shape_cast %269 : vector<16xf32> to vector<16x1xf32>
    %cst_97 = arith.constant 3.200000e+01 : f32
    %271 = vector.broadcast %cst_97 : f32 to vector<16x1xf32>
    %272 = arith.divf %270, %271 : vector<16x1xf32>
    %273 = vector.broadcast %265 : vector<16x1xf32> to vector<16x32xf32>
    %274 = arith.subf %261, %273 : vector<16x32xf32>
    %cst_98 = arith.constant 9.99999996E-13 : f32
    %275 = vector.broadcast %cst_98 : f32 to vector<16x1xf32>
    %276 = arith.addf %272, %275 : vector<16x1xf32>
    %277 = math.rsqrt %276 : vector<16x1xf32>
    %278 = vector.broadcast %277 : vector<16x1xf32> to vector<16x32xf32>
    %279 = arith.mulf %274, %278 : vector<16x32xf32>
    %280 = vector.broadcast %161 : vector<1x32xf32> to vector<16x32xf32>
    %281 = arith.mulf %279, %280 : vector<16x32xf32>
    %282 = vector.broadcast %162 : vector<1x32xf32> to vector<16x32xf32>
    %283 = arith.addf %281, %282 : vector<16x32xf32>
    %284 = vector.extract_strided_slice %283 {offsets = [0, 0], sizes = [1, 32], strides = [1, 1]} : vector<16x32xf32> to vector<1x32xf32>
    %285 = vector.extract_strided_slice %283 {offsets = [8, 0], sizes = [1, 32], strides = [1, 1]} : vector<16x32xf32> to vector<1x32xf32>
    %286 = tpu.concatenate %284, %285 in 0 : vector<1x32xf32>, vector<1x32xf32> -> vector<2x32xf32>
    %287 = arith.truncf %286 : vector<2x32xf32> to vector<2x32xbf16>
    %c0_99 = arith.constant 0 : index
    %c0_100 = arith.constant 0 : index
    %288 = vector.load %arg9[%c0_99, %c0_100] : memref<32x32xbf16, #tpu.memory_space<vmem>>, vector<32x32xbf16>
    %cst_101 = arith.constant dense<0.000000e+00> : vector<2x32xf32>
    %289 = tpu.matmul %287, %288, %cst_101 {dimension_numbers = #tpu.dot_dimension_numbers<[1], [0], [0], [1], [0, 0, 1, 1], [], []>} : vector<2x32xbf16>, vector<32x32xbf16>, vector<2x32xf32> -> vector<2x32xf32>
    %c2 = arith.constant 2 : index
    %c0_102 = arith.constant 0 : index
    %290 = vector.load %arg2[%c2, %c0_102] : memref<4x128xf32, #tpu.memory_space<vmem>>, vector<1x32xf32>
    %291 = vector.broadcast %290 : vector<1x32xf32> to vector<2x32xf32>
    %292 = arith.addf %289, %291 : vector<2x32xf32>
    %293 = math.tanh %292 : vector<2x32xf32>
    %294 = arith.truncf %293 : vector<2x32xf32> to vector<2x32xbf16>
    %c0_103 = arith.constant 0 : index
    %c0_104 = arith.constant 0 : index
    %295 = vector.load %arg10[%c0_103, %c0_104] : memref<32x128xbf16, #tpu.memory_space<vmem>>, vector<32x128xbf16>
    %cst_105 = arith.constant dense<0.000000e+00> : vector<2x128xf32>
    %296 = tpu.matmul %294, %295, %cst_105 {dimension_numbers = #tpu.dot_dimension_numbers<[1], [0], [0], [1], [0, 0, 1, 1], [], []>} : vector<2x32xbf16>, vector<32x128xbf16>, vector<2x128xf32> -> vector<2x128xf32>
    %c3 = arith.constant 3 : index
    %c0_106 = arith.constant 0 : index
    %297 = vector.load %arg2[%c3, %c0_106] : memref<4x128xf32, #tpu.memory_space<vmem>>, vector<1x128xf32>
    %298 = vector.broadcast %297 : vector<1x128xf32> to vector<2x128xf32>
    %299 = arith.addf %296, %298 : vector<2x128xf32>
    %c0_107 = arith.constant 0 : index
    %c0_108 = arith.constant 0 : index
    %300 = vector.load %arg11[%c0_107, %c0_108] : memref<2x128xf32, #tpu.memory_space<vmem>>, vector<2x128xf32>
    tpu.vector_store %arg11[%c0_107, %c0_108], %299 {strides = array<i32>} : memref<2x128xf32, #tpu.memory_space<vmem>>, vector<2x128xf32>,
    return
  }
}

</mosaic_0001>

<llo_original>
// kernel: sentiment_forward.1
$region0: #{sentiment_forward.1}
  #allocation0 [shape = 'u32[]', space=smem, size = 0x4, offset = 0x4, fixed_abs, tag = 'smem constant byte address 0x4 - core index']
  #allocation1 [shape = 'u32[144,128]{1,0:T(1,128)}', space=vmem, size = 0x12000, scoped, tag = 'internal scratch']
  %s0 = inlined_call_operand.vmem [shape: f32[16,32], index: 0, kind: input, shape index: {}]
  %s1 = inlined_call_operand.vmem [shape: f32[4,1,8], index: 1, kind: input, shape index: {}]
  %s2 = inlined_call_operand.vmem [shape: f32[4,128], index: 2, kind: input, shape index: {}]
  %s3 = inlined_call_operand.vmem [shape: f32[2,7,64], index: 3, kind: input, shape index: {}]
  %s4 = inlined_call_operand.vmem [shape: bf16[2,4,32,48], index: 4, kind: input, shape index: {}]
  %s5 = inlined_call_operand.vmem [shape: f32[2,4,1,48], index: 5, kind: input, shape index: {}]
  %s6 = inlined_call_operand.vmem [shape: bf16[2,4,16,32], index: 6, kind: input, shape index: {}]
  %s7 = inlined_call_operand.vmem [shape: bf16[2,32,64], index: 7, kind: input, shape index: {}]
  %s8 = inlined_call_operand.vmem [shape: bf16[2,64,32], index: 8, kind: input, shape index: {}]
  %s9 = inlined_call_operand.vmem [shape: bf16[32,32], index: 9, kind: input, shape index: {}]
  %s10 = inlined_call_operand.vmem [shape: bf16[32,128], index: 10, kind: input, shape index: {}]
  %s11 = inlined_call_operand.hbm [shape: f32[2,128], index: 11, kind: output, shape index: {}]
  %s12 = sld [smem:[#allocation0]]
  $region54: #{sentiment_forward.1} parent=0
    _
  %s14 = ssub.s32 1, %s12
  %s15 = scalar_select 0, %s14, %s12
  $region1: #{sentiment_forward.1} parent=0
    #allocation2 [shape = 'u8[1024]{0}', space=vmem, size = 0x400, scoped, tag = 'output window, operand 0, single buffered']
    #allocation3 [shape = 's32[1]{0}', space=sflag, size = 0x4, scoped, tag = 'scoped memory for sentiment_forward.1']
    %16 = vsyncpa [#allocation3], 0
    // Predicated region
    $region2: #{sentiment_forward.1} parent=1 // pred_check
      _
    $region3: #{sentiment_forward.1} parent=1 // pred_check_branch
      %18 = sbr.rel (0) target = $region5
    $region4: #{sentiment_forward.1} parent=1 // pred_region
      _
    $region5: #{sentiment_forward.1} parent=1 // pred_fallthru
      _
    // Predicated region
    $region6: #{sentiment_forward.1} parent=1 // pred_check
      _
    $region7: #{sentiment_forward.1} parent=1 // pred_check_branch
      %20 = sbr.rel (0) target = $region9
    $region8: #{sentiment_forward.1} parent=1 // pred_region
      _
    $region9: #{sentiment_forward.1} parent=1 // pred_fallthru
      _
    // Predicated region
    $region10: #{sentiment_forward.1} parent=1 // pred_check
      _
    $region11: #{sentiment_forward.1} parent=1 // pred_check_branch
      %22 = sbr.rel (0) target = $region13
    $region12: #{sentiment_forward.1} parent=1 // pred_region
      _
    $region13: #{sentiment_forward.1} parent=1 // pred_fallthru
      _
    // Predicated region
    $region14: #{sentiment_forward.1} parent=1 // pred_check
      _
    $region15: #{sentiment_forward.1} parent=1 // pred_check_branch
      %24 = sbr.rel (0) target = $region17
    $region16: #{sentiment_forward.1} parent=1 // pred_region
      _
    $region17: #{sentiment_forward.1} parent=1 // pred_fallthru
      _
    // Predicated region
    $region18: #{sentiment_forward.1} parent=1 // pred_check
      _
    $region19: #{sentiment_forward.1} parent=1 // pred_check_branch
      %26 = sbr.rel (0) target = $region21
    $region20: #{sentiment_forward.1} parent=1 // pred_region
      _
    $region21: #{sentiment_forward.1} parent=1 // pred_fallthru
      _
    // Predicated region
    $region22: #{sentiment_forward.1} parent=1 // pred_check
      _
    $region23: #{sentiment_forward.1} parent=1 // pred_check_branch
      %28 = sbr.rel (0) target = $region25
    $region24: #{sentiment_forward.1} parent=1 // pred_region
      _
    $region25: #{sentiment_forward.1} parent=1 // pred_fallthru
      _
    // Predicated region
    $region26: #{sentiment_forward.1} parent=1 // pred_check
      _
    $region27: #{sentiment_forward.1} parent=1 // pred_check_branch
      %30 = sbr.rel (0) target = $region29
    $region28: #{sentiment_forward.1} parent=1 // pred_region
      _
    $region29: #{sentiment_forward.1} parent=1 // pred_fallthru
      _
    // Predicated region
    $region30: #{sentiment_forward.1} parent=1 // pred_check
      _
    $region31: #{sentiment_forward.1} parent=1 // pred_check_branch
      %32 = sbr.rel (0) target = $region33
    $region32: #{sentiment_forward.1} parent=1 // pred_region
      _
    $region33: #{sentiment_forward.1} parent=1 // pred_fallthru
      _
    // Predicated region
    $region34: #{sentiment_forward.1} parent=1 // pred_check
      _
    $region35: #{sentiment_forward.1} parent=1 // pred_check_branch
      %34 = sbr.rel (0) target = $region37
    $region36: #{sentiment_forward.1} parent=1 // pred_region
      _
    $region37: #{sentiment_forward.1} parent=1 // pred_fallthru
      _
    // Predicated region
    $region38: #{sentiment_forward.1} parent=1 // pred_check
      _
    $region39: #{sentiment_forward.1} parent=1 // pred_check_branch
      %36 = sbr.rel (0) target = $region41
    $region40: #{sentiment_forward.1} parent=1 // pred_region
      _
    $region41: #{sentiment_forward.1} parent=1 // pred_fallthru
      _
    // Predicated region
    $region42: #{sentiment_forward.1} parent=1 // pred_check
      _
    $region43: #{sentiment_forward.1} parent=1 // pred_check_branch
      %38 = sbr.rel (0) target = $region45
    $region44: #{sentiment_forward.1} parent=1 // pred_region
      _
    $region45: #{sentiment_forward.1} parent=1 // pred_fallthru
      _
    %v40 = vld [vmem:[%s1] sm:$0x1]
    %v41 = vld [vmem:[%s1 + $0x1] sm:$0x1]
    %v42 = vld [vmem:[%s1 + $0x2] sm:$0x1]
    %v43 = vld [vmem:[%s1 + $0x3] sm:$0x1]
    %v44 = vld [vmem:[%s0] sm:$0xff]
    %v45 = vld [vmem:[%s0 + $0x8] sm:$0xff]
    %v46 = vld [vmem:[%s2] sm:$0x1]
    %v47 = vld [vmem:[%s2 + $0x1] sm:$0x1]
    %vm48 = vcmask 261120
    %v49 = vsel %vm48, %v44, 0.0
    %50 = vadd.xlane.f32.xlu0 %v49
    %v51 = vpop.xlane.xlu0 %50
    %v52 = vsel %vm48, %v45, 0.0
    %53 = vadd.xlane.f32.xlu0 %v52
    %v54 = vpop.xlane.xlu0 %53
    %v55 = vrcp.pop 32.0
    %v56 = vmul.f32 %v51, %v55
    %v57 = vmul.f32 %v54, %v55
    %v58 = vsub.f32 %v44, %v56
    %v59 = vsub.f32 %v45, %v57
    %v60 = vmul.f32 %v58, %v58
    %v61 = vmul.f32 %v59, %v59
    %v62 = vsel %vm48, %v60, 0.0
    %63 = vadd.xlane.f32.xlu0 %v62
    %v64 = vpop.xlane.xlu0 %63
    %v65 = vsel %vm48, %v61, 0.0
    %66 = vadd.xlane.f32.xlu0 %v65
    %v67 = vpop.xlane.xlu0 %66
    %v68 = vmul.f32 %v64, %v55
    %v69 = vmul.f32 %v67, %v55
    %v70 = vadd.f32 %v68, 1e-12
    %v71 = vadd.f32 %v69, 1e-12
    %v72 = vrsqrt.pop %v70
    %v73 = vrsqrt.pop %v71
    %v74 = vmul.f32 %v58, %v72
    %v75 = vmul.f32 %v59, %v73
    %v76 = vlaneseq
    %v77 = vshrl.u32 %v76, 7
    %v78 = vsub.s32 0, %v77
    %v79 = vrot.slane %v46, %v78
    %v80 = vmul.f32 %v74, %v79
    %v81 = vmul.f32 %v75, %v79
    %v82 = vlaneseq
    %v83 = vshrl.u32 %v82, 7
    %v84 = vsub.s32 0, %v83
    %v85 = vrot.slane %v47, %v84
    %v86 = vadd.f32 %v80, %v85
    %v87 = vadd.f32 %v81, %v85
    %v88 = vld [vmem:[%s3] sm:$0x7f]
    %v89 = vpack.c.bf16 %v86, %v86
    %v90 = vpack.c.bf16 %v87, %v87
    %v91 = vld [vmem:[%s4] sm:$0xf]
    %v92 = vld [vmem:[%s4 + $0x4] sm:$0xf]
    %v93 = vld [vmem:[%s4 + $0x8] sm:$0xf]
    %v94 = vld [vmem:[%s4 + $0xc] sm:$0xf]
    %v95 = vld [vmem:[%s4 + $0x10] sm:$0xf]
    %v96 = vld [vmem:[%s4 + $0x14] sm:$0xf]
    %v97 = vld [vmem:[%s4 + $0x18] sm:$0xf]
    %v98 = vld [vmem:[%s4 + $0x1c] sm:$0xf]
    %v99 = vld [vmem:[%s4 + $0x20] sm:$0xf]
    %v100 = vld [vmem:[%s4 + $0x24] sm:$0xf]
    %v101 = vld [vmem:[%s4 + $0x28] sm:$0xf]
    %v102 = vld [vmem:[%s4 + $0x2c] sm:$0xf]
    %v103 = vld [vmem:[%s4 + $0x30] sm:$0xf]
    %v104 = vld [vmem:[%s4 + $0x34] sm:$0xf]
    %v105 = vld [vmem:[%s4 + $0x38] sm:$0xf]
    %v106 = vld [vmem:[%s4 + $0x3c] sm:$0xf]
    %v107 = vld [vmem:[%s5] sm:$0x1]
    %v108 = vld [vmem:[%s5 + $0x1] sm:$0x1]
    %v109 = vld [vmem:[%s5 + $0x2] sm:$0x1]
    %v110 = vld [vmem:[%s5 + $0x3] sm:$0x1]
    %v115 = vlaneseq
    %v116 = vshrl.u32 %v115, 7
    %v117 = vsub.s32 0, %v116
    %v118 = vrot.slane %v107, %v117
    %v119 = vlaneseq
    %v120 = vshrl.u32 %v119, 7
    %v121 = vsub.s32 0, %v120
    %v122 = vrot.slane %v108, %v121
    %v123 = vlaneseq
    %v124 = vshrl.u32 %v123, 7
    %v125 = vsub.s32 0, %v124
    %v126 = vrot.slane %v109, %v125
    %v127 = vlaneseq
    %v128 = vshrl.u32 %v127, 7
    %v129 = vsub.s32 0, %v128
    %v130 = vrot.slane %v110, %v129
    %v139 = vunpack.c.l.b16 %v91
    %v140 = vunpack.c.l.b16 %v92
    %v141 = vunpack.c.l.b16 %v93
    %v142 = vunpack.c.l.b16 %v94
    %v143 = vpack.c.b16 %v140, %v139
    %v144 = vpack.c.b16 %v142, %v141
    %v148 = vsel %vm48, %v89, 0
    %150 = vmatprep.subr.bf16.mxu0 0
    %151 = vmatpush1.bf16.msra.mxu0 %v143
    %152 = vmatprep.subr.bf16.mxu0 0
    %153 = vmatpush1.bf16.msra.mxu0 %v144
    %154 = vmatprep.subr.bf16.mxu0 0
    %155 = vmatpush1.bf16.msra.mxu0 0
    %156 = vmatprep.subr.bf16.mxu0 0
    %157 = vmatpush1.bf16.msra.mxu0 0
    %158 = vmatprep.subr.bf16.mxu0 0
    %159 = vmatpush1.bf16.msra.mxu0 0
    %160 = vmatprep.subr.bf16.mxu0 0
    %161 = vmatpush1.bf16.msra.mxu0 0
    %162 = vmatprep.subr.bf16.mxu0 0
    %163 = vmatpush1.bf16.msra.mxu0 0
    %164 = vmatprep.subr.bf16.mxu0 0
    %165 = vmatpush1.bf16.msra.mxu0 0
    %166 = vmatprep.subr.bf16.mxu0 0
    %167 = vmatpush1.bf16.msra.mxu0 0
    %168 = vmatprep.subr.bf16.mxu0 0
    %169 = vmatpush1.bf16.msra.mxu0 0
    %170 = vmatprep.subr.bf16.mxu0 0
    %171 = vmatpush1.bf16.msra.mxu0 0
    %172 = vmatprep.subr.bf16.mxu0 0
    %173 = vmatpush1.bf16.msra.mxu0 0
    %174 = vmatprep.subr.bf16.mxu0 0
    %175 = vmatpush1.bf16.msra.mxu0 0
    %176 = vmatprep.subr.bf16.mxu0 0
    %177 = vmatpush1.bf16.msra.mxu0 0
    %178 = vmatprep.subr.bf16.mxu0 0
    %179 = vmatpush1.bf16.msra.mxu0 0
    %180 = vmatprep.subr.bf16.mxu0 0
    %181 = vmatpush1.bf16.msra.mxu0 0
    %182 = vmatprep.mubr.bf16.mxu0 0
    %183 = vmatmul.mubr.bf16.gmra.mrb[0].mxu0 %v148
    %v184 = vpop.f32.mrb[0].mxu0
    %v185 = vadd.f32 %v118, %v184
    %v186 = vpop.f32.mrb[0].mxu0
    %v187 = vpop.f32.mrb[0].mxu0
    %v188 = vpop.f32.mrb[0].mxu0
    %189 = vdwg.mxu0
    %v194 = vunpack.c.l.b16 %v95
    %v195 = vunpack.c.l.b16 %v96
    %v196 = vunpack.c.l.b16 %v97
    %v197 = vunpack.c.l.b16 %v98
    %v198 = vpack.c.b16 %v195, %v194
    %v199 = vpack.c.b16 %v197, %v196
    %202 = vmatprep.subr.bf16.mxu0 0
    %203 = vmatpush1.bf16.msra.mxu0 %v198
    %204 = vmatprep.subr.bf16.mxu0 0
    %205 = vmatpush1.bf16.msra.mxu0 %v199
    %206 = vmatprep.subr.bf16.mxu0 0
    %207 = vmatpush1.bf16.msra.mxu0 0
    %208 = vmatprep.subr.bf16.mxu0 0
    %209 = vmatpush1.bf16.msra.mxu0 0
    %210 = vmatprep.subr.bf16.mxu0 0
    %211 = vmatpush1.bf16.msra.mxu0 0
    %212 = vmatprep.subr.bf16.mxu0 0
    %213 = vmatpush1.bf16.msra.mxu0 0
    %214 = vmatprep.subr.bf16.mxu0 0
    %215 = vmatpush1.bf16.msra.mxu0 0
    %216 = vmatprep.subr.bf16.mxu0 0
    %217 = vmatpush1.bf16.msra.mxu0 0
    %218 = vmatprep.subr.bf16.mxu0 0
    %219 = vmatpush1.bf16.msra.mxu0 0
    %220 = vmatprep.subr.bf16.mxu0 0
    %221 = vmatpush1.bf16.msra.mxu0 0
    %222 = vmatprep.subr.bf16.mxu0 0
    %223 = vmatpush1.bf16.msra.mxu0 0
    %224 = vmatprep.subr.bf16.mxu0 0
    %225 = vmatpush1.bf16.msra.mxu0 0
    %226 = vmatprep.subr.bf16.mxu0 0
    %227 = vmatpush1.bf16.msra.mxu0 0
    %228 = vmatprep.subr.bf16.mxu0 0
    %229 = vmatpush1.bf16.msra.mxu0 0
    %230 = vmatprep.subr.bf16.mxu0 0
    %231 = vmatpush1.bf16.msra.mxu0 0
    %232 = vmatprep.subr.bf16.mxu0 0
    %233 = vmatpush1.bf16.msra.mxu0 0
    %234 = vmatprep.mubr.bf16.mxu0 0
    %235 = vmatmul.mubr.bf16.gmra.mrb[0].mxu0 %v148
    %v236 = vpop.f32.mrb[0].mxu0
    %v237 = vadd.f32 %v122, %v236
    %v238 = vpop.f32.mrb[0].mxu0
    %v239 = vpop.f32.mrb[0].mxu0
    %v240 = vpop.f32.mrb[0].mxu0
    %241 = vdwg.mxu0
    %v246 = vunpack.c.l.b16 %v99
    %v247 = vunpack.c.l.b16 %v100
    %v248 = vunpack.c.l.b16 %v101
    %v249 = vunpack.c.l.b16 %v102
    %v250 = vpack.c.b16 %v247, %v246
    %v251 = vpack.c.b16 %v249, %v248
    %v255 = vsel %vm48, %v90, 0
    %257 = vmatprep.subr.bf16.mxu0 0
    %258 = vmatpush1.bf16.msra.mxu0 %v250
    %259 = vmatprep.subr.bf16.mxu0 0
    %260 = vmatpush1.bf16.msra.mxu0 %v251
    %261 = vmatprep.subr.bf16.mxu0 0
    %262 = vmatpush1.bf16.msra.mxu0 0
    %263 = vmatprep.subr.bf16.mxu0 0
    %264 = vmatpush1.bf16.msra.mxu0 0
    %265 = vmatprep.subr.bf16.mxu0 0
    %266 = vmatpush1.bf16.msra.mxu0 0
    %267 = vmatprep.subr.bf16.mxu0 0
    %268 = vmatpush1.bf16.msra.mxu0 0
    %269 = vmatprep.subr.bf16.mxu0 0
    %270 = vmatpush1.bf16.msra.mxu0 0
    %271 = vmatprep.subr.bf16.mxu0 0
    %272 = vmatpush1.bf16.msra.mxu0 0
    %273 = vmatprep.subr.bf16.mxu0 0
    %274 = vmatpush1.bf16.msra.mxu0 0
    %275 = vmatprep.subr.bf16.mxu0 0
    %276 = vmatpush1.bf16.msra.mxu0 0
    %277 = vmatprep.subr.bf16.mxu0 0
    %278 = vmatpush1.bf16.msra.mxu0 0
    %279 = vmatprep.subr.bf16.mxu0 0
    %280 = vmatpush1.bf16.msra.mxu0 0
    %281 = vmatprep.subr.bf16.mxu0 0
    %282 = vmatpush1.bf16.msra.mxu0 0
    %283 = vmatprep.subr.bf16.mxu0 0
    %284 = vmatpush1.bf16.msra.mxu0 0
    %285 = vmatprep.subr.bf16.mxu0 0
    %286 = vmatpush1.bf16.msra.mxu0 0
    %287 = vmatprep.subr.bf16.mxu0 0
    %288 = vmatpush1.bf16.msra.mxu0 0
    %289 = vmatprep.mubr.bf16.mxu0 0
    %290 = vmatmul.mubr.bf16.gmra.mrb[0].mxu0 %v255
    %v291 = vpop.f32.mrb[0].mxu0
    %v292 = vadd.f32 %v126, %v291
    %v293 = vpop.f32.mrb[0].mxu0
    %v294 = vpop.f32.mrb[0].mxu0
    %v295 = vpop.f32.mrb[0].mxu0
    %296 = vdwg.mxu0
    %v301 = vunpack.c.l.b16 %v103
    %v302 = vunpack.c.l.b16 %v104
    %v303 = vunpack.c.l.b16 %v105
    %v304 = vunpack.c.l.b16 %v106
    %v305 = vpack.c.b16 %v302, %v301
    %v306 = vpack.c.b16 %v304, %v303
    %309 = vmatprep.subr.bf16.mxu0 0
    %310 = vmatpush1.bf16.msra.mxu0 %v305
    %311 = vmatprep.subr.bf16.mxu0 0
    %312 = vmatpush1.bf16.msra.mxu0 %v306
    %313 = vmatprep.subr.bf16.mxu0 0
    %314 = vmatpush1.bf16.msra.mxu0 0
    %315 = vmatprep.subr.bf16.mxu0 0
    %316 = vmatpush1.bf16.msra.mxu0 0
    %317 = vmatprep.subr.bf16.mxu0 0
    %318 = vmatpush1.bf16.msra.mxu0 0
    %319 = vmatprep.subr.bf16.mxu0 0
    %320 = vmatpush1.bf16.msra.mxu0 0
    %321 = vmatprep.subr.bf16.mxu0 0
    %322 = vmatpush1.bf16.msra.mxu0 0
    %323 = vmatprep.subr.bf16.mxu0 0
    %324 = vmatpush1.bf16.msra.mxu0 0
    %325 = vmatprep.subr.bf16.mxu0 0
    %326 = vmatpush1.bf16.msra.mxu0 0
    %327 = vmatprep.subr.bf16.mxu0 0
    %328 = vmatpush1.bf16.msra.mxu0 0
    %329 = vmatprep.subr.bf16.mxu0 0
    %330 = vmatpush1.bf16.msra.mxu0 0
    %331 = vmatprep.subr.bf16.mxu0 0
    %332 = vmatpush1.bf16.msra.mxu0 0
    %333 = vmatprep.subr.bf16.mxu0 0
    %334 = vmatpush1.bf16.msra.mxu0 0
    %335 = vmatprep.subr.bf16.mxu0 0
    %336 = vmatpush1.bf16.msra.mxu0 0
    %337 = vmatprep.subr.bf16.mxu0 0
    %338 = vmatpush1.bf16.msra.mxu0 0
    %339 = vmatprep.subr.bf16.mxu0 0
    %340 = vmatpush1.bf16.msra.mxu0 0
    %341 = vmatprep.mubr.bf16.mxu0 0
    %342 = vmatmul.mubr.bf16.gmra.mrb[0].mxu0 %v255
    %v343 = vpop.f32.mrb[0].mxu0
    %v344 = vadd.f32 %v130, %v343
    %v345 = vpop.f32.mrb[0].mxu0
    %v346 = vpop.f32.mrb[0].mxu0
    %v347 = vpop.f32.mrb[0].mxu0
    %348 = vdwg.mxu0
    %v349 = vpack.c.bf16 %v185, %v185
    %v350 = vpack.c.bf16 %v237, %v237
    %v351 = vpack.c.bf16 %v292, %v292
    %v352 = vpack.c.bf16 %v344, %v344
    %354 = vrot.lane.b32.xlu0 %v349, 112
    %v355 = vpop.permute.xlu0 %354
    %vm356 = vcmask 130048
    %v358 = vsel %vm356, %v349, 0
    %v361 = vsel %vm356, %v355, 0
    %363 = vmatprep.subr.bf16.mxu0 0
    %364 = vmatpush1.bf16.xpose.msra.mxu0 %v361
    %365 = vmatprep.subr.bf16.mxu0 0
    %366 = vmatpush1.bf16.xpose.msra.mxu0 0
    %367 = vmatprep.subr.bf16.mxu0 0
    %368 = vmatpush1.bf16.xpose.msra.mxu0 0
    %369 = vmatprep.subr.bf16.mxu0 0
    %370 = vmatpush1.bf16.xpose.msra.mxu0 0
    %371 = vmatprep.subr.bf16.mxu0 0
    %372 = vmatpush1.bf16.xpose.msra.mxu0 0
    %373 = vmatprep.subr.bf16.mxu0 0
    %374 = vmatpush1.bf16.xpose.msra.mxu0 0
    %375 = vmatprep.subr.bf16.mxu0 0
    %376 = vmatpush1.bf16.xpose.msra.mxu0 0
    %377 = vmatprep.subr.bf16.mxu0 0
    %378 = vmatpush1.bf16.xpose.msra.mxu0 0
    %379 = vmatprep.subr.bf16.mxu0 0
    %380 = vmatpush1.bf16.xpose.msra.mxu0 0
    %381 = vmatprep.subr.bf16.mxu0 0
    %382 = vmatpush1.bf16.xpose.msra.mxu0 0
    %383 = vmatprep.subr.bf16.mxu0 0
    %384 = vmatpush1.bf16.xpose.msra.mxu0 0
    %385 = vmatprep.subr.bf16.mxu0 0
    %386 = vmatpush1.bf16.xpose.msra.mxu0 0
    %387 = vmatprep.subr.bf16.mxu0 0
    %388 = vmatpush1.bf16.xpose.msra.mxu0 0
    %389 = vmatprep.subr.bf16.mxu0 0
    %390 = vmatpush1.bf16.xpose.msra.mxu0 0
    %391 = vmatprep.subr.bf16.mxu0 0
    %392 = vmatpush1.bf16.xpose.msra.mxu0 0
    %393 = vmatprep.subr.bf16.mxu0 0
    %394 = vmatpush1.bf16.xpose.msra.mxu0 0
    %395 = vmatprep.mubr.bf16.mxu0 0
    %396 = vmatmul.mubr.bf16.gmra.mrb[0].mxu0 %v358
    %v397 = vpop.f32.mrb[0].mxu0
    %v398 = vadd.f32 0.0, %v397
    %v399 = vpop.f32.mrb[0].mxu0
    %v400 = vpop.f32.mrb[0].mxu0
    %v401 = vpop.f32.mrb[0].mxu0
    %402 = vdwg.mxu0
    %404 = vrot.lane.b32.xlu0 %v350, 112
    %v405 = vpop.permute.xlu0 %404
    %v407 = vsel %vm356, %v350, 0
    %v410 = vsel %vm356, %v405, 0
    %412 = vmatprep.subr.bf16.mxu0 0
    %413 = vmatpush1.bf16.xpose.msra.mxu0 %v410
    %414 = vmatprep.subr.bf16.mxu0 0
    %415 = vmatpush1.bf16.xpose.msra.mxu0 0
    %416 = vmatprep.subr.bf16.mxu0 0
    %417 = vmatpush1.bf16.xpose.msra.mxu0 0
    %418 = vmatprep.subr.bf16.mxu0 0
    %419 = vmatpush1.bf16.xpose.msra.mxu0 0
    %420 = vmatprep.subr.bf16.mxu0 0
    %421 = vmatpush1.bf16.xpose.msra.mxu0 0
    %422 = vmatprep.subr.bf16.mxu0 0
    %423 = vmatpush1.bf16.xpose.msra.mxu0 0
    %424 = vmatprep.subr.bf16.mxu0 0
    %425 = vmatpush1.bf16.xpose.msra.mxu0 0
    %426 = vmatprep.subr.bf16.mxu0 0
    %427 = vmatpush1.bf16.xpose.msra.mxu0 0
    %428 = vmatprep.subr.bf16.mxu0 0
    %429 = vmatpush1.bf16.xpose.msra.mxu0 0
    %430 = vmatprep.subr.bf16.mxu0 0
    %431 = vmatpush1.bf16.xpose.msra.mxu0 0
    %432 = vmatprep.subr.bf16.mxu0 0
    %433 = vmatpush1.bf16.xpose.msra.mxu0 0
    %434 = vmatprep.subr.bf16.mxu0 0
    %435 = vmatpush1.bf16.xpose.msra.mxu0 0
    %436 = vmatprep.subr.bf16.mxu0 0
    %437 = vmatpush1.bf16.xpose.msra.mxu0 0
    %438 = vmatprep.subr.bf16.mxu0 0
    %439 = vmatpush1.bf16.xpose.msra.mxu0 0
    %440 = vmatprep.subr.bf16.mxu0 0
    %441 = vmatpush1.bf16.xpose.msra.mxu0 0
    %442 = vmatprep.subr.bf16.mxu0 0
    %443 = vmatpush1.bf16.xpose.msra.mxu0 0
    %444 = vmatprep.mubr.bf16.mxu0 0
    %445 = vmatmul.mubr.bf16.gmra.mrb[0].mxu0 %v407
    %v446 = vpop.f32.mrb[0].mxu0
    %v447 = vadd.f32 0.0, %v446
    %v448 = vpop.f32.mrb[0].mxu0
    %v449 = vpop.f32.mrb[0].mxu0
    %v450 = vpop.f32.mrb[0].mxu0
    %451 = vdwg.mxu0
    %453 = vrot.lane.b32.xlu0 %v351, 112
    %v454 = vpop.permute.xlu0 %453
    %v456 = vsel %vm356, %v351, 0
    %v459 = vsel %vm356, %v454, 0
    %461 = vmatprep.subr.bf16.mxu0 0
    %462 = vmatpush1.bf16.xpose.msra.mxu0 %v459
    %463 = vmatprep.subr.bf16.mxu0 0
    %464 = vmatpush1.bf16.xpose.msra.mxu0 0
    %465 = vmatprep.subr.bf16.mxu0 0
    %466 = vmatpush1.bf16.xpose.msra.mxu0 0
    %467 = vmatprep.subr.bf16.mxu0 0
    %468 = vmatpush1.bf16.xpose.msra.mxu0 0
    %469 = vmatprep.subr.bf16.mxu0 0
    %470 = vmatpush1.bf16.xpose.msra.mxu0 0
    %471 = vmatprep.subr.bf16.mxu0 0
    %472 = vmatpush1.bf16.xpose.msra.mxu0 0
    %473 = vmatprep.subr.bf16.mxu0 0
    %474 = vmatpush1.bf16.xpose.msra.mxu0 0
    %475 = vmatprep.subr.bf16.mxu0 0
    %476 = vmatpush1.bf16.xpose.msra.mxu0 0
    %477 = vmatprep.subr.bf16.mxu0 0
    %478 = vmatpush1.bf16.xpose.msra.mxu0 0
    %479 = vmatprep.subr.bf16.mxu0 0
    %480 = vmatpush1.bf16.xpose.msra.mxu0 0
    %481 = vmatprep.subr.bf16.mxu0 0
    %482 = vmatpush1.bf16.xpose.msra.mxu0 0
    %483 = vmatprep.subr.bf16.mxu0 0
    %484 = vmatpush1.bf16.xpose.msra.mxu0 0
    %485 = vmatprep.subr.bf16.mxu0 0
    %486 = vmatpush1.bf16.xpose.msra.mxu0 0
    %487 = vmatprep.subr.bf16.mxu0 0
    %488 = vmatpush1.bf16.xpose.msra.mxu0 0
    %489 = vmatprep.subr.bf16.mxu0 0
    %490 = vmatpush1.bf16.xpose.msra.mxu0 0
    %491 = vmatprep.subr.bf16.mxu0 0
    %492 = vmatpush1.bf16.xpose.msra.mxu0 0
    %493 = vmatprep.mubr.bf16.mxu0 0
    %494 = vmatmul.mubr.bf16.gmra.mrb[0].mxu0 %v456
    %v495 = vpop.f32.mrb[0].mxu0
    %v496 = vadd.f32 0.0, %v495
    %v497 = vpop.f32.mrb[0].mxu0
    %v498 = vpop.f32.mrb[0].mxu0
    %v499 = vpop.f32.mrb[0].mxu0
    %500 = vdwg.mxu0
    %502 = vrot.lane.b32.xlu0 %v352, 112
    %v503 = vpop.permute.xlu0 %502
    %v505 = vsel %vm356, %v352, 0
    %v508 = vsel %vm356, %v503, 0
    %510 = vmatprep.subr.bf16.mxu0 0
    %511 = vmatpush1.bf16.xpose.msra.mxu0 %v508
    %512 = vmatprep.subr.bf16.mxu0 0
    %513 = vmatpush1.bf16.xpose.msra.mxu0 0
    %514 = vmatprep.subr.bf16.mxu0 0
    %515 = vmatpush1.bf16.xpose.msra.mxu0 0
    %516 = vmatprep.subr.bf16.mxu0 0
    %517 = vmatpush1.bf16.xpose.msra.mxu0 0
    %518 = vmatprep.subr.bf16.mxu0 0
    %519 = vmatpush1.bf16.xpose.msra.mxu0 0
    %520 = vmatprep.subr.bf16.mxu0 0
    %521 = vmatpush1.bf16.xpose.msra.mxu0 0
    %522 = vmatprep.subr.bf16.mxu0 0
    %523 = vmatpush1.bf16.xpose.msra.mxu0 0
    %524 = vmatprep.subr.bf16.mxu0 0
    %525 = vmatpush1.bf16.xpose.msra.mxu0 0
    %526 = vmatprep.subr.bf16.mxu0 0
    %527 = vmatpush1.bf16.xpose.msra.mxu0 0
    %528 = vmatprep.subr.bf16.mxu0 0
    %529 = vmatpush1.bf16.xpose.msra.mxu0 0
    %530 = vmatprep.subr.bf16.mxu0 0
    %531 = vmatpush1.bf16.xpose.msra.mxu0 0
    %532 = vmatprep.subr.bf16.mxu0 0
    %533 = vmatpush1.bf16.xpose.msra.mxu0 0
    %534 = vmatprep.subr.bf16.mxu0 0
    %535 = vmatpush1.bf16.xpose.msra.mxu0 0
    %536 = vmatprep.subr.bf16.mxu0 0
    %537 = vmatpush1.bf16.xpose.msra.mxu0 0
    %538 = vmatprep.subr.bf16.mxu0 0
    %539 = vmatpush1.bf16.xpose.msra.mxu0 0
    %540 = vmatprep.subr.bf16.mxu0 0
    %541 = vmatpush1.bf16.xpose.msra.mxu0 0
    %542 = vmatprep.mubr.bf16.mxu0 0
    %543 = vmatmul.mubr.bf16.gmra.mrb[0].mxu0 %v505
    %v544 = vpop.f32.mrb[0].mxu0
    %v545 = vadd.f32 0.0, %v544
    %v546 = vpop.f32.mrb[0].mxu0
    %v547 = vpop.f32.mrb[0].mxu0
    %v548 = vpop.f32.mrb[0].mxu0
    %549 = vdwg.mxu0
    %v550 = vmul.f32 %v398, 0.25
    %v551 = vmul.f32 %v447, 0.25
    %v552 = vmul.f32 %v496, 0.25
    %v553 = vmul.f32 %v545, 0.25
    %v558 = vlaneseq
    %v559 = vshrl.u32 %v558, 7
    %v560 = vsub.s32 0, %v559
    %v561 = vrot.slane %v40, %v560
    %v562 = vlaneseq
    %v563 = vshrl.u32 %v562, 7
    %v564 = vsub.s32 0, %v563
    %v565 = vrot.slane %v41, %v564
    %v566 = vlaneseq
    %v567 = vshrl.u32 %v566, 7
    %v568 = vsub.s32 0, %v567
    %v569 = vrot.slane %v42, %v568
    %v570 = vlaneseq
    %v571 = vshrl.u32 %v570, 7
    %v572 = vsub.s32 0, %v571
    %v573 = vrot.slane %v43, %v572
    %v578 = vadd.f32 %v550, %v561
    %v579 = vadd.f32 %v551, %v565
    %v580 = vadd.f32 %v552, %v569
    %v581 = vadd.f32 %v553, %v573
    %vm582 = vcmask 64512
    %v583 = vsel %vm582, %v578, -inf
    %584 = vmax.xlane.f32.xlu0 %v583
    %v585 = vpop.xlane.xlu0 %584
    %v586 = vsel %vm582, %v579, -inf
    %587 = vmax.xlane.f32.xlu0 %v586
    %v588 = vpop.xlane.xlu0 %587
    %v589 = vsel %vm582, %v580, -inf
    %590 = vmax.xlane.f32.xlu0 %v589
    %v591 = vpop.xlane.xlu0 %590
    %v592 = vsel %vm582, %v581, -inf
    %593 = vmax.xlane.f32.xlu0 %v592
    %v594 = vpop.xlane.xlu0 %593
    %v595 = vsub.f32 %v578, %v585
    %v596 = vsub.f32 %v579, %v588
    %v597 = vsub.f32 %v580, %v591
    %v598 = vsub.f32 %v581, %v594
    %v599 = vmul.f32 %v595, 1.442695
    %v600 = vpow.pop %v599
    %v601 = vmul.f32 %v596, 1.442695
    %v602 = vpow.pop %v601
    %v603 = vmul.f32 %v597, 1.442695
    %v604 = vpow.pop %v603
    %v605 = vmul.f32 %v598, 1.442695
    %v606 = vpow.pop %v605
    %v607 = vsel %vm582, %v600, 0.0
    %608 = vadd.xlane.f32.xlu0 %v607
    %v609 = vpop.xlane.xlu0 %608
    %v610 = vsel %vm582, %v602, 0.0
    %611 = vadd.xlane.f32.xlu0 %v610
    %v612 = vpop.xlane.xlu0 %611
    %v613 = vsel %vm582, %v604, 0.0
    %614 = vadd.xlane.f32.xlu0 %v613
    %v615 = vpop.xlane.xlu0 %614
    %v616 = vsel %vm582, %v606, 0.0
    %617 = vadd.xlane.f32.xlu0 %v616
    %v618 = vpop.xlane.xlu0 %617
    %v619 = vrcp.pop %v609
    %v620 = vrcp.pop %v612
    %v621 = vrcp.pop %v615
    %v622 = vrcp.pop %v618
    %v623 = vmul.f32 %v600, %v619
    %v624 = vmul.f32 %v602, %v620
    %v625 = vmul.f32 %v604, %v621
    %v626 = vmul.f32 %v606, %v622
    %v627 = vpack.c.bf16 %v623, %v623
    %v628 = vpack.c.bf16 %v624, %v624
    %v629 = vpack.c.bf16 %v625, %v625
    %v630 = vpack.c.bf16 %v626, %v626
    %631 = vrot.lane.b32.xlu0 %v349, 96
    %v632 = vpop.permute.xlu0 %631
    %v634 = vsel %vm582, %v627, 0
    %vm636 = vcmask 1043456
    %v638 = vsel %vm636, %v632, 0
    %640 = vmatprep.subr.bf16.mxu0 0
    %641 = vmatpush1.bf16.msra.mxu0 %v638
    %642 = vmatprep.subr.bf16.mxu0 0
    %643 = vmatpush1.bf16.msra.mxu0 0
    %644 = vmatprep.subr.bf16.mxu0 0
    %645 = vmatpush1.bf16.msra.mxu0 0
    %646 = vmatprep.subr.bf16.mxu0 0
    %647 = vmatpush1.bf16.msra.mxu0 0
    %648 = vmatprep.subr.bf16.mxu0 0
    %649 = vmatpush1.bf16.msra.mxu0 0
    %650 = vmatprep.subr.bf16.mxu0 0
    %651 = vmatpush1.bf16.msra.mxu0 0
    %652 = vmatprep.subr.bf16.mxu0 0
    %653 = vmatpush1.bf16.msra.mxu0 0
    %654 = vmatprep.subr.bf16.mxu0 0
    %655 = vmatpush1.bf16.msra.mxu0 0
    %656 = vmatprep.subr.bf16.mxu0 0
    %657 = vmatpush1.bf16.msra.mxu0 0
    %658 = vmatprep.subr.bf16.mxu0 0
    %659 = vmatpush1.bf16.msra.mxu0 0
    %660 = vmatprep.subr.bf16.mxu0 0
    %661 = vmatpush1.bf16.msra.mxu0 0
    %662 = vmatprep.subr.bf16.mxu0 0
    %663 = vmatpush1.bf16.msra.mxu0 0
    %664 = vmatprep.subr.bf16.mxu0 0
    %665 = vmatpush1.bf16.msra.mxu0 0
    %666 = vmatprep.subr.bf16.mxu0 0
    %667 = vmatpush1.bf16.msra.mxu0 0
    %668 = vmatprep.subr.bf16.mxu0 0
    %669 = vmatpush1.bf16.msra.mxu0 0
    %670 = vmatprep.subr.bf16.mxu0 0
    %671 = vmatpush1.bf16.msra.mxu0 0
    %672 = vmatprep.mubr.bf16.mxu0 0
    %673 = vmatmul.mubr.bf16.gmra.mrb[0].mxu0 %v634
    %v674 = vpop.f32.mrb[0].mxu0
    %v675 = vadd.f32 0.0, %v674
    %v676 = vpop.f32.mrb[0].mxu0
    %v677 = vpop.f32.mrb[0].mxu0
    %v678 = vpop.f32.mrb[0].mxu0
    %679 = vdwg.mxu0
    %680 = vrot.lane.b32.xlu0 %v350, 96
    %v681 = vpop.permute.xlu0 %680
    %v683 = vsel %vm582, %v628, 0
    %v686 = vsel %vm636, %v681, 0
    %688 = vmatprep.subr.bf16.mxu0 0
    %689 = vmatpush1.bf16.msra.mxu0 %v686
    %690 = vmatprep.subr.bf16.mxu0 0
    %691 = vmatpush1.bf16.msra.mxu0 0
    %692 = vmatprep.subr.bf16.mxu0 0
    %693 = vmatpush1.bf16.msra.mxu0 0
    %694 = vmatprep.subr.bf16.mxu0 0
    %695 = vmatpush1.bf16.msra.mxu0 0
    %696 = vmatprep.subr.bf16.mxu0 0
    %697 = vmatpush1.bf16.msra.mxu0 0
    %698 = vmatprep.subr.bf16.mxu0 0
    %699 = vmatpush1.bf16.msra.mxu0 0
    %700 = vmatprep.subr.bf16.mxu0 0
    %701 = vmatpush1.bf16.msra.mxu0 0
    %702 = vmatprep.subr.bf16.mxu0 0
    %703 = vmatpush1.bf16.msra.mxu0 0
    %704 = vmatprep.subr.bf16.mxu0 0
    %705 = vmatpush1.bf16.msra.mxu0 0
    %706 = vmatprep.subr.bf16.mxu0 0
    %707 = vmatpush1.bf16.msra.mxu0 0
    %708 = vmatprep.subr.bf16.mxu0 0
    %709 = vmatpush1.bf16.msra.mxu0 0
    %710 = vmatprep.subr.bf16.mxu0 0
    %711 = vmatpush1.bf16.msra.mxu0 0
    %712 = vmatprep.subr.bf16.mxu0 0
    %713 = vmatpush1.bf16.msra.mxu0 0
    %714 = vmatprep.subr.bf16.mxu0 0
    %715 = vmatpush1.bf16.msra.mxu0 0
    %716 = vmatprep.subr.bf16.mxu0 0
    %717 = vmatpush1.bf16.msra.mxu0 0
    %718 = vmatprep.subr.bf16.mxu0 0
    %719 = vmatpush1.bf16.msra.mxu0 0
    %720 = vmatprep.mubr.bf16.mxu0 0
    %721 = vmatmul.mubr.bf16.gmra.mrb[0].mxu0 %v683
    %v722 = vpop.f32.mrb[0].mxu0
    %v723 = vadd.f32 0.0, %v722
    %v724 = vpop.f32.mrb[0].mxu0
    %v725 = vpop.f32.mrb[0].mxu0
    %v726 = vpop.f32.mrb[0].mxu0
    %727 = vdwg.mxu0
    %728 = vrot.lane.b32.xlu0 %v351, 96
    %v729 = vpop.permute.xlu0 %728
    %v731 = vsel %vm582, %v629, 0
    %v734 = vsel %vm636, %v729, 0
    %736 = vmatprep.subr.bf16.mxu0 0
    %737 = vmatpush1.bf16.msra.mxu0 %v734
    %738 = vmatprep.subr.bf16.mxu0 0
    %739 = vmatpush1.bf16.msra.mxu0 0
    %740 = vmatprep.subr.bf16.mxu0 0
    %741 = vmatpush1.bf16.msra.mxu0 0
    %742 = vmatprep.subr.bf16.mxu0 0
    %743 = vmatpush1.bf16.msra.mxu0 0
    %744 = vmatprep.subr.bf16.mxu0 0
    %745 = vmatpush1.bf16.msra.mxu0 0
    %746 = vmatprep.subr.bf16.mxu0 0
    %747 = vmatpush1.bf16.msra.mxu0 0
    %748 = vmatprep.subr.bf16.mxu0 0
    %749 = vmatpush1.bf16.msra.mxu0 0
    %750 = vmatprep.subr.bf16.mxu0 0
    %751 = vmatpush1.bf16.msra.mxu0 0
    %752 = vmatprep.subr.bf16.mxu0 0
    %753 = vmatpush1.bf16.msra.mxu0 0
    %754 = vmatprep.subr.bf16.mxu0 0
    %755 = vmatpush1.bf16.msra.mxu0 0
    %756 = vmatprep.subr.bf16.mxu0 0
    %757 = vmatpush1.bf16.msra.mxu0 0
    %758 = vmatprep.subr.bf16.mxu0 0
    %759 = vmatpush1.bf16.msra.mxu0 0
    %760 = vmatprep.subr.bf16.mxu0 0
    %761 = vmatpush1.bf16.msra.mxu0 0
    %762 = vmatprep.subr.bf16.mxu0 0
    %763 = vmatpush1.bf16.msra.mxu0 0
    %764 = vmatprep.subr.bf16.mxu0 0
    %765 = vmatpush1.bf16.msra.mxu0 0
    %766 = vmatprep.subr.bf16.mxu0 0
    %767 = vmatpush1.bf16.msra.mxu0 0
    %768 = vmatprep.mubr.bf16.mxu0 0
    %769 = vmatmul.mubr.bf16.gmra.mrb[0].mxu0 %v731
    %v770 = vpop.f32.mrb[0].mxu0
    %v771 = vadd.f32 0.0, %v770
    %v772 = vpop.f32.mrb[0].mxu0
    %v773 = vpop.f32.mrb[0].mxu0
    %v774 = vpop.f32.mrb[0].mxu0
    %775 = vdwg.mxu0
    %776 = vrot.lane.b32.xlu0 %v352, 96
    %v777 = vpop.permute.xlu0 %776
    %v779 = vsel %vm582, %v630, 0
    %v782 = vsel %vm636, %v777, 0
    %784 = vmatprep.subr.bf16.mxu0 0
    %785 = vmatpush1.bf16.msra.mxu0 %v782
    %786 = vmatprep.subr.bf16.mxu0 0
    %787 = vmatpush1.bf16.msra.mxu0 0
    %788 = vmatprep.subr.bf16.mxu0 0
    %789 = vmatpush1.bf16.msra.mxu0 0
    %790 = vmatprep.subr.bf16.mxu0 0
    %791 = vmatpush1.bf16.msra.mxu0 0
    %792 = vmatprep.subr.bf16.mxu0 0
    %793 = vmatpush1.bf16.msra.mxu0 0
    %794 = vmatprep.subr.bf16.mxu0 0
    %795 = vmatpush1.bf16.msra.mxu0 0
    %796 = vmatprep.subr.bf16.mxu0 0
    %797 = vmatpush1.bf16.msra.mxu0 0
    %798 = vmatprep.subr.bf16.mxu0 0
    %799 = vmatpush1.bf16.msra.mxu0 0
    %800 = vmatprep.subr.bf16.mxu0 0
    %801 = vmatpush1.bf16.msra.mxu0 0
    %802 = vmatprep.subr.bf16.mxu0 0
    %803 = vmatpush1.bf16.msra.mxu0 0
    %804 = vmatprep.subr.bf16.mxu0 0
    %805 = vmatpush1.bf16.msra.mxu0 0
    %806 = vmatprep.subr.bf16.mxu0 0
    %807 = vmatpush1.bf16.msra.mxu0 0
    %808 = vmatprep.subr.bf16.mxu0 0
    %809 = vmatpush1.bf16.msra.mxu0 0
    %810 = vmatprep.subr.bf16.mxu0 0
    %811 = vmatpush1.bf16.msra.mxu0 0
    %812 = vmatprep.subr.bf16.mxu0 0
    %813 = vmatpush1.bf16.msra.mxu0 0
    %814 = vmatprep.subr.bf16.mxu0 0
    %815 = vmatpush1.bf16.msra.mxu0 0
    %816 = vmatprep.mubr.bf16.mxu0 0
    %817 = vmatmul.mubr.bf16.gmra.mrb[0].mxu0 %v779
    %v818 = vpop.f32.mrb[0].mxu0
    %v819 = vadd.f32 0.0, %v818
    %v820 = vpop.f32.mrb[0].mxu0
    %v821 = vpop.f32.mrb[0].mxu0
    %v822 = vpop.f32.mrb[0].mxu0
    %823 = vdwg.mxu0
    %v824 = vpack.c.bf16 %v675, %v675
    %v825 = vpack.c.bf16 %v723, %v723
    %v826 = vpack.c.bf16 %v771, %v771
    %v827 = vpack.c.bf16 %v819, %v819
    %v828 = vld [vmem:[%s6] sm:$0xf]
    %v829 = vld [vmem:[%s6 + $0x4] sm:$0xf]
    %v830 = vld [vmem:[%s6 + $0x8] sm:$0xf]
    %v831 = vld [vmem:[%s6 + $0xc] sm:$0xf]
    %v832 = vld [vmem:[%s6 + $0x10] sm:$0xf]
    %v833 = vld [vmem:[%s6 + $0x14] sm:$0xf]
    %v834 = vld [vmem:[%s6 + $0x18] sm:$0xf]
    %v835 = vld [vmem:[%s6 + $0x1c] sm:$0xf]
    %v838 = vunpack.c.l.b16 %v828
    %v839 = vunpack.c.l.b16 %v829
    %v840 = vpack.c.b16 %v839, %v838
    %v843 = vsel %vm356, %v824, 0
    %845 = vmatprep.subr.bf16.mxu0 0
    %846 = vmatpush1.bf16.msra.mxu0 %v840
    %847 = vmatprep.subr.bf16.mxu0 0
    %848 = vmatpush1.bf16.msra.mxu0 0
    %849 = vmatprep.subr.bf16.mxu0 0
    %850 = vmatpush1.bf16.msra.mxu0 0
    %851 = vmatprep.subr.bf16.mxu0 0
    %852 = vmatpush1.bf16.msra.mxu0 0
    %853 = vmatprep.subr.bf16.mxu0 0
    %854 = vmatpush1.bf16.msra.mxu0 0
    %855 = vmatprep.subr.bf16.mxu0 0
    %856 = vmatpush1.bf16.msra.mxu0 0
    %857 = vmatprep.subr.bf16.mxu0 0
    %858 = vmatpush1.bf16.msra.mxu0 0
    %859 = vmatprep.subr.bf16.mxu0 0
    %860 = vmatpush1.bf16.msra.mxu0 0
    %861 = vmatprep.subr.bf16.mxu0 0
    %862 = vmatpush1.bf16.msra.mxu0 0
    %863 = vmatprep.subr.bf16.mxu0 0
    %864 = vmatpush1.bf16.msra.mxu0 0
    %865 = vmatprep.subr.bf16.mxu0 0
    %866 = vmatpush1.bf16.msra.mxu0 0
    %867 = vmatprep.subr.bf16.mxu0 0
    %868 = vmatpush1.bf16.msra.mxu0 0
    %869 = vmatprep.subr.bf16.mxu0 0
    %870 = vmatpush1.bf16.msra.mxu0 0
    %871 = vmatprep.subr.bf16.mxu0 0
    %872 = vmatpush1.bf16.msra.mxu0 0
    %873 = vmatprep.subr.bf16.mxu0 0
    %874 = vmatpush1.bf16.msra.mxu0 0
    %875 = vmatprep.subr.bf16.mxu0 0
    %876 = vmatpush1.bf16.msra.mxu0 0
    %877 = vmatprep.mubr.bf16.mxu0 0
    %878 = vmatmul.mubr.bf16.gmra.mrb[0].mxu0 %v843
    %v879 = vpop.f32.mrb[0].mxu0
    %v880 = vadd.f32 0.0, %v879
    %v881 = vpop.f32.mrb[0].mxu0
    %v882 = vpop.f32.mrb[0].mxu0
    %v883 = vpop.f32.mrb[0].mxu0
    %884 = vdwg.mxu0
    %v887 = vunpack.c.l.b16 %v830
    %v888 = vunpack.c.l.b16 %v831
    %v889 = vpack.c.b16 %v888, %v887
    %v892 = vsel %vm356, %v825, 0
    %894 = vmatprep.subr.bf16.mxu0 0
    %895 = vmatpush1.bf16.msra.mxu0 %v889
    %896 = vmatprep.subr.bf16.mxu0 0
    %897 = vmatpush1.bf16.msra.mxu0 0
    %898 = vmatprep.subr.bf16.mxu0 0
    %899 = vmatpush1.bf16.msra.mxu0 0
    %900 = vmatprep.subr.bf16.mxu0 0
    %901 = vmatpush1.bf16.msra.mxu0 0
    %902 = vmatprep.subr.bf16.mxu0 0
    %903 = vmatpush1.bf16.msra.mxu0 0
    %904 = vmatprep.subr.bf16.mxu0 0
    %905 = vmatpush1.bf16.msra.mxu0 0
    %906 = vmatprep.subr.bf16.mxu0 0
    %907 = vmatpush1.bf16.msra.mxu0 0
    %908 = vmatprep.subr.bf16.mxu0 0
    %909 = vmatpush1.bf16.msra.mxu0 0
    %910 = vmatprep.subr.bf16.mxu0 0
    %911 = vmatpush1.bf16.msra.mxu0 0
    %912 = vmatprep.subr.bf16.mxu0 0
    %913 = vmatpush1.bf16.msra.mxu0 0
    %914 = vmatprep.subr.bf16.mxu0 0
    %915 = vmatpush1.bf16.msra.mxu0 0
    %916 = vmatprep.subr.bf16.mxu0 0
    %917 = vmatpush1.bf16.msra.mxu0 0
    %918 = vmatprep.subr.bf16.mxu0 0
    %919 = vmatpush1.bf16.msra.mxu0 0
    %920 = vmatprep.subr.bf16.mxu0 0
    %921 = vmatpush1.bf16.msra.mxu0 0
    %922 = vmatprep.subr.bf16.mxu0 0
    %923 = vmatpush1.bf16.msra.mxu0 0
    %924 = vmatprep.subr.bf16.mxu0 0
    %925 = vmatpush1.bf16.msra.mxu0 0
    %926 = vmatprep.mubr.bf16.mxu0 0
    %927 = vmatmul.mubr.bf16.gmra.mrb[0].mxu0 %v892
    %v928 = vpop.f32.mrb[0].mxu0
    %v929 = vadd.f32 0.0, %v928
    %v930 = vpop.f32.mrb[0].mxu0
    %v931 = vpop.f32.mrb[0].mxu0
    %v932 = vpop.f32.mrb[0].mxu0
    %933 = vdwg.mxu0
    %v936 = vunpack.c.l.b16 %v832
    %v937 = vunpack.c.l.b16 %v833
    %v938 = vpack.c.b16 %v937, %v936
    %v941 = vsel %vm356, %v826, 0
    %943 = vmatprep.subr.bf16.mxu0 0
    %944 = vmatpush1.bf16.msra.mxu0 %v938
    %945 = vmatprep.subr.bf16.mxu0 0
    %946 = vmatpush1.bf16.msra.mxu0 0
    %947 = vmatprep.subr.bf16.mxu0 0
    %948 = vmatpush1.bf16.msra.mxu0 0
    %949 = vmatprep.subr.bf16.mxu0 0
    %950 = vmatpush1.bf16.msra.mxu0 0
    %951 = vmatprep.subr.bf16.mxu0 0
    %952 = vmatpush1.bf16.msra.mxu0 0
    %953 = vmatprep.subr.bf16.mxu0 0
    %954 = vmatpush1.bf16.msra.mxu0 0
    %955 = vmatprep.subr.bf16.mxu0 0
    %956 = vmatpush1.bf16.msra.mxu0 0
    %957 = vmatprep.subr.bf16.mxu0 0
    %958 = vmatpush1.bf16.msra.mxu0 0
    %959 = vmatprep.subr.bf16.mxu0 0
    %960 = vmatpush1.bf16.msra.mxu0 0
    %961 = vmatprep.subr.bf16.mxu0 0
    %962 = vmatpush1.bf16.msra.mxu0 0
    %963 = vmatprep.subr.bf16.mxu0 0
    %964 = vmatpush1.bf16.msra.mxu0 0
    %965 = vmatprep.subr.bf16.mxu0 0
    %966 = vmatpush1.bf16.msra.mxu0 0
    %967 = vmatprep.subr.bf16.mxu0 0
    %968 = vmatpush1.bf16.msra.mxu0 0
    %969 = vmatprep.subr.bf16.mxu0 0
    %970 = vmatpush1.bf16.msra.mxu0 0
    %971 = vmatprep.subr.bf16.mxu0 0
    %972 = vmatpush1.bf16.msra.mxu0 0
    %973 = vmatprep.subr.bf16.mxu0 0
    %974 = vmatpush1.bf16.msra.mxu0 0
    %975 = vmatprep.mubr.bf16.mxu0 0
    %976 = vmatmul.mubr.bf16.gmra.mrb[0].mxu0 %v941
    %v977 = vpop.f32.mrb[0].mxu0
    %v978 = vadd.f32 0.0, %v977
    %v979 = vpop.f32.mrb[0].mxu0
    %v980 = vpop.f32.mrb[0].mxu0
    %v981 = vpop.f32.mrb[0].mxu0
    %982 = vdwg.mxu0
    %v985 = vunpack.c.l.b16 %v834
    %v986 = vunpack.c.l.b16 %v835
    %v987 = vpack.c.b16 %v986, %v985
    %v990 = vsel %vm356, %v827, 0
    %992 = vmatprep.subr.bf16.mxu0 0
    %993 = vmatpush1.bf16.msra.mxu0 %v987
    %994 = vmatprep.subr.bf16.mxu0 0
    %995 = vmatpush1.bf16.msra.mxu0 0
    %996 = vmatprep.subr.bf16.mxu0 0
    %997 = vmatpush1.bf16.msra.mxu0 0
    %998 = vmatprep.subr.bf16.mxu0 0
    %999 = vmatpush1.bf16.msra.mxu0 0
    %1000 = vmatprep.subr.bf16.mxu0 0
    %1001 = vmatpush1.bf16.msra.mxu0 0
    %1002 = vmatprep.subr.bf16.mxu0 0
    %1003 = vmatpush1.bf16.msra.mxu0 0
    %1004 = vmatprep.subr.bf16.mxu0 0
    %1005 = vmatpush1.bf16.msra.mxu0 0
    %1006 = vmatprep.subr.bf16.mxu0 0
    %1007 = vmatpush1.bf16.msra.mxu0 0
    %1008 = vmatprep.subr.bf16.mxu0 0
    %1009 = vmatpush1.bf16.msra.mxu0 0
    %1010 = vmatprep.subr.bf16.mxu0 0
    %1011 = vmatpush1.bf16.msra.mxu0 0
    %1012 = vmatprep.subr.bf16.mxu0 0
    %1013 = vmatpush1.bf16.msra.mxu0 0
    %1014 = vmatprep.subr.bf16.mxu0 0
    %1015 = vmatpush1.bf16.msra.mxu0 0
    %1016 = vmatprep.subr.bf16.mxu0 0
    %1017 = vmatpush1.bf16.msra.mxu0 0
    %1018 = vmatprep.subr.bf16.mxu0 0
    %1019 = vmatpush1.bf16.msra.mxu0 0
    %1020 = vmatprep.subr.bf16.mxu0 0
    %1021 = vmatpush1.bf16.msra.mxu0 0
    %1022 = vmatprep.subr.bf16.mxu0 0
    %1023 = vmatpush1.bf16.msra.mxu0 0
    %1024 = vmatprep.mubr.bf16.mxu0 0
    %1025 = vmatmul.mubr.bf16.gmra.mrb[0].mxu0 %v990
    %v1026 = vpop.f32.mrb[0].mxu0
    %v1027 = vadd.f32 0.0, %v1026
    %v1028 = vpop.f32.mrb[0].mxu0
    %v1029 = vpop.f32.mrb[0].mxu0
    %v1030 = vpop.f32.mrb[0].mxu0
    %1031 = vdwg.mxu0
    %v1032 = vadd.f32 %v880, %v929
    %v1033 = vadd.f32 %v978, %v1027
    %v1034 = vlaneseq
    %v1035 = vshrl.u32 %v1034, 7
    %v1036 = vsub.s32 0, %v1035
    %v1037 = vrot.slane %v88, %v1036
    %v1038 = vadd.f32 %v1032, %v1037
    %v1039 = vadd.f32 %v1033, %v1037
    %v1040 = vadd.f32 %v1038, %v86
    %v1041 = vadd.f32 %v1039, %v87
    %v1042 = vsel %vm48, %v1040, 0.0
    %1043 = vadd.xlane.f32.xlu0 %v1042
    %v1044 = vpop.xlane.xlu0 %1043
    %v1045 = vsel %vm48, %v1041, 0.0
    %1046 = vadd.xlane.f32.xlu0 %v1045
    %v1047 = vpop.xlane.xlu0 %1046
    %v1048 = vmul.f32 %v1044, %v55
    %v1049 = vmul.f32 %v1047, %v55
    %v1050 = vsub.f32 %v1040, %v1048
    %v1051 = vsub.f32 %v1041, %v1049
    %v1052 = vmul.f32 %v1050, %v1050
    %v1053 = vmul.f32 %v1051, %v1051
    %v1054 = vsel %vm48, %v1052, 0.0
    %1055 = vadd.xlane.f32.xlu0 %v1054
    %v1056 = vpop.xlane.xlu0 %1055
    %v1057 = vsel %vm48, %v1053, 0.0
    %1058 = vadd.xlane.f32.xlu0 %v1057
    %v1059 = vpop.xlane.xlu0 %1058
    %v1060 = vmul.f32 %v1056, %v55
    %v1061 = vmul.f32 %v1059, %v55
    %v1062 = vadd.f32 %v1060, 1e-12
    %v1063 = vadd.f32 %v1061, 1e-12
    %v1064 = vrsqrt.pop %v1062
    %v1065 = vrsqrt.pop %v1063
    %v1066 = vmul.f32 %v1050, %v1064
    %v1067 = vmul.f32 %v1051, %v1065
    %v1068 = vlaneseq
    %v1069 = vshrl.u32 %v1068, 7
    %v1070 = vsub.s32 1, %v1069
    %v1071 = vrot.slane %v88, %v1070
    %v1072 = vmul.f32 %v1066, %v1071
    %v1073 = vmul.f32 %v1067, %v1071
    %v1074 = vlaneseq
    %v1075 = vshrl.u32 %v1074, 7
    %v1076 = vsub.s32 2, %v1075
    %v1077 = vrot.slane %v88, %v1076
    %v1078 = vadd.f32 %v1072, %v1077
    %v1079 = vadd.f32 %v1073, %v1077
    %v1080 = vpack.c.bf16 %v1079, %v1078
    %v1081 = vld [vmem:[%s7] sm:$0xf]
    %v1082 = vld [vmem:[%s7 + $0x4] sm:$0xf]
    %v1083 = vld [vmem:[%s7 + $0x8] sm:$0xf]
    %v1084 = vld [vmem:[%s7 + $0xc] sm:$0xf]
    %v1085 = vlaneseq
    %v1086 = vshrl.u32 %v1085, 7
    %v1087 = vsub.s32 6, %v1086
    %v1088 = vrot.slane %v88, %v1087
    %v1093 = vunpack.c.l.b16 %v1081
    %v1094 = vunpack.c.l.b16 %v1082
    %v1095 = vunpack.c.l.b16 %v1083
    %v1096 = vunpack.c.l.b16 %v1084
    %v1097 = vpack.c.b16 %v1094, %v1093
    %v1098 = vpack.c.b16 %v1096, %v1095
    %v1102 = vsel %vm48, %v1080, 0
    %1104 = vmatprep.subr.bf16.mxu0 0
    %1105 = vmatpush1.bf16.msra.mxu0 %v1097
    %1106 = vmatprep.subr.bf16.mxu0 0
    %1107 = vmatpush1.bf16.msra.mxu0 %v1098
    %1108 = vmatprep.subr.bf16.mxu0 0
    %1109 = vmatpush1.bf16.msra.mxu0 0
    %1110 = vmatprep.subr.bf16.mxu0 0
    %1111 = vmatpush1.bf16.msra.mxu0 0
    %1112 = vmatprep.subr.bf16.mxu0 0
    %1113 = vmatpush1.bf16.msra.mxu0 0
    %1114 = vmatprep.subr.bf16.mxu0 0
    %1115 = vmatpush1.bf16.msra.mxu0 0
    %1116 = vmatprep.subr.bf16.mxu0 0
    %1117 = vmatpush1.bf16.msra.mxu0 0
    %1118 = vmatprep.subr.bf16.mxu0 0
    %1119 = vmatpush1.bf16.msra.mxu0 0
    %1120 = vmatprep.subr.bf16.mxu0 0
    %1121 = vmatpush1.bf16.msra.mxu0 0
    %1122 = vmatprep.subr.bf16.mxu0 0
    %1123 = vmatpush1.bf16.msra.mxu0 0
    %1124 = vmatprep.subr.bf16.mxu0 0
    %1125 = vmatpush1.bf16.msra.mxu0 0
    %1126 = vmatprep.subr.bf16.mxu0 0
    %1127 = vmatpush1.bf16.msra.mxu0 0
    %1128 = vmatprep.subr.bf16.mxu0 0
    %1129 = vmatpush1.bf16.msra.mxu0 0
    %1130 = vmatprep.subr.bf16.mxu0 0
    %1131 = vmatpush1.bf16.msra.mxu0 0
    %1132 = vmatprep.subr.bf16.mxu0 0
    %1133 = vmatpush1.bf16.msra.mxu0 0
    %1134 = vmatprep.subr.bf16.mxu0 0
    %1135 = vmatpush1.bf16.msra.mxu0 0
    %1136 = vmatprep.mubr.bf16.mxu0 0
    %1137 = vmatmul.mubr.bf16.gmra.mrb[0].mxu0 %v1102
    %v1138 = vpop.f32.mrb[0].mxu0
    %v1139 = vadd.f32 %v1088, %v1138
    %v1140 = vpop.f32.mrb[0].mxu0
    %v1141 = vpop.f32.mrb[0].mxu0
    %v1142 = vadd.f32 %v1088, %v1141
    %v1143 = vpop.f32.mrb[0].mxu0
    %1144 = vdwg.mxu0
    %v1145 = vmul.f32 %v1139, 0.5
    %v1146 = vmul.f32 %v1142, 0.5
    %v1147 = vmul.f32 %v1139, 0.044715
    %v1148 = vmul.f32 %v1142, 0.044715
    %v1149 = vmul.f32 %v1147, %v1139
    %v1150 = vmul.f32 %v1148, %v1142
    %v1151 = vmul.f32 %v1149, %v1139
    %v1152 = vmul.f32 %v1150, %v1142
    %v1153 = vadd.f32 %v1139, %v1151
    %v1154 = vadd.f32 %v1142, %v1152
    %v1155 = vmul.f32 %v1153, 0.7978846
    %v1156 = vmul.f32 %v1154, 0.7978846
    %v1157 = vtanh.pop %v1155
    %v1158 = vtanh.pop %v1156
    %v1159 = vadd.f32 %v1157, 1.0
    %v1160 = vadd.f32 %v1158, 1.0
    %v1161 = vmul.f32 %v1145, %v1159
    %v1162 = vmul.f32 %v1146, %v1160
    %v1163 = vpack.c.bf16 %v1162, %v1161
    %v1164 = vld [vmem:[%s8] sm:$0xf]
    %v1165 = vld [vmem:[%s8 + $0x4] sm:$0xf]
    %v1166 = vld [vmem:[%s8 + $0x8] sm:$0xf]
    %v1167 = vld [vmem:[%s8 + $0xc] sm:$0xf]
    %v1168 = vld [vmem:[%s8 + $0x10] sm:$0xf]
    %v1169 = vld [vmem:[%s8 + $0x14] sm:$0xf]
    %v1170 = vld [vmem:[%s8 + $0x18] sm:$0xf]
    %v1171 = vld [vmem:[%s8 + $0x1c] sm:$0xf]
    %v1172 = vlaneseq
    %v1173 = vshrl.u32 %v1172, 7
    %v1174 = vsub.s32 3, %v1173
    %v1175 = vrot.slane %v88, %v1174
    %v1184 = vunpack.c.l.b16 %v1164
    %v1185 = vunpack.c.l.b16 %v1165
    %v1186 = vunpack.c.l.b16 %v1166
    %v1187 = vunpack.c.l.b16 %v1167
    %v1188 = vunpack.c.l.b16 %v1168
    %v1189 = vunpack.c.l.b16 %v1169
    %v1190 = vunpack.c.l.b16 %v1170
    %v1191 = vunpack.c.l.b16 %v1171
    %v1192 = vpack.c.b16 %v1185, %v1184
    %v1193 = vpack.c.b16 %v1187, %v1186
    %v1194 = vpack.c.b16 %v1189, %v1188
    %v1195 = vpack.c.b16 %v1191, %v1190
    %vm1200 = vcmask 523264
    %v1202 = vsel %vm1200, %v1163, 0
    %1204 = vmatprep.subr.bf16.mxu0 0
    %1205 = vmatpush1.bf16.msra.mxu0 %v1192
    %1206 = vmatprep.subr.bf16.mxu0 0
    %1207 = vmatpush1.bf16.msra.mxu0 %v1193
    %1208 = vmatprep.subr.bf16.mxu0 0
    %1209 = vmatpush1.bf16.msra.mxu0 %v1194
    %1210 = vmatprep.subr.bf16.mxu0 0
    %1211 = vmatpush1.bf16.msra.mxu0 %v1195
    %1212 = vmatprep.subr.bf16.mxu0 0
    %1213 = vmatpush1.bf16.msra.mxu0 0
    %1214 = vmatprep.subr.bf16.mxu0 0
    %1215 = vmatpush1.bf16.msra.mxu0 0
    %1216 = vmatprep.subr.bf16.mxu0 0
    %1217 = vmatpush1.bf16.msra.mxu0 0
    %1218 = vmatprep.subr.bf16.mxu0 0
    %1219 = vmatpush1.bf16.msra.mxu0 0
    %1220 = vmatprep.subr.bf16.mxu0 0
    %1221 = vmatpush1.bf16.msra.mxu0 0
    %1222 = vmatprep.subr.bf16.mxu0 0
    %1223 = vmatpush1.bf16.msra.mxu0 0
    %1224 = vmatprep.subr.bf16.mxu0 0
    %1225 = vmatpush1.bf16.msra.mxu0 0
    %1226 = vmatprep.subr.bf16.mxu0 0
    %1227 = vmatpush1.bf16.msra.mxu0 0
    %1228 = vmatprep.subr.bf16.mxu0 0
    %1229 = vmatpush1.bf16.msra.mxu0 0
    %1230 = vmatprep.subr.bf16.mxu0 0
    %1231 = vmatpush1.bf16.msra.mxu0 0
    %1232 = vmatprep.subr.bf16.mxu0 0
    %1233 = vmatpush1.bf16.msra.mxu0 0
    %1234 = vmatprep.subr.bf16.mxu0 0
    %1235 = vmatpush1.bf16.msra.mxu0 0
    %1236 = vmatprep.mubr.bf16.mxu0 0
    %1237 = vmatmul.mubr.bf16.gmra.mrb[0].mxu0 %v1202
    %v1238 = vpop.f32.mrb[0].mxu0
    %v1239 = vadd.f32 %v1175, %v1238
    %v1240 = vpop.f32.mrb[0].mxu0
    %v1241 = vpop.f32.mrb[0].mxu0
    %v1242 = vadd.f32 %v1175, %v1241
    %v1243 = vpop.f32.mrb[0].mxu0
    %1244 = vdwg.mxu0
    %v1245 = vadd.f32 %v1239, %v1078
    %v1246 = vadd.f32 %v1242, %v1079
    %v1247 = vsel %vm48, %v1245, 0.0
    %1248 = vadd.xlane.f32.xlu0 %v1247
    %v1249 = vpop.xlane.xlu0 %1248
    %v1250 = vsel %vm48, %v1246, 0.0
    %1251 = vadd.xlane.f32.xlu0 %v1250
    %v1252 = vpop.xlane.xlu0 %1251
    %v1253 = vmul.f32 %v1249, %v55
    %v1254 = vmul.f32 %v1252, %v55
    %v1255 = vsub.f32 %v1245, %v1253
    %v1256 = vsub.f32 %v1246, %v1254
    %v1257 = vmul.f32 %v1255, %v1255
    %v1258 = vmul.f32 %v1256, %v1256
    %v1259 = vsel %vm48, %v1257, 0.0
    %1260 = vadd.xlane.f32.xlu0 %v1259
    %v1261 = vpop.xlane.xlu0 %1260
    %v1262 = vsel %vm48, %v1258, 0.0
    %1263 = vadd.xlane.f32.xlu0 %v1262
    %v1264 = vpop.xlane.xlu0 %1263
    %v1265 = vmul.f32 %v1261, %v55
    %v1266 = vmul.f32 %v1264, %v55
    %v1267 = vadd.f32 %v1265, 1e-12
    %v1268 = vadd.f32 %v1266, 1e-12
    %v1269 = vrsqrt.pop %v1267
    %v1270 = vrsqrt.pop %v1268
    %v1271 = vmul.f32 %v1255, %v1269
    %v1272 = vmul.f32 %v1256, %v1270
    %v1273 = vlaneseq
    %v1274 = vshrl.u32 %v1273, 7
    %v1275 = vsub.s32 4, %v1274
    %v1276 = vrot.slane %v88, %v1275
    %v1277 = vmul.f32 %v1271, %v1276
    %v1278 = vmul.f32 %v1272, %v1276
    %v1279 = vlaneseq
    %v1280 = vshrl.u32 %v1279, 7
    %v1281 = vsub.s32 5, %v1280
    %v1282 = vrot.slane %v88, %v1281
    %v1283 = vadd.f32 %v1277, %v1282
    %v1284 = vadd.f32 %v1278, %v1282
    %s1285 = scalar_lea.vmem %s3, 8
    %v1286 = vld [vmem:[%s1285] sm:$0x7f]
    %v1287 = vpack.c.bf16 %v1283, %v1283
    %v1288 = vpack.c.bf16 %v1284, %v1284
    %s1289 = scalar_lea.vmem %s4, 64
    %v1290 = vld [vmem:[%s1289] sm:$0xf]
    %v1291 = vld [vmem:[%s1289 + $0x4] sm:$0xf]
    %v1292 = vld [vmem:[%s1289 + $0x8] sm:$0xf]
    %v1293 = vld [vmem:[%s1289 + $0xc] sm:$0xf]
    %v1294 = vld [vmem:[%s1289 + $0x10] sm:$0xf]
    %v1295 = vld [vmem:[%s1289 + $0x14] sm:$0xf]
    %v1296 = vld [vmem:[%s1289 + $0x18] sm:$0xf]
    %v1297 = vld [vmem:[%s1289 + $0x1c] sm:$0xf]
    %v1298 = vld [vmem:[%s1289 + $0x20] sm:$0xf]
    %v1299 = vld [vmem:[%s1289 + $0x24] sm:$0xf]
    %v1300 = vld [vmem:[%s1289 + $0x28] sm:$0xf]
    %v1301 = vld [vmem:[%s1289 + $0x2c] sm:$0xf]
    %v1302 = vld [vmem:[%s1289 + $0x30] sm:$0xf]
    %v1303 = vld [vmem:[%s1289 + $0x34] sm:$0xf]
    %v1304 = vld [vmem:[%s1289 + $0x38] sm:$0xf]
    %v1305 = vld [vmem:[%s1289 + $0x3c] sm:$0xf]
    %s1306 = scalar_lea.vmem %s5, 4
    %v1307 = vld [vmem:[%s1306] sm:$0x1]
    %v1308 = vld [vmem:[%s1306 + $0x1] sm:$0x1]
    %v1309 = vld [vmem:[%s1306 + $0x2] sm:$0x1]
    %v1310 = vld [vmem:[%s1306 + $0x3] sm:$0x1]
    %v1315 = vlaneseq
    %v1316 = vshrl.u32 %v1315, 7
    %v1317 = vsub.s32 0, %v1316
    %v1318 = vrot.slane %v1307, %v1317
    %v1319 = vlaneseq
    %v1320 = vshrl.u32 %v1319, 7
    %v1321 = vsub.s32 0, %v1320
    %v1322 = vrot.slane %v1308, %v1321
    %v1323 = vlaneseq
    %v1324 = vshrl.u32 %v1323, 7
    %v1325 = vsub.s32 0, %v1324
    %v1326 = vrot.slane %v1309, %v1325
    %v1327 = vlaneseq
    %v1328 = vshrl.u32 %v1327, 7
    %v1329 = vsub.s32 0, %v1328
    %v1330 = vrot.slane %v1310, %v1329
    %v1339 = vunpack.c.l.b16 %v1290
    %v1340 = vunpack.c.l.b16 %v1291
    %v1341 = vunpack.c.l.b16 %v1292
    %v1342 = vunpack.c.l.b16 %v1293
    %v1343 = vpack.c.b16 %v1340, %v1339
    %v1344 = vpack.c.b16 %v1342, %v1341
    %v1348 = vsel %vm48, %v1287, 0
    %1350 = vmatprep.subr.bf16.mxu0 0
    %1351 = vmatpush1.bf16.msra.mxu0 %v1343
    %1352 = vmatprep.subr.bf16.mxu0 0
    %1353 = vmatpush1.bf16.msra.mxu0 %v1344
    %1354 = vmatprep.subr.bf16.mxu0 0
    %1355 = vmatpush1.bf16.msra.mxu0 0
    %1356 = vmatprep.subr.bf16.mxu0 0
    %1357 = vmatpush1.bf16.msra.mxu0 0
    %1358 = vmatprep.subr.bf16.mxu0 0
    %1359 = vmatpush1.bf16.msra.mxu0 0
    %1360 = vmatprep.subr.bf16.mxu0 0
    %1361 = vmatpush1.bf16.msra.mxu0 0
    %1362 = vmatprep.subr.bf16.mxu0 0
    %1363 = vmatpush1.bf16.msra.mxu0 0
    %1364 = vmatprep.subr.bf16.mxu0 0
    %1365 = vmatpush1.bf16.msra.mxu0 0
    %1366 = vmatprep.subr.bf16.mxu0 0
    %1367 = vmatpush1.bf16.msra.mxu0 0
    %1368 = vmatprep.subr.bf16.mxu0 0
    %1369 = vmatpush1.bf16.msra.mxu0 0
    %1370 = vmatprep.subr.bf16.mxu0 0
    %1371 = vmatpush1.bf16.msra.mxu0 0
    %1372 = vmatprep.subr.bf16.mxu0 0
    %1373 = vmatpush1.bf16.msra.mxu0 0
    %1374 = vmatprep.subr.bf16.mxu0 0
    %1375 = vmatpush1.bf16.msra.mxu0 0
    %1376 = vmatprep.subr.bf16.mxu0 0
    %1377 = vmatpush1.bf16.msra.mxu0 0
    %1378 = vmatprep.subr.bf16.mxu0 0
    %1379 = vmatpush1.bf16.msra.mxu0 0
    %1380 = vmatprep.subr.bf16.mxu0 0
    %1381 = vmatpush1.bf16.msra.mxu0 0
    %1382 = vmatprep.mubr.bf16.mxu0 0
    %1383 = vmatmul.mubr.bf16.gmra.mrb[0].mxu0 %v1348
    %v1384 = vpop.f32.mrb[0].mxu0
    %v1385 = vadd.f32 %v1318, %v1384
    %v1386 = vpop.f32.mrb[0].mxu0
    %v1387 = vpop.f32.mrb[0].mxu0
    %v1388 = vpop.f32.mrb[0].mxu0
    %1389 = vdwg.mxu0
    %v1394 = vunpack.c.l.b16 %v1294
    %v1395 = vunpack.c.l.b16 %v1295
    %v1396 = vunpack.c.l.b16 %v1296
    %v1397 = vunpack.c.l.b16 %v1297
    %v1398 = vpack.c.b16 %v1395, %v1394
    %v1399 = vpack.c.b16 %v1397, %v1396
    %1402 = vmatprep.subr.bf16.mxu0 0
    %1403 = vmatpush1.bf16.msra.mxu0 %v1398
    %1404 = vmatprep.subr.bf16.mxu0 0
    %1405 = vmatpush1.bf16.msra.mxu0 %v1399
    %1406 = vmatprep.subr.bf16.mxu0 0
    %1407 = vmatpush1.bf16.msra.mxu0 0
    %1408 = vmatprep.subr.bf16.mxu0 0
    %1409 = vmatpush1.bf16.msra.mxu0 0
    %1410 = vmatprep.subr.bf16.mxu0 0
    %1411 = vmatpush1.bf16.msra.mxu0 0
    %1412 = vmatprep.subr.bf16.mxu0 0
    %1413 = vmatpush1.bf16.msra.mxu0 0
    %1414 = vmatprep.subr.bf16.mxu0 0
    %1415 = vmatpush1.bf16.msra.mxu0 0
    %1416 = vmatprep.subr.bf16.mxu0 0
    %1417 = vmatpush1.bf16.msra.mxu0 0
    %1418 = vmatprep.subr.bf16.mxu0 0
    %1419 = vmatpush1.bf16.msra.mxu0 0
    %1420 = vmatprep.subr.bf16.mxu0 0
    %1421 = vmatpush1.bf16.msra.mxu0 0
    %1422 = vmatprep.subr.bf16.mxu0 0
    %1423 = vmatpush1.bf16.msra.mxu0 0
    %1424 = vmatprep.subr.bf16.mxu0 0
    %1425 = vmatpush1.bf16.msra.mxu0 0
    %1426 = vmatprep.subr.bf16.mxu0 0
    %1427 = vmatpush1.bf16.msra.mxu0 0
    %1428 = vmatprep.subr.bf16.mxu0 0
    %1429 = vmatpush1.bf16.msra.mxu0 0
    %1430 = vmatprep.subr.bf16.mxu0 0
    %1431 = vmatpush1.bf16.msra.mxu0 0
    %1432 = vmatprep.subr.bf16.mxu0 0
    %1433 = vmatpush1.bf16.msra.mxu0 0
    %1434 = vmatprep.mubr.bf16.mxu0 0
    %1435 = vmatmul.mubr.bf16.gmra.mrb[0].mxu0 %v1348
    %v1436 = vpop.f32.mrb[0].mxu0
    %v1437 = vadd.f32 %v1322, %v1436
    %v1438 = vpop.f32.mrb[0].mxu0
    %v1439 = vpop.f32.mrb[0].mxu0
    %v1440 = vpop.f32.mrb[0].mxu0
    %1441 = vdwg.mxu0
    %v1446 = vunpack.c.l.b16 %v1298
    %v1447 = vunpack.c.l.b16 %v1299
    %v1448 = vunpack.c.l.b16 %v1300
    %v1449 = vunpack.c.l.b16 %v1301
    %v1450 = vpack.c.b16 %v1447, %v1446
    %v1451 = vpack.c.b16 %v1449, %v1448
    %v1455 = vsel %vm48, %v1288, 0
    %1457 = vmatprep.subr.bf16.mxu0 0
    %1458 = vmatpush1.bf16.msra.mxu0 %v1450
    %1459 = vmatprep.subr.bf16.mxu0 0
    %1460 = vmatpush1.bf16.msra.mxu0 %v1451
    %1461 = vmatprep.subr.bf16.mxu0 0
    %1462 = vmatpush1.bf16.msra.mxu0 0
    %1463 = vmatprep.subr.bf16.mxu0 0
    %1464 = vmatpush1.bf16.msra.mxu0 0
    %1465 = vmatprep.subr.bf16.mxu0 0
    %1466 = vmatpush1.bf16.msra.mxu0 0
    %1467 = vmatprep.subr.bf16.mxu0 0
    %1468 = vmatpush1.bf16.msra.mxu0 0
    %1469 = vmatprep.subr.bf16.mxu0 0
    %1470 = vmatpush1.bf16.msra.mxu0 0
    %1471 = vmatprep.subr.bf16.mxu0 0
    %1472 = vmatpush1.bf16.msra.mxu0 0
    %1473 = vmatprep.subr.bf16.mxu0 0
    %1474 = vmatpush1.bf16.msra.mxu0 0
    %1475 = vmatprep.subr.bf16.mxu0 0
    %1476 = vmatpush1.bf16.msra.mxu0 0
    %1477 = vmatprep.subr.bf16.mxu0 0
    %1478 = vmatpush1.bf16.msra.mxu0 0
    %1479 = vmatprep.subr.bf16.mxu0 0
    %1480 = vmatpush1.bf16.msra.mxu0 0
    %1481 = vmatprep.subr.bf16.mxu0 0
    %1482 = vmatpush1.bf16.msra.mxu0 0
    %1483 = vmatprep.subr.bf16.mxu0 0
    %1484 = vmatpush1.bf16.msra.mxu0 0
    %1485 = vmatprep.subr.bf16.mxu0 0
    %1486 = vmatpush1.bf16.msra.mxu0 0
    %1487 = vmatprep.subr.bf16.mxu0 0
    %1488 = vmatpush1.bf16.msra.mxu0 0
    %1489 = vmatprep.mubr.bf16.mxu0 0
    %1490 = vmatmul.mubr.bf16.gmra.mrb[0].mxu0 %v1455
    %v1491 = vpop.f32.mrb[0].mxu0
    %v1492 = vadd.f32 %v1326, %v1491
    %v1493 = vpop.f32.mrb[0].mxu0
    %v1494 = vpop.f32.mrb[0].mxu0
    %v1495 = vpop.f32.mrb[0].mxu0
    %1496 = vdwg.mxu0
    %v1501 = vunpack.c.l.b16 %v1302
    %v1502 = vunpack.c.l.b16 %v1303
    %v1503 = vunpack.c.l.b16 %v1304
    %v1504 = vunpack.c.l.b16 %v1305
    %v1505 = vpack.c.b16 %v1502, %v1501
    %v1506 = vpack.c.b16 %v1504, %v1503
    %1509 = vmatprep.subr.bf16.mxu0 0
    %1510 = vmatpush1.bf16.msra.mxu0 %v1505
    %1511 = vmatprep.subr.bf16.mxu0 0
    %1512 = vmatpush1.bf16.msra.mxu0 %v1506
    %1513 = vmatprep.subr.bf16.mxu0 0
    %1514 = vmatpush1.bf16.msra.mxu0 0
    %1515 = vmatprep.subr.bf16.mxu0 0
    %1516 = vmatpush1.bf16.msra.mxu0 0
    %1517 = vmatprep.subr.bf16.mxu0 0
    %1518 = vmatpush1.bf16.msra.mxu0 0
    %1519 = vmatprep.subr.bf16.mxu0 0
    %1520 = vmatpush1.bf16.msra.mxu0 0
    %1521 = vmatprep.subr.bf16.mxu0 0
    %1522 = vmatpush1.bf16.msra.mxu0 0
    %1523 = vmatprep.subr.bf16.mxu0 0
    %1524 = vmatpush1.bf16.msra.mxu0 0
    %1525 = vmatprep.subr.bf16.mxu0 0
    %1526 = vmatpush1.bf16.msra.mxu0 0
    %1527 = vmatprep.subr.bf16.mxu0 0
    %1528 = vmatpush1.bf16.msra.mxu0 0
    %1529 = vmatprep.subr.bf16.mxu0 0
    %1530 = vmatpush1.bf16.msra.mxu0 0
    %1531 = vmatprep.subr.bf16.mxu0 0
    %1532 = vmatpush1.bf16.msra.mxu0 0
    %1533 = vmatprep.subr.bf16.mxu0 0
    %1534 = vmatpush1.bf16.msra.mxu0 0
    %1535 = vmatprep.subr.bf16.mxu0 0
    %1536 = vmatpush1.bf16.msra.mxu0 0
    %1537 = vmatprep.subr.bf16.mxu0 0
    %1538 = vmatpush1.bf16.msra.mxu0 0
    %1539 = vmatprep.subr.bf16.mxu0 0
    %1540 = vmatpush1.bf16.msra.mxu0 0
    %1541 = vmatprep.mubr.bf16.mxu0 0
    %1542 = vmatmul.mubr.bf16.gmra.mrb[0].mxu0 %v1455
    %v1543 = vpop.f32.mrb[0].mxu0
    %v1544 = vadd.f32 %v1330, %v1543
    %v1545 = vpop.f32.mrb[0].mxu0
    %v1546 = vpop.f32.mrb[0].mxu0
    %v1547 = vpop.f32.mrb[0].mxu0
    %1548 = vdwg.mxu0
    %v1549 = vpack.c.bf16 %v1385, %v1385
    %v1550 = vpack.c.bf16 %v1437, %v1437
    %v1551 = vpack.c.bf16 %v1492, %v1492
    %v1552 = vpack.c.bf16 %v1544, %v1544
    %1554 = vrot.lane.b32.xlu0 %v1549, 112
    %v1555 = vpop.permute.xlu0 %1554
    %v1557 = vsel %vm356, %v1549, 0
    %v1560 = vsel %vm356, %v1555, 0
    %1562 = vmatprep.subr.bf16.mxu0 0
    %1563 = vmatpush1.bf16.xpose.msra.mxu0 %v1560
    %1564 = vmatprep.subr.bf16.mxu0 0
    %1565 = vmatpush1.bf16.xpose.msra.mxu0 0
    %1566 = vmatprep.subr.bf16.mxu0 0
    %1567 = vmatpush1.bf16.xpose.msra.mxu0 0
    %1568 = vmatprep.subr.bf16.mxu0 0
    %1569 = vmatpush1.bf16.xpose.msra.mxu0 0
    %1570 = vmatprep.subr.bf16.mxu0 0
    %1571 = vmatpush1.bf16.xpose.msra.mxu0 0
    %1572 = vmatprep.subr.bf16.mxu0 0
    %1573 = vmatpush1.bf16.xpose.msra.mxu0 0
    %1574 = vmatprep.subr.bf16.mxu0 0
    %1575 = vmatpush1.bf16.xpose.msra.mxu0 0
    %1576 = vmatprep.subr.bf16.mxu0 0
    %1577 = vmatpush1.bf16.xpose.msra.mxu0 0
    %1578 = vmatprep.subr.bf16.mxu0 0
    %1579 = vmatpush1.bf16.xpose.msra.mxu0 0
    %1580 = vmatprep.subr.bf16.mxu0 0
    %1581 = vmatpush1.bf16.xpose.msra.mxu0 0
    %1582 = vmatprep.subr.bf16.mxu0 0
    %1583 = vmatpush1.bf16.xpose.msra.mxu0 0
    %1584 = vmatprep.subr.bf16.mxu0 0
    %1585 = vmatpush1.bf16.xpose.msra.mxu0 0
    %1586 = vmatprep.subr.bf16.mxu0 0
    %1587 = vmatpush1.bf16.xpose.msra.mxu0 0
    %1588 = vmatprep.subr.bf16.mxu0 0
    %1589 = vmatpush1.bf16.xpose.msra.mxu0 0
    %1590 = vmatprep.subr.bf16.mxu0 0
    %1591 = vmatpush1.bf16.xpose.msra.mxu0 0
    %1592 = vmatprep.subr.bf16.mxu0 0
    %1593 = vmatpush1.bf16.xpose.msra.mxu0 0
    %1594 = vmatprep.mubr.bf16.mxu0 0
    %1595 = vmatmul.mubr.bf16.gmra.mrb[0].mxu0 %v1557
    %v1596 = vpop.f32.mrb[0].mxu0
    %v1597 = vadd.f32 0.0, %v1596
    %v1598 = vpop.f32.mrb[0].mxu0
    %v1599 = vpop.f32.mrb[0].mxu0
    %v1600 = vpop.f32.mrb[0].mxu0
    %1601 = vdwg.mxu0
    %1603 = vrot.lane.b32.xlu0 %v1550, 112
    %v1604 = vpop.permute.xlu0 %1603
    %v1606 = vsel %vm356, %v1550, 0
    %v1609 = vsel %vm356, %v1604, 0
    %1611 = vmatprep.subr.bf16.mxu0 0
    %1612 = vmatpush1.bf16.xpose.msra.mxu0 %v1609
    %1613 = vmatprep.subr.bf16.mxu0 0
    %1614 = vmatpush1.bf16.xpose.msra.mxu0 0
    %1615 = vmatprep.subr.bf16.mxu0 0
    %1616 = vmatpush1.bf16.xpose.msra.mxu0 0
    %1617 = vmatprep.subr.bf16.mxu0 0
    %1618 = vmatpush1.bf16.xpose.msra.mxu0 0
    %1619 = vmatprep.subr.bf16.mxu0 0
    %1620 = vmatpush1.bf16.xpose.msra.mxu0 0
    %1621 = vmatprep.subr.bf16.mxu0 0
    %1622 = vmatpush1.bf16.xpose.msra.mxu0 0
    %1623 = vmatprep.subr.bf16.mxu0 0
    %1624 = vmatpush1.bf16.xpose.msra.mxu0 0
    %1625 = vmatprep.subr.bf16.mxu0 0
    %1626 = vmatpush1.bf16.xpose.msra.mxu0 0
    %1627 = vmatprep.subr.bf16.mxu0 0
    %1628 = vmatpush1.bf16.xpose.msra.mxu0 0
    %1629 = vmatprep.subr.bf16.mxu0 0
    %1630 = vmatpush1.bf16.xpose.msra.mxu0 0
    %1631 = vmatprep.subr.bf16.mxu0 0
    %1632 = vmatpush1.bf16.xpose.msra.mxu0 0
    %1633 = vmatprep.subr.bf16.mxu0 0
    %1634 = vmatpush1.bf16.xpose.msra.mxu0 0
    %1635 = vmatprep.subr.bf16.mxu0 0
    %1636 = vmatpush1.bf16.xpose.msra.mxu0 0
    %1637 = vmatprep.subr.bf16.mxu0 0
    %1638 = vmatpush1.bf16.xpose.msra.mxu0 0
    %1639 = vmatprep.subr.bf16.mxu0 0
    %1640 = vmatpush1.bf16.xpose.msra.mxu0 0
    %1641 = vmatprep.subr.bf16.mxu0 0
    %1642 = vmatpush1.bf16.xpose.msra.mxu0 0
    %1643 = vmatprep.mubr.bf16.mxu0 0
    %1644 = vmatmul.mubr.bf16.gmra.mrb[0].mxu0 %v1606
    %v1645 = vpop.f32.mrb[0].mxu0
    %v1646 = vadd.f32 0.0, %v1645
    %v1647 = vpop.f32.mrb[0].mxu0
    %v1648 = vpop.f32.mrb[0].mxu0
    %v1649 = vpop.f32.mrb[0].mxu0
    %1650 = vdwg.mxu0
    %1652 = vrot.lane.b32.xlu0 %v1551, 112
    %v1653 = vpop.permute.xlu0 %1652
    %v1655 = vsel %vm356, %v1551, 0
    %v1658 = vsel %vm356, %v1653, 0
    %1660 = vmatprep.subr.bf16.mxu0 0
    %1661 = vmatpush1.bf16.xpose.msra.mxu0 %v1658
    %1662 = vmatprep.subr.bf16.mxu0 0
    %1663 = vmatpush1.bf16.xpose.msra.mxu0 0
    %1664 = vmatprep.subr.bf16.mxu0 0
    %1665 = vmatpush1.bf16.xpose.msra.mxu0 0
    %1666 = vmatprep.subr.bf16.mxu0 0
    %1667 = vmatpush1.bf16.xpose.msra.mxu0 0
    %1668 = vmatprep.subr.bf16.mxu0 0
    %1669 = vmatpush1.bf16.xpose.msra.mxu0 0
    %1670 = vmatprep.subr.bf16.mxu0 0
    %1671 = vmatpush1.bf16.xpose.msra.mxu0 0
    %1672 = vmatprep.subr.bf16.mxu0 0
    %1673 = vmatpush1.bf16.xpose.msra.mxu0 0
    %1674 = vmatprep.subr.bf16.mxu0 0
    %1675 = vmatpush1.bf16.xpose.msra.mxu0 0
    %1676 = vmatprep.subr.bf16.mxu0 0
    %1677 = vmatpush1.bf16.xpose.msra.mxu0 0
    %1678 = vmatprep.subr.bf16.mxu0 0
    %1679 = vmatpush1.bf16.xpose.msra.mxu0 0
    %1680 = vmatprep.subr.bf16.mxu0 0
    %1681 = vmatpush1.bf16.xpose.msra.mxu0 0
    %1682 = vmatprep.subr.bf16.mxu0 0
    %1683 = vmatpush1.bf16.xpose.msra.mxu0 0
    %1684 = vmatprep.subr.bf16.mxu0 0
    %1685 = vmatpush1.bf16.xpose.msra.mxu0 0
    %1686 = vmatprep.subr.bf16.mxu0 0
    %1687 = vmatpush1.bf16.xpose.msra.mxu0 0
    %1688 = vmatprep.subr.bf16.mxu0 0
    %1689 = vmatpush1.bf16.xpose.msra.mxu0 0
    %1690 = vmatprep.subr.bf16.mxu0 0
    %1691 = vmatpush1.bf16.xpose.msra.mxu0 0
    %1692 = vmatprep.mubr.bf16.mxu0 0
    %1693 = vmatmul.mubr.bf16.gmra.mrb[0].mxu0 %v1655
    %v1694 = vpop.f32.mrb[0].mxu0
    %v1695 = vadd.f32 0.0, %v1694
    %v1696 = vpop.f32.mrb[0].mxu0
    %v1697 = vpop.f32.mrb[0].mxu0
    %v1698 = vpop.f32.mrb[0].mxu0
    %1699 = vdwg.mxu0
    %1701 = vrot.lane.b32.xlu0 %v1552, 112
    %v1702 = vpop.permute.xlu0 %1701
    %v1704 = vsel %vm356, %v1552, 0
    %v1707 = vsel %vm356, %v1702, 0
    %1709 = vmatprep.subr.bf16.mxu0 0
    %1710 = vmatpush1.bf16.xpose.msra.mxu0 %v1707
    %1711 = vmatprep.subr.bf16.mxu0 0
    %1712 = vmatpush1.bf16.xpose.msra.mxu0 0
    %1713 = vmatprep.subr.bf16.mxu0 0
    %1714 = vmatpush1.bf16.xpose.msra.mxu0 0
    %1715 = vmatprep.subr.bf16.mxu0 0
    %1716 = vmatpush1.bf16.xpose.msra.mxu0 0
    %1717 = vmatprep.subr.bf16.mxu0 0
    %1718 = vmatpush1.bf16.xpose.msra.mxu0 0
    %1719 = vmatprep.subr.bf16.mxu0 0
    %1720 = vmatpush1.bf16.xpose.msra.mxu0 0
    %1721 = vmatprep.subr.bf16.mxu0 0
    %1722 = vmatpush1.bf16.xpose.msra.mxu0 0
    %1723 = vmatprep.subr.bf16.mxu0 0
    %1724 = vmatpush1.bf16.xpose.msra.mxu0 0
    %1725 = vmatprep.subr.bf16.mxu0 0
    %1726 = vmatpush1.bf16.xpose.msra.mxu0 0
    %1727 = vmatprep.subr.bf16.mxu0 0
    %1728 = vmatpush1.bf16.xpose.msra.mxu0 0
    %1729 = vmatprep.subr.bf16.mxu0 0
    %1730 = vmatpush1.bf16.xpose.msra.mxu0 0
    %1731 = vmatprep.subr.bf16.mxu0 0
    %1732 = vmatpush1.bf16.xpose.msra.mxu0 0
    %1733 = vmatprep.subr.bf16.mxu0 0
    %1734 = vmatpush1.bf16.xpose.msra.mxu0 0
    %1735 = vmatprep.subr.bf16.mxu0 0
    %1736 = vmatpush1.bf16.xpose.msra.mxu0 0
    %1737 = vmatprep.subr.bf16.mxu0 0
    %1738 = vmatpush1.bf16.xpose.msra.mxu0 0
    %1739 = vmatprep.subr.bf16.mxu0 0
    %1740 = vmatpush1.bf16.xpose.msra.mxu0 0
    %1741 = vmatprep.mubr.bf16.mxu0 0
    %1742 = vmatmul.mubr.bf16.gmra.mrb[0].mxu0 %v1704
    %v1743 = vpop.f32.mrb[0].mxu0
    %v1744 = vadd.f32 0.0, %v1743
    %v1745 = vpop.f32.mrb[0].mxu0
    %v1746 = vpop.f32.mrb[0].mxu0
    %v1747 = vpop.f32.mrb[0].mxu0
    %1748 = vdwg.mxu0
    %v1749 = vmul.f32 %v1597, 0.25
    %v1750 = vmul.f32 %v1646, 0.25
    %v1751 = vmul.f32 %v1695, 0.25
    %v1752 = vmul.f32 %v1744, 0.25
    %v1753 = vadd.f32 %v1749, %v561
    %v1754 = vadd.f32 %v1750, %v565
    %v1755 = vadd.f32 %v1751, %v569
    %v1756 = vadd.f32 %v1752, %v573
    %v1757 = vsel %vm582, %v1753, -inf
    %1758 = vmax.xlane.f32.xlu0 %v1757
    %v1759 = vpop.xlane.xlu0 %1758
    %v1760 = vsel %vm582, %v1754, -inf
    %1761 = vmax.xlane.f32.xlu0 %v1760
    %v1762 = vpop.xlane.xlu0 %1761
    %v1763 = vsel %vm582, %v1755, -inf
    %1764 = vmax.xlane.f32.xlu0 %v1763
    %v1765 = vpop.xlane.xlu0 %1764
    %v1766 = vsel %vm582, %v1756, -inf
    %1767 = vmax.xlane.f32.xlu0 %v1766
    %v1768 = vpop.xlane.xlu0 %1767
    %v1769 = vsub.f32 %v1753, %v1759
    %v1770 = vsub.f32 %v1754, %v1762
    %v1771 = vsub.f32 %v1755, %v1765
    %v1772 = vsub.f32 %v1756, %v1768
    %v1773 = vmul.f32 %v1769, 1.442695
    %v1774 = vpow.pop %v1773
    %v1775 = vmul.f32 %v1770, 1.442695
    %v1776 = vpow.pop %v1775
    %v1777 = vmul.f32 %v1771, 1.442695
    %v1778 = vpow.pop %v1777
    %v1779 = vmul.f32 %v1772, 1.442695
    %v1780 = vpow.pop %v1779
    %v1781 = vsel %vm582, %v1774, 0.0
    %1782 = vadd.xlane.f32.xlu0 %v1781
    %v1783 = vpop.xlane.xlu0 %1782
    %v1784 = vsel %vm582, %v1776, 0.0
    %1785 = vadd.xlane.f32.xlu0 %v1784
    %v1786 = vpop.xlane.xlu0 %1785
    %v1787 = vsel %vm582, %v1778, 0.0
    %1788 = vadd.xlane.f32.xlu0 %v1787
    %v1789 = vpop.xlane.xlu0 %1788
    %v1790 = vsel %vm582, %v1780, 0.0
    %1791 = vadd.xlane.f32.xlu0 %v1790
    %v1792 = vpop.xlane.xlu0 %1791
    %v1793 = vrcp.pop %v1783
    %v1794 = vrcp.pop %v1786
    %v1795 = vrcp.pop %v1789
    %v1796 = vrcp.pop %v1792
    %v1797 = vmul.f32 %v1774, %v1793
    %v1798 = vmul.f32 %v1776, %v1794
    %v1799 = vmul.f32 %v1778, %v1795
    %v1800 = vmul.f32 %v1780, %v1796
    %v1801 = vpack.c.bf16 %v1797, %v1797
    %v1802 = vpack.c.bf16 %v1798, %v1798
    %v1803 = vpack.c.bf16 %v1799, %v1799
    %v1804 = vpack.c.bf16 %v1800, %v1800
    %1805 = vrot.lane.b32.xlu0 %v1549, 96
    %v1806 = vpop.permute.xlu0 %1805
    %v1808 = vsel %vm582, %v1801, 0
    %v1811 = vsel %vm636, %v1806, 0
    %1813 = vmatprep.subr.bf16.mxu0 0
    %1814 = vmatpush1.bf16.msra.mxu0 %v1811
    %1815 = vmatprep.subr.bf16.mxu0 0
    %1816 = vmatpush1.bf16.msra.mxu0 0
    %1817 = vmatprep.subr.bf16.mxu0 0
    %1818 = vmatpush1.bf16.msra.mxu0 0
    %1819 = vmatprep.subr.bf16.mxu0 0
    %1820 = vmatpush1.bf16.msra.mxu0 0
    %1821 = vmatprep.subr.bf16.mxu0 0
    %1822 = vmatpush1.bf16.msra.mxu0 0
    %1823 = vmatprep.subr.bf16.mxu0 0
    %1824 = vmatpush1.bf16.msra.mxu0 0
    %1825 = vmatprep.subr.bf16.mxu0 0
    %1826 = vmatpush1.bf16.msra.mxu0 0
    %1827 = vmatprep.subr.bf16.mxu0 0
    %1828 = vmatpush1.bf16.msra.mxu0 0
    %1829 = vmatprep.subr.bf16.mxu0 0
    %1830 = vmatpush1.bf16.msra.mxu0 0
    %1831 = vmatprep.subr.bf16.mxu0 0
    %1832 = vmatpush1.bf16.msra.mxu0 0
    %1833 = vmatprep.subr.bf16.mxu0 0
    %1834 = vmatpush1.bf16.msra.mxu0 0
    %1835 = vmatprep.subr.bf16.mxu0 0
    %1836 = vmatpush1.bf16.msra.mxu0 0
    %1837 = vmatprep.subr.bf16.mxu0 0
    %1838 = vmatpush1.bf16.msra.mxu0 0
    %1839 = vmatprep.subr.bf16.mxu0 0
    %1840 = vmatpush1.bf16.msra.mxu0 0
    %1841 = vmatprep.subr.bf16.mxu0 0
    %1842 = vmatpush1.bf16.msra.mxu0 0
    %1843 = vmatprep.subr.bf16.mxu0 0
    %1844 = vmatpush1.bf16.msra.mxu0 0
    %1845 = vmatprep.mubr.bf16.mxu0 0
    %1846 = vmatmul.mubr.bf16.gmra.mrb[0].mxu0 %v1808
    %v1847 = vpop.f32.mrb[0].mxu0
    %v1848 = vadd.f32 0.0, %v1847
    %v1849 = vpop.f32.mrb[0].mxu0
    %v1850 = vpop.f32.mrb[0].mxu0
    %v1851 = vpop.f32.mrb[0].mxu0
    %1852 = vdwg.mxu0
    %1853 = vrot.lane.b32.xlu0 %v1550, 96
    %v1854 = vpop.permute.xlu0 %1853
    %v1856 = vsel %vm582, %v1802, 0
    %v1859 = vsel %vm636, %v1854, 0
    %1861 = vmatprep.subr.bf16.mxu0 0
    %1862 = vmatpush1.bf16.msra.mxu0 %v1859
    %1863 = vmatprep.subr.bf16.mxu0 0
    %1864 = vmatpush1.bf16.msra.mxu0 0
    %1865 = vmatprep.subr.bf16.mxu0 0
    %1866 = vmatpush1.bf16.msra.mxu0 0
    %1867 = vmatprep.subr.bf16.mxu0 0
    %1868 = vmatpush1.bf16.msra.mxu0 0
    %1869 = vmatprep.subr.bf16.mxu0 0
    %1870 = vmatpush1.bf16.msra.mxu0 0
    %1871 = vmatprep.subr.bf16.mxu0 0
    %1872 = vmatpush1.bf16.msra.mxu0 0
    %1873 = vmatprep.subr.bf16.mxu0 0
    %1874 = vmatpush1.bf16.msra.mxu0 0
    %1875 = vmatprep.subr.bf16.mxu0 0
    %1876 = vmatpush1.bf16.msra.mxu0 0
    %1877 = vmatprep.subr.bf16.mxu0 0
    %1878 = vmatpush1.bf16.msra.mxu0 0
    %1879 = vmatprep.subr.bf16.mxu0 0
    %1880 = vmatpush1.bf16.msra.mxu0 0
    %1881 = vmatprep.subr.bf16.mxu0 0
    %1882 = vmatpush1.bf16.msra.mxu0 0
    %1883 = vmatprep.subr.bf16.mxu0 0
    %1884 = vmatpush1.bf16.msra.mxu0 0
    %1885 = vmatprep.subr.bf16.mxu0 0
    %1886 = vmatpush1.bf16.msra.mxu0 0
    %1887 = vmatprep.subr.bf16.mxu0 0
    %1888 = vmatpush1.bf16.msra.mxu0 0
    %1889 = vmatprep.subr.bf16.mxu0 0
    %1890 = vmatpush1.bf16.msra.mxu0 0
    %1891 = vmatprep.subr.bf16.mxu0 0
    %1892 = vmatpush1.bf16.msra.mxu0 0
    %1893 = vmatprep.mubr.bf16.mxu0 0
    %1894 = vmatmul.mubr.bf16.gmra.mrb[0].mxu0 %v1856
    %v1895 = vpop.f32.mrb[0].mxu0
    %v1896 = vadd.f32 0.0, %v1895
    %v1897 = vpop.f32.mrb[0].mxu0
    %v1898 = vpop.f32.mrb[0].mxu0
    %v1899 = vpop.f32.mrb[0].mxu0
    %1900 = vdwg.mxu0
    %1901 = vrot.lane.b32.xlu0 %v1551, 96
    %v1902 = vpop.permute.xlu0 %1901
    %v1904 = vsel %vm582, %v1803, 0
    %v1907 = vsel %vm636, %v1902, 0
    %1909 = vmatprep.subr.bf16.mxu0 0
    %1910 = vmatpush1.bf16.msra.mxu0 %v1907
    %1911 = vmatprep.subr.bf16.mxu0 0
    %1912 = vmatpush1.bf16.msra.mxu0 0
    %1913 = vmatprep.subr.bf16.mxu0 0
    %1914 = vmatpush1.bf16.msra.mxu0 0
    %1915 = vmatprep.subr.bf16.mxu0 0
    %1916 = vmatpush1.bf16.msra.mxu0 0
    %1917 = vmatprep.subr.bf16.mxu0 0
    %1918 = vmatpush1.bf16.msra.mxu0 0
    %1919 = vmatprep.subr.bf16.mxu0 0
    %1920 = vmatpush1.bf16.msra.mxu0 0
    %1921 = vmatprep.subr.bf16.mxu0 0
    %1922 = vmatpush1.bf16.msra.mxu0 0
    %1923 = vmatprep.subr.bf16.mxu0 0
    %1924 = vmatpush1.bf16.msra.mxu0 0
    %1925 = vmatprep.subr.bf16.mxu0 0
    %1926 = vmatpush1.bf16.msra.mxu0 0
    %1927 = vmatprep.subr.bf16.mxu0 0
    %1928 = vmatpush1.bf16.msra.mxu0 0
    %1929 = vmatprep.subr.bf16.mxu0 0
    %1930 = vmatpush1.bf16.msra.mxu0 0
    %1931 = vmatprep.subr.bf16.mxu0 0
    %1932 = vmatpush1.bf16.msra.mxu0 0
    %1933 = vmatprep.subr.bf16.mxu0 0
    %1934 = vmatpush1.bf16.msra.mxu0 0
    %1935 = vmatprep.subr.bf16.mxu0 0
    %1936 = vmatpush1.bf16.msra.mxu0 0
    %1937 = vmatprep.subr.bf16.mxu0 0
    %1938 = vmatpush1.bf16.msra.mxu0 0
    %1939 = vmatprep.subr.bf16.mxu0 0
    %1940 = vmatpush1.bf16.msra.mxu0 0
    %1941 = vmatprep.mubr.bf16.mxu0 0
    %1942 = vmatmul.mubr.bf16.gmra.mrb[0].mxu0 %v1904
    %v1943 = vpop.f32.mrb[0].mxu0
    %v1944 = vadd.f32 0.0, %v1943
    %v1945 = vpop.f32.mrb[0].mxu0
    %v1946 = vpop.f32.mrb[0].mxu0
    %v1947 = vpop.f32.mrb[0].mxu0
    %1948 = vdwg.mxu0
    %1949 = vrot.lane.b32.xlu0 %v1552, 96
    %v1950 = vpop.permute.xlu0 %1949
    %v1952 = vsel %vm582, %v1804, 0
    %v1955 = vsel %vm636, %v1950, 0
    %1957 = vmatprep.subr.bf16.mxu0 0
    %1958 = vmatpush1.bf16.msra.mxu0 %v1955
    %1959 = vmatprep.subr.bf16.mxu0 0
    %1960 = vmatpush1.bf16.msra.mxu0 0
    %1961 = vmatprep.subr.bf16.mxu0 0
    %1962 = vmatpush1.bf16.msra.mxu0 0
    %1963 = vmatprep.subr.bf16.mxu0 0
    %1964 = vmatpush1.bf16.msra.mxu0 0
    %1965 = vmatprep.subr.bf16.mxu0 0
    %1966 = vmatpush1.bf16.msra.mxu0 0
    %1967 = vmatprep.subr.bf16.mxu0 0
    %1968 = vmatpush1.bf16.msra.mxu0 0
    %1969 = vmatprep.subr.bf16.mxu0 0
    %1970 = vmatpush1.bf16.msra.mxu0 0
    %1971 = vmatprep.subr.bf16.mxu0 0
    %1972 = vmatpush1.bf16.msra.mxu0 0
    %1973 = vmatprep.subr.bf16.mxu0 0
    %1974 = vmatpush1.bf16.msra.mxu0 0
    %1975 = vmatprep.subr.bf16.mxu0 0
    %1976 = vmatpush1.bf16.msra.mxu0 0
    %1977 = vmatprep.subr.bf16.mxu0 0
    %1978 = vmatpush1.bf16.msra.mxu0 0
    %1979 = vmatprep.subr.bf16.mxu0 0
    %1980 = vmatpush1.bf16.msra.mxu0 0
    %1981 = vmatprep.subr.bf16.mxu0 0
    %1982 = vmatpush1.bf16.msra.mxu0 0
    %1983 = vmatprep.subr.bf16.mxu0 0
    %1984 = vmatpush1.bf16.msra.mxu0 0
    %1985 = vmatprep.subr.bf16.mxu0 0
    %1986 = vmatpush1.bf16.msra.mxu0 0
    %1987 = vmatprep.subr.bf16.mxu0 0
    %1988 = vmatpush1.bf16.msra.mxu0 0
    %1989 = vmatprep.mubr.bf16.mxu0 0
    %1990 = vmatmul.mubr.bf16.gmra.mrb[0].mxu0 %v1952
    %v1991 = vpop.f32.mrb[0].mxu0
    %v1992 = vadd.f32 0.0, %v1991
    %v1993 = vpop.f32.mrb[0].mxu0
    %v1994 = vpop.f32.mrb[0].mxu0
    %v1995 = vpop.f32.mrb[0].mxu0
    %1996 = vdwg.mxu0
    %v1997 = vpack.c.bf16 %v1848, %v1848
    %v1998 = vpack.c.bf16 %v1896, %v1896
    %v1999 = vpack.c.bf16 %v1944, %v1944
    %v2000 = vpack.c.bf16 %v1992, %v1992
    %s2001 = scalar_lea.vmem %s6, 32
    %v2002 = vld [vmem:[%s2001] sm:$0xf]
    %v2003 = vld [vmem:[%s2001 + $0x4] sm:$0xf]
    %v2004 = vld [vmem:[%s2001 + $0x8] sm:$0xf]
    %v2005 = vld [vmem:[%s2001 + $0xc] sm:$0xf]
    %v2006 = vld [vmem:[%s2001 + $0x10] sm:$0xf]
    %v2007 = vld [vmem:[%s2001 + $0x14] sm:$0xf]
    %v2008 = vld [vmem:[%s2001 + $0x18] sm:$0xf]
    %v2009 = vld [vmem:[%s2001 + $0x1c] sm:$0xf]
    %v2012 = vunpack.c.l.b16 %v2002
    %v2013 = vunpack.c.l.b16 %v2003
    %v2014 = vpack.c.b16 %v2013, %v2012
    %v2017 = vsel %vm356, %v1997, 0
    %2019 = vmatprep.subr.bf16.mxu0 0
    %2020 = vmatpush1.bf16.msra.mxu0 %v2014
    %2021 = vmatprep.subr.bf16.mxu0 0
    %2022 = vmatpush1.bf16.msra.mxu0 0
    %2023 = vmatprep.subr.bf16.mxu0 0
    %2024 = vmatpush1.bf16.msra.mxu0 0
    %2025 = vmatprep.subr.bf16.mxu0 0
    %2026 = vmatpush1.bf16.msra.mxu0 0
    %2027 = vmatprep.subr.bf16.mxu0 0
    %2028 = vmatpush1.bf16.msra.mxu0 0
    %2029 = vmatprep.subr.bf16.mxu0 0
    %2030 = vmatpush1.bf16.msra.mxu0 0
    %2031 = vmatprep.subr.bf16.mxu0 0
    %2032 = vmatpush1.bf16.msra.mxu0 0
    %2033 = vmatprep.subr.bf16.mxu0 0
    %2034 = vmatpush1.bf16.msra.mxu0 0
    %2035 = vmatprep.subr.bf16.mxu0 0
    %2036 = vmatpush1.bf16.msra.mxu0 0
    %2037 = vmatprep.subr.bf16.mxu0 0
    %2038 = vmatpush1.bf16.msra.mxu0 0
    %2039 = vmatprep.subr.bf16.mxu0 0
    %2040 = vmatpush1.bf16.msra.mxu0 0
    %2041 = vmatprep.subr.bf16.mxu0 0
    %2042 = vmatpush1.bf16.msra.mxu0 0
    %2043 = vmatprep.subr.bf16.mxu0 0
    %2044 = vmatpush1.bf16.msra.mxu0 0
    %2045 = vmatprep.subr.bf16.mxu0 0
    %2046 = vmatpush1.bf16.msra.mxu0 0
    %2047 = vmatprep.subr.bf16.mxu0 0
    %2048 = vmatpush1.bf16.msra.mxu0 0
    %2049 = vmatprep.subr.bf16.mxu0 0
    %2050 = vmatpush1.bf16.msra.mxu0 0
    %2051 = vmatprep.mubr.bf16.mxu0 0
    %2052 = vmatmul.mubr.bf16.gmra.mrb[0].mxu0 %v2017
    %v2053 = vpop.f32.mrb[0].mxu0
    %v2054 = vadd.f32 0.0, %v2053
    %v2055 = vpop.f32.mrb[0].mxu0
    %v2056 = vpop.f32.mrb[0].mxu0
    %v2057 = vpop.f32.mrb[0].mxu0
    %2058 = vdwg.mxu0
    %v2061 = vunpack.c.l.b16 %v2004
    %v2062 = vunpack.c.l.b16 %v2005
    %v2063 = vpack.c.b16 %v2062, %v2061
    %v2066 = vsel %vm356, %v1998, 0
    %2068 = vmatprep.subr.bf16.mxu0 0
    %2069 = vmatpush1.bf16.msra.mxu0 %v2063
    %2070 = vmatprep.subr.bf16.mxu0 0
    %2071 = vmatpush1.bf16.msra.mxu0 0
    %2072 = vmatprep.subr.bf16.mxu0 0
    %2073 = vmatpush1.bf16.msra.mxu0 0
    %2074 = vmatprep.subr.bf16.mxu0 0
    %2075 = vmatpush1.bf16.msra.mxu0 0
    %2076 = vmatprep.subr.bf16.mxu0 0
    %2077 = vmatpush1.bf16.msra.mxu0 0
    %2078 = vmatprep.subr.bf16.mxu0 0
    %2079 = vmatpush1.bf16.msra.mxu0 0
    %2080 = vmatprep.subr.bf16.mxu0 0
    %2081 = vmatpush1.bf16.msra.mxu0 0
    %2082 = vmatprep.subr.bf16.mxu0 0
    %2083 = vmatpush1.bf16.msra.mxu0 0
    %2084 = vmatprep.subr.bf16.mxu0 0
    %2085 = vmatpush1.bf16.msra.mxu0 0
    %2086 = vmatprep.subr.bf16.mxu0 0
    %2087 = vmatpush1.bf16.msra.mxu0 0
    %2088 = vmatprep.subr.bf16.mxu0 0
    %2089 = vmatpush1.bf16.msra.mxu0 0
    %2090 = vmatprep.subr.bf16.mxu0 0
    %2091 = vmatpush1.bf16.msra.mxu0 0
    %2092 = vmatprep.subr.bf16.mxu0 0
    %2093 = vmatpush1.bf16.msra.mxu0 0
    %2094 = vmatprep.subr.bf16.mxu0 0
    %2095 = vmatpush1.bf16.msra.mxu0 0
    %2096 = vmatprep.subr.bf16.mxu0 0
    %2097 = vmatpush1.bf16.msra.mxu0 0
    %2098 = vmatprep.subr.bf16.mxu0 0
    %2099 = vmatpush1.bf16.msra.mxu0 0
    %2100 = vmatprep.mubr.bf16.mxu0 0
    %2101 = vmatmul.mubr.bf16.gmra.mrb[0].mxu0 %v2066
    %v2102 = vpop.f32.mrb[0].mxu0
    %v2103 = vadd.f32 0.0, %v2102
    %v2104 = vpop.f32.mrb[0].mxu0
    %v2105 = vpop.f32.mrb[0].mxu0
    %v2106 = vpop.f32.mrb[0].mxu0
    %2107 = vdwg.mxu0
    %v2110 = vunpack.c.l.b16 %v2006
    %v2111 = vunpack.c.l.b16 %v2007
    %v2112 = vpack.c.b16 %v2111, %v2110
    %v2115 = vsel %vm356, %v1999, 0
    %2117 = vmatprep.subr.bf16.mxu0 0
    %2118 = vmatpush1.bf16.msra.mxu0 %v2112
    %2119 = vmatprep.subr.bf16.mxu0 0
    %2120 = vmatpush1.bf16.msra.mxu0 0
    %2121 = vmatprep.subr.bf16.mxu0 0
    %2122 = vmatpush1.bf16.msra.mxu0 0
    %2123 = vmatprep.subr.bf16.mxu0 0
    %2124 = vmatpush1.bf16.msra.mxu0 0
    %2125 = vmatprep.subr.bf16.mxu0 0
    %2126 = vmatpush1.bf16.msra.mxu0 0
    %2127 = vmatprep.subr.bf16.mxu0 0
    %2128 = vmatpush1.bf16.msra.mxu0 0
    %2129 = vmatprep.subr.bf16.mxu0 0
    %2130 = vmatpush1.bf16.msra.mxu0 0
    %2131 = vmatprep.subr.bf16.mxu0 0
    %2132 = vmatpush1.bf16.msra.mxu0 0
    %2133 = vmatprep.subr.bf16.mxu0 0
    %2134 = vmatpush1.bf16.msra.mxu0 0
    %2135 = vmatprep.subr.bf16.mxu0 0
    %2136 = vmatpush1.bf16.msra.mxu0 0
    %2137 = vmatprep.subr.bf16.mxu0 0
    %2138 = vmatpush1.bf16.msra.mxu0 0
    %2139 = vmatprep.subr.bf16.mxu0 0
    %2140 = vmatpush1.bf16.msra.mxu0 0
    %2141 = vmatprep.subr.bf16.mxu0 0
    %2142 = vmatpush1.bf16.msra.mxu0 0
    %2143 = vmatprep.subr.bf16.mxu0 0
    %2144 = vmatpush1.bf16.msra.mxu0 0
    %2145 = vmatprep.subr.bf16.mxu0 0
    %2146 = vmatpush1.bf16.msra.mxu0 0
    %2147 = vmatprep.subr.bf16.mxu0 0
    %2148 = vmatpush1.bf16.msra.mxu0 0
    %2149 = vmatprep.mubr.bf16.mxu0 0
    %2150 = vmatmul.mubr.bf16.gmra.mrb[0].mxu0 %v2115
    %v2151 = vpop.f32.mrb[0].mxu0
    %v2152 = vadd.f32 0.0, %v2151
    %v2153 = vpop.f32.mrb[0].mxu0
    %v2154 = vpop.f32.mrb[0].mxu0
    %v2155 = vpop.f32.mrb[0].mxu0
    %2156 = vdwg.mxu0
    %v2159 = vunpack.c.l.b16 %v2008
    %v2160 = vunpack.c.l.b16 %v2009
    %v2161 = vpack.c.b16 %v2160, %v2159
    %v2164 = vsel %vm356, %v2000, 0
    %2166 = vmatprep.subr.bf16.mxu0 0
    %2167 = vmatpush1.bf16.msra.mxu0 %v2161
    %2168 = vmatprep.subr.bf16.mxu0 0
    %2169 = vmatpush1.bf16.msra.mxu0 0
    %2170 = vmatprep.subr.bf16.mxu0 0
    %2171 = vmatpush1.bf16.msra.mxu0 0
    %2172 = vmatprep.subr.bf16.mxu0 0
    %2173 = vmatpush1.bf16.msra.mxu0 0
    %2174 = vmatprep.subr.bf16.mxu0 0
    %2175 = vmatpush1.bf16.msra.mxu0 0
    %2176 = vmatprep.subr.bf16.mxu0 0
    %2177 = vmatpush1.bf16.msra.mxu0 0
    %2178 = vmatprep.subr.bf16.mxu0 0
    %2179 = vmatpush1.bf16.msra.mxu0 0
    %2180 = vmatprep.subr.bf16.mxu0 0
    %2181 = vmatpush1.bf16.msra.mxu0 0
    %2182 = vmatprep.subr.bf16.mxu0 0
    %2183 = vmatpush1.bf16.msra.mxu0 0
    %2184 = vmatprep.subr.bf16.mxu0 0
    %2185 = vmatpush1.bf16.msra.mxu0 0
    %2186 = vmatprep.subr.bf16.mxu0 0
    %2187 = vmatpush1.bf16.msra.mxu0 0
    %2188 = vmatprep.subr.bf16.mxu0 0
    %2189 = vmatpush1.bf16.msra.mxu0 0
    %2190 = vmatprep.subr.bf16.mxu0 0
    %2191 = vmatpush1.bf16.msra.mxu0 0
    %2192 = vmatprep.subr.bf16.mxu0 0
    %2193 = vmatpush1.bf16.msra.mxu0 0
    %2194 = vmatprep.subr.bf16.mxu0 0
    %2195 = vmatpush1.bf16.msra.mxu0 0
    %2196 = vmatprep.subr.bf16.mxu0 0
    %2197 = vmatpush1.bf16.msra.mxu0 0
    %2198 = vmatprep.mubr.bf16.mxu0 0
    %2199 = vmatmul.mubr.bf16.gmra.mrb[0].mxu0 %v2164
    %v2200 = vpop.f32.mrb[0].mxu0
    %v2201 = vadd.f32 0.0, %v2200
    %v2202 = vpop.f32.mrb[0].mxu0
    %v2203 = vpop.f32.mrb[0].mxu0
    %v2204 = vpop.f32.mrb[0].mxu0
    %2205 = vdwg.mxu0
    %v2206 = vadd.f32 %v2054, %v2103
    %v2207 = vadd.f32 %v2152, %v2201
    %v2208 = vlaneseq
    %v2209 = vshrl.u32 %v2208, 7
    %v2210 = vsub.s32 0, %v2209
    %v2211 = vrot.slane %v1286, %v2210
    %v2212 = vadd.f32 %v2206, %v2211
    %v2213 = vadd.f32 %v2207, %v2211
    %v2214 = vadd.f32 %v2212, %v1283
    %v2215 = vadd.f32 %v2213, %v1284
    %v2216 = vsel %vm48, %v2214, 0.0
    %2217 = vadd.xlane.f32.xlu0 %v2216
    %v2218 = vpop.xlane.xlu0 %2217
    %v2219 = vsel %vm48, %v2215, 0.0
    %2220 = vadd.xlane.f32.xlu0 %v2219
    %v2221 = vpop.xlane.xlu0 %2220
    %v2222 = vmul.f32 %v2218, %v55
    %v2223 = vmul.f32 %v2221, %v55
    %v2224 = vsub.f32 %v2214, %v2222
    %v2225 = vsub.f32 %v2215, %v2223
    %v2226 = vmul.f32 %v2224, %v2224
    %v2227 = vmul.f32 %v2225, %v2225
    %v2228 = vsel %vm48, %v2226, 0.0
    %2229 = vadd.xlane.f32.xlu0 %v2228
    %v2230 = vpop.xlane.xlu0 %2229
    %v2231 = vsel %vm48, %v2227, 0.0
    %2232 = vadd.xlane.f32.xlu0 %v2231
    %v2233 = vpop.xlane.xlu0 %2232
    %v2234 = vmul.f32 %v2230, %v55
    %v2235 = vmul.f32 %v2233, %v55
    %v2236 = vadd.f32 %v2234, 1e-12
    %v2237 = vadd.f32 %v2235, 1e-12
    %v2238 = vrsqrt.pop %v2236
    %v2239 = vrsqrt.pop %v2237
    %v2240 = vmul.f32 %v2224, %v2238
    %v2241 = vmul.f32 %v2225, %v2239
    %v2242 = vlaneseq
    %v2243 = vshrl.u32 %v2242, 7
    %v2244 = vsub.s32 1, %v2243
    %v2245 = vrot.slane %v1286, %v2244
    %v2246 = vmul.f32 %v2240, %v2245
    %v2247 = vmul.f32 %v2241, %v2245
    %v2248 = vlaneseq
    %v2249 = vshrl.u32 %v2248, 7
    %v2250 = vsub.s32 2, %v2249
    %v2251 = vrot.slane %v1286, %v2250
    %v2252 = vadd.f32 %v2246, %v2251
    %v2253 = vadd.f32 %v2247, %v2251
    %v2254 = vpack.c.bf16 %v2253, %v2252
    %s2255 = scalar_lea.vmem %s7, 16
    %v2256 = vld [vmem:[%s2255] sm:$0xf]
    %v2257 = vld [vmem:[%s2255 + $0x4] sm:$0xf]
    %v2258 = vld [vmem:[%s2255 + $0x8] sm:$0xf]
    %v2259 = vld [vmem:[%s2255 + $0xc] sm:$0xf]
    %v2260 = vlaneseq
    %v2261 = vshrl.u32 %v2260, 7
    %v2262 = vsub.s32 6, %v2261
    %v2263 = vrot.slane %v1286, %v2262
    %v2268 = vunpack.c.l.b16 %v2256
    %v2269 = vunpack.c.l.b16 %v2257
    %v2270 = vunpack.c.l.b16 %v2258
    %v2271 = vunpack.c.l.b16 %v2259
    %v2272 = vpack.c.b16 %v2269, %v2268
    %v2273 = vpack.c.b16 %v2271, %v2270
    %v2277 = vsel %vm48, %v2254, 0
    %2279 = vmatprep.subr.bf16.mxu0 0
    %2280 = vmatpush1.bf16.msra.mxu0 %v2272
    %2281 = vmatprep.subr.bf16.mxu0 0
    %2282 = vmatpush1.bf16.msra.mxu0 %v2273
    %2283 = vmatprep.subr.bf16.mxu0 0
    %2284 = vmatpush1.bf16.msra.mxu0 0
    %2285 = vmatprep.subr.bf16.mxu0 0
    %2286 = vmatpush1.bf16.msra.mxu0 0
    %2287 = vmatprep.subr.bf16.mxu0 0
    %2288 = vmatpush1.bf16.msra.mxu0 0
    %2289 = vmatprep.subr.bf16.mxu0 0
    %2290 = vmatpush1.bf16.msra.mxu0 0
    %2291 = vmatprep.subr.bf16.mxu0 0
    %2292 = vmatpush1.bf16.msra.mxu0 0
    %2293 = vmatprep.subr.bf16.mxu0 0
    %2294 = vmatpush1.bf16.msra.mxu0 0
    %2295 = vmatprep.subr.bf16.mxu0 0
    %2296 = vmatpush1.bf16.msra.mxu0 0
    %2297 = vmatprep.subr.bf16.mxu0 0
    %2298 = vmatpush1.bf16.msra.mxu0 0
    %2299 = vmatprep.subr.bf16.mxu0 0
    %2300 = vmatpush1.bf16.msra.mxu0 0
    %2301 = vmatprep.subr.bf16.mxu0 0
    %2302 = vmatpush1.bf16.msra.mxu0 0
    %2303 = vmatprep.subr.bf16.mxu0 0
    %2304 = vmatpush1.bf16.msra.mxu0 0
    %2305 = vmatprep.subr.bf16.mxu0 0
    %2306 = vmatpush1.bf16.msra.mxu0 0
    %2307 = vmatprep.subr.bf16.mxu0 0
    %2308 = vmatpush1.bf16.msra.mxu0 0
    %2309 = vmatprep.subr.bf16.mxu0 0
    %2310 = vmatpush1.bf16.msra.mxu0 0
    %2311 = vmatprep.mubr.bf16.mxu0 0
    %2312 = vmatmul.mubr.bf16.gmra.mrb[0].mxu0 %v2277
    %v2313 = vpop.f32.mrb[0].mxu0
    %v2314 = vadd.f32 %v2263, %v2313
    %v2315 = vpop.f32.mrb[0].mxu0
    %v2316 = vpop.f32.mrb[0].mxu0
    %v2317 = vadd.f32 %v2263, %v2316
    %v2318 = vpop.f32.mrb[0].mxu0
    %2319 = vdwg.mxu0
    %v2320 = vmul.f32 %v2314, 0.5
    %v2321 = vmul.f32 %v2317, 0.5
    %v2322 = vmul.f32 %v2314, 0.044715
    %v2323 = vmul.f32 %v2317, 0.044715
    %v2324 = vmul.f32 %v2322, %v2314
    %v2325 = vmul.f32 %v2323, %v2317
    %v2326 = vmul.f32 %v2324, %v2314
    %v2327 = vmul.f32 %v2325, %v2317
    %v2328 = vadd.f32 %v2314, %v2326
    %v2329 = vadd.f32 %v2317, %v2327
    %v2330 = vmul.f32 %v2328, 0.7978846
    %v2331 = vmul.f32 %v2329, 0.7978846
    %v2332 = vtanh.pop %v2330
    %v2333 = vtanh.pop %v2331
    %v2334 = vadd.f32 %v2332, 1.0
    %v2335 = vadd.f32 %v2333, 1.0
    %v2336 = vmul.f32 %v2320, %v2334
    %v2337 = vmul.f32 %v2321, %v2335
    %v2338 = vpack.c.bf16 %v2337, %v2336
    %s2339 = scalar_lea.vmem %s8, 32
    %v2340 = vld [vmem:[%s2339] sm:$0xf]
    %v2341 = vld [vmem:[%s2339 + $0x4] sm:$0xf]
    %v2342 = vld [vmem:[%s2339 + $0x8] sm:$0xf]
    %v2343 = vld [vmem:[%s2339 + $0xc] sm:$0xf]
    %v2344 = vld [vmem:[%s2339 + $0x10] sm:$0xf]
    %v2345 = vld [vmem:[%s2339 + $0x14] sm:$0xf]
    %v2346 = vld [vmem:[%s2339 + $0x18] sm:$0xf]
    %v2347 = vld [vmem:[%s2339 + $0x1c] sm:$0xf]
    %v2348 = vlaneseq
    %v2349 = vshrl.u32 %v2348, 7
    %v2350 = vsub.s32 3, %v2349
    %v2351 = vrot.slane %v1286, %v2350
    %v2360 = vunpack.c.l.b16 %v2340
    %v2361 = vunpack.c.l.b16 %v2341
    %v2362 = vunpack.c.l.b16 %v2342
    %v2363 = vunpack.c.l.b16 %v2343
    %v2364 = vunpack.c.l.b16 %v2344
    %v2365 = vunpack.c.l.b16 %v2345
    %v2366 = vunpack.c.l.b16 %v2346
    %v2367 = vunpack.c.l.b16 %v2347
    %v2368 = vpack.c.b16 %v2361, %v2360
    %v2369 = vpack.c.b16 %v2363, %v2362
    %v2370 = vpack.c.b16 %v2365, %v2364
    %v2371 = vpack.c.b16 %v2367, %v2366
    %v2377 = vsel %vm1200, %v2338, 0
    %2379 = vmatprep.subr.bf16.mxu0 0
    %2380 = vmatpush1.bf16.msra.mxu0 %v2368
    %2381 = vmatprep.subr.bf16.mxu0 0
    %2382 = vmatpush1.bf16.msra.mxu0 %v2369
    %2383 = vmatprep.subr.bf16.mxu0 0
    %2384 = vmatpush1.bf16.msra.mxu0 %v2370
    %2385 = vmatprep.subr.bf16.mxu0 0
    %2386 = vmatpush1.bf16.msra.mxu0 %v2371
    %2387 = vmatprep.subr.bf16.mxu0 0
    %2388 = vmatpush1.bf16.msra.mxu0 0
    %2389 = vmatprep.subr.bf16.mxu0 0
    %2390 = vmatpush1.bf16.msra.mxu0 0
    %2391 = vmatprep.subr.bf16.mxu0 0
    %2392 = vmatpush1.bf16.msra.mxu0 0
    %2393 = vmatprep.subr.bf16.mxu0 0
    %2394 = vmatpush1.bf16.msra.mxu0 0
    %2395 = vmatprep.subr.bf16.mxu0 0
    %2396 = vmatpush1.bf16.msra.mxu0 0
    %2397 = vmatprep.subr.bf16.mxu0 0
    %2398 = vmatpush1.bf16.msra.mxu0 0
    %2399 = vmatprep.subr.bf16.mxu0 0
    %2400 = vmatpush1.bf16.msra.mxu0 0
    %2401 = vmatprep.subr.bf16.mxu0 0
    %2402 = vmatpush1.bf16.msra.mxu0 0
    %2403 = vmatprep.subr.bf16.mxu0 0
    %2404 = vmatpush1.bf16.msra.mxu0 0
    %2405 = vmatprep.subr.bf16.mxu0 0
    %2406 = vmatpush1.bf16.msra.mxu0 0
    %2407 = vmatprep.subr.bf16.mxu0 0
    %2408 = vmatpush1.bf16.msra.mxu0 0
    %2409 = vmatprep.subr.bf16.mxu0 0
    %2410 = vmatpush1.bf16.msra.mxu0 0
    %2411 = vmatprep.mubr.bf16.mxu0 0
    %2412 = vmatmul.mubr.bf16.gmra.mrb[0].mxu0 %v2377
    %v2413 = vpop.f32.mrb[0].mxu0
    %v2414 = vadd.f32 %v2351, %v2413
    %v2415 = vpop.f32.mrb[0].mxu0
    %v2416 = vpop.f32.mrb[0].mxu0
    %v2417 = vadd.f32 %v2351, %v2416
    %v2418 = vpop.f32.mrb[0].mxu0
    %2419 = vdwg.mxu0
    %v2420 = vadd.f32 %v2414, %v2252
    %v2421 = vadd.f32 %v2417, %v2253
    %v2422 = vsel %vm48, %v2420, 0.0
    %2423 = vadd.xlane.f32.xlu0 %v2422
    %v2424 = vpop.xlane.xlu0 %2423
    %v2425 = vsel %vm48, %v2421, 0.0
    %2426 = vadd.xlane.f32.xlu0 %v2425
    %v2427 = vpop.xlane.xlu0 %2426
    %v2428 = vmul.f32 %v2424, %v55
    %v2429 = vmul.f32 %v2427, %v55
    %v2430 = vsub.f32 %v2420, %v2428
    %v2431 = vsub.f32 %v2421, %v2429
    %v2432 = vmul.f32 %v2430, %v2430
    %v2433 = vmul.f32 %v2431, %v2431
    %v2434 = vsel %vm48, %v2432, 0.0
    %2435 = vadd.xlane.f32.xlu0 %v2434
    %v2436 = vpop.xlane.xlu0 %2435
    %v2437 = vsel %vm48, %v2433, 0.0
    %2438 = vadd.xlane.f32.xlu0 %v2437
    %v2439 = vpop.xlane.xlu0 %2438
    %v2440 = vmul.f32 %v2436, %v55
    %v2441 = vmul.f32 %v2439, %v55
    %v2442 = vadd.f32 %v2440, 1e-12
    %v2443 = vadd.f32 %v2441, 1e-12
    %v2444 = vrsqrt.pop %v2442
    %v2445 = vrsqrt.pop %v2443
    %v2446 = vmul.f32 %v2430, %v2444
    %v2447 = vmul.f32 %v2431, %v2445
    %v2448 = vlaneseq
    %v2449 = vshrl.u32 %v2448, 7
    %v2450 = vsub.s32 4, %v2449
    %v2451 = vrot.slane %v1286, %v2450
    %v2452 = vmul.f32 %v2446, %v2451
    %v2453 = vmul.f32 %v2447, %v2451
    %v2454 = vlaneseq
    %v2455 = vshrl.u32 %v2454, 7
    %v2456 = vsub.s32 5, %v2455
    %v2457 = vrot.slane %v1286, %v2456
    %v2458 = vadd.f32 %v2452, %v2457
    %v2459 = vadd.f32 %v2453, %v2457
    %v2461 = vrot.slane %v2459, 7
    %vm2463 = vcmask 1040384
    %v2464 = vsel %vm2463, %v2458, %v2461
    %v2465 = vpack.c.bf16 %v2464, %v2464
    %v2466 = vld [vmem:[%s9] sm:$0xf]
    %v2467 = vld [vmem:[%s9 + $0x4] sm:$0xf]
    %v2468 = vld [vmem:[%s9 + $0x8] sm:$0xf]
    %v2469 = vld [vmem:[%s9 + $0xc] sm:$0xf]
    %v2470 = vld [vmem:[%s2 + $0x2] sm:$0x1]
    %v2471 = vlaneseq
    %v2472 = vshrl.u32 %v2471, 7
    %v2473 = vsub.s32 0, %v2472
    %v2474 = vrot.slane %v2470, %v2473
    %v2479 = vunpack.c.l.b16 %v2466
    %v2480 = vunpack.c.l.b16 %v2467
    %v2481 = vunpack.c.l.b16 %v2468
    %v2482 = vunpack.c.l.b16 %v2469
    %v2483 = vpack.c.b16 %v2480, %v2479
    %v2484 = vpack.c.b16 %v2482, %v2481
    %v2488 = vsel %vm48, %v2465, 0
    %2490 = vmatprep.subr.bf16.mxu0 0
    %2491 = vmatpush1.bf16.msra.mxu0 %v2483
    %2492 = vmatprep.subr.bf16.mxu0 0
    %2493 = vmatpush1.bf16.msra.mxu0 %v2484
    %2494 = vmatprep.subr.bf16.mxu0 0
    %2495 = vmatpush1.bf16.msra.mxu0 0
    %2496 = vmatprep.subr.bf16.mxu0 0
    %2497 = vmatpush1.bf16.msra.mxu0 0
    %2498 = vmatprep.subr.bf16.mxu0 0
    %2499 = vmatpush1.bf16.msra.mxu0 0
    %2500 = vmatprep.subr.bf16.mxu0 0
    %2501 = vmatpush1.bf16.msra.mxu0 0
    %2502 = vmatprep.subr.bf16.mxu0 0
    %2503 = vmatpush1.bf16.msra.mxu0 0
    %2504 = vmatprep.subr.bf16.mxu0 0
    %2505 = vmatpush1.bf16.msra.mxu0 0
    %2506 = vmatprep.subr.bf16.mxu0 0
    %2507 = vmatpush1.bf16.msra.mxu0 0
    %2508 = vmatprep.subr.bf16.mxu0 0
    %2509 = vmatpush1.bf16.msra.mxu0 0
    %2510 = vmatprep.subr.bf16.mxu0 0
    %2511 = vmatpush1.bf16.msra.mxu0 0
    %2512 = vmatprep.subr.bf16.mxu0 0
    %2513 = vmatpush1.bf16.msra.mxu0 0
    %2514 = vmatprep.subr.bf16.mxu0 0
    %2515 = vmatpush1.bf16.msra.mxu0 0
    %2516 = vmatprep.subr.bf16.mxu0 0
    %2517 = vmatpush1.bf16.msra.mxu0 0
    %2518 = vmatprep.subr.bf16.mxu0 0
    %2519 = vmatpush1.bf16.msra.mxu0 0
    %2520 = vmatprep.subr.bf16.mxu0 0
    %2521 = vmatpush1.bf16.msra.mxu0 0
    %2522 = vmatprep.mubr.bf16.mxu0 0
    %2523 = vmatmul.mubr.bf16.gmra.mrb[0].mxu0 %v2488
    %v2524 = vpop.f32.mrb[0].mxu0
    %v2525 = vadd.f32 %v2474, %v2524
    %v2526 = vpop.f32.mrb[0].mxu0
    %v2527 = vpop.f32.mrb[0].mxu0
    %v2528 = vpop.f32.mrb[0].mxu0
    %2529 = vdwg.mxu0
    %v2530 = vtanh.pop %v2525
    %v2531 = vpack.c.bf16 %v2530, %v2530
    %v2532 = vld [vmem:[%s10] sm:$0xf]
    %v2533 = vld [vmem:[%s10 + $0x4] sm:$0xf]
    %v2534 = vld [vmem:[%s10 + $0x8] sm:$0xf]
    %v2535 = vld [vmem:[%s10 + $0xc] sm:$0xf]
    %v2536 = vld [vmem:[%s2 + $0x3] sm:$0x1]
    %v2537 = vlaneseq
    %v2538 = vshrl.u32 %v2537, 7
    %v2539 = vsub.s32 0, %v2538
    %v2540 = vrot.slane %v2536, %v2539
    %v2545 = vunpack.c.l.b16 %v2532
    %v2546 = vunpack.c.l.b16 %v2533
    %v2547 = vunpack.c.l.b16 %v2534
    %v2548 = vunpack.c.l.b16 %v2535
    %v2549 = vpack.c.b16 %v2546, %v2545
    %v2550 = vpack.c.b16 %v2548, %v2547
    %v2554 = vsel %vm48, %v2531, 0
    %2556 = vmatprep.subr.bf16.mxu0 0
    %2557 = vmatpush1.bf16.msra.mxu0 %v2549
    %2558 = vmatprep.subr.bf16.mxu0 0
    %2559 = vmatpush1.bf16.msra.mxu0 %v2550
    %2560 = vmatprep.subr.bf16.mxu0 0
    %2561 = vmatpush1.bf16.msra.mxu0 0
    %2562 = vmatprep.subr.bf16.mxu0 0
    %2563 = vmatpush1.bf16.msra.mxu0 0
    %2564 = vmatprep.subr.bf16.mxu0 0
    %2565 = vmatpush1.bf16.msra.mxu0 0
    %2566 = vmatprep.subr.bf16.mxu0 0
    %2567 = vmatpush1.bf16.msra.mxu0 0
    %2568 = vmatprep.subr.bf16.mxu0 0
    %2569 = vmatpush1.bf16.msra.mxu0 0
    %2570 = vmatprep.subr.bf16.mxu0 0
    %2571 = vmatpush1.bf16.msra.mxu0 0
    %2572 = vmatprep.subr.bf16.mxu0 0
    %2573 = vmatpush1.bf16.msra.mxu0 0
    %2574 = vmatprep.subr.bf16.mxu0 0
    %2575 = vmatpush1.bf16.msra.mxu0 0
    %2576 = vmatprep.subr.bf16.mxu0 0
    %2577 = vmatpush1.bf16.msra.mxu0 0
    %2578 = vmatprep.subr.bf16.mxu0 0
    %2579 = vmatpush1.bf16.msra.mxu0 0
    %2580 = vmatprep.subr.bf16.mxu0 0
    %2581 = vmatpush1.bf16.msra.mxu0 0
    %2582 = vmatprep.subr.bf16.mxu0 0
    %2583 = vmatpush1.bf16.msra.mxu0 0
    %2584 = vmatprep.subr.bf16.mxu0 0
    %2585 = vmatpush1.bf16.msra.mxu0 0
    %2586 = vmatprep.subr.bf16.mxu0 0
    %2587 = vmatpush1.bf16.msra.mxu0 0
    %2588 = vmatprep.mubr.bf16.mxu0 0
    %2589 = vmatmul.mubr.bf16.gmra.mrb[0].mxu0 %v2554
    %v2590 = vpop.f32.mrb[0].mxu0
    %v2591 = vadd.f32 %v2540, %v2590
    %v2592 = vpop.f32.mrb[0].mxu0
    %v2593 = vpop.f32.mrb[0].mxu0
    %v2594 = vpop.f32.mrb[0].mxu0
    %2595 = vdwg.mxu0
    %2596 = vst [vmem:[#allocation2] sm:$0x3] %v2591
    // Predicated region
    $region46: #{sentiment_forward.1} parent=1 // pred_check
      _
    $region47: #{sentiment_forward.1} parent=1 // pred_check_branch
      %2598 = sbr.rel (0) target = $region49
    $region48: #{sentiment_forward.1} parent=1 // pred_region
      %s2600 = ssub.s32 32, 32
      %2601 = vsyncadd [#allocation3], %s2600
      %s2603 = sshll.u32 [#allocation2], 4
      %s2604 = int_to_ptr.vmem [resolvable:$true] %s2603
      %2606 = dma.vmem_to_hbm [thread:$0]  %s2604, 32, %s11, [#allocation3]
    $region49: #{sentiment_forward.1} parent=1 // pred_fallthru
      _
    // Predicated region
    $region50: #{sentiment_forward.1} parent=1 // pred_check
      _
    $region51: #{sentiment_forward.1} parent=1 // pred_check_branch
      %2608 = sbr.rel (0) target = $region53
    $region52: #{sentiment_forward.1} parent=1 // pred_region
      %2609 = dma.done [#allocation3], 32
    $region53: #{sentiment_forward.1} parent=1 // pred_fallthru
      _
    %2610 = vsyncpa [#allocation3], 1

</llo_original>
